<compile_context>
chip_gen: v7x
topology: tpu7x:2x2x1
jax: 0.10.0
libtpu: 0.0.40
codegen_flags: <defaults>
</compile_context>

<pallas_src>
import functools

import jax
import jax.numpy as jnp
from jax.experimental import pallas as pl
from jax.experimental.pallas import tpu as pltpu

NZ, NGF, NC = 100, 64, 3     # nz, ngf, nc from the PyTorch module
BN_EPS = 1e-5                # torch.nn.BatchNorm2d default


def _col_tile(n_cols):
    """Column tile: >=2 'parallel' grid blocks (v7x megacore) while keeping each
    block a multiple of 256 lanes for good MXU column fill on v6e/v7x."""
    if n_cols >= 512 and n_cols % 512 == 0:
        return n_cols // 2
    return n_cols


# ----------------------------- Pallas kernels ------------------------------ #

def _matmul_kernel(a_ref, b_ref, o_ref):
    o_ref[...] = jnp.dot(a_ref[...], b_ref[...],
                         preferred_element_type=jnp.float32)


def pallas_matmul(a, b):
    """(M, K) @ (K, Nc) -> (M, Nc) f32.  bf16 operands, f32 accumulation.
    Tiled over output columns only; A / K stay VMEM resident (tiny here)."""
    M, K = a.shape
    _, Nc = b.shape
    tn = _col_tile(Nc)
    return pl.pallas_call(
        _matmul_kernel,
        out_shape=jax.ShapeDtypeStruct((M, Nc), jnp.float32),
        grid=(Nc // tn,),
        in_specs=[
            pl.BlockSpec((M, K), lambda j: (0, 0)),
            pl.BlockSpec((K, tn), lambda j: (0, j)),
        ],
        out_specs=pl.BlockSpec((M, tn), lambda j: (0, j)),
        compiler_params=pltpu.CompilerParams(dimension_semantics=("parallel",)),
    )(a.astype(jnp.bfloat16), b.astype(jnp.bfloat16))


def _bn_relu_matmul_kernel(x_ref, g_ref, b_ref, w_ref, o_ref):
    x = x_ref[...]                                    # (M, C) f32, NHWC slab
    mean = jnp.mean(x, axis=0, keepdims=True)         # batch stats over N*H*W
    var = jnp.mean(jnp.square(x - mean), axis=0, keepdims=True)
    h = (x - mean) * jax.lax.rsqrt(var + BN_EPS) * g_ref[...] + b_ref[...]
    h = jnp.maximum(h, 0.0).astype(jnp.bfloat16)      # ReLU, bf16 into the MXU
    o_ref[...] = jnp.dot(h, w_ref[...], preferred_element_type=jnp.float32)


def pallas_bn_relu_matmul(x, gamma, beta, w):
    """Fused BatchNorm(batch statistics) + ReLU + next-layer deconv GEMM.
    x: (M, C) f32 NHWC slab; w: (C, Nc) = next deconv weight, columns (kh,kw,co)."""
    M, C = x.shape
    _, Nc = w.shape
    tn = _col_tile(Nc)
    g = gamma.reshape(1, C).astype(jnp.float32)
    b = beta.reshape(1, C).astype(jnp.float32)
    # TODO(synk): for large batch, switch BN to a 2-pass sum/sumsq accumulator and
    # tile M; at these sizes the whole M fits a single VMEM block.
    return pl.pallas_call(
        _bn_relu_matmul_kernel,
        out_shape=jax.ShapeDtypeStruct((M, Nc), jnp.float32),
        grid=(Nc // tn,),
        in_specs=[
            pl.BlockSpec((M, C), lambda j: (0, 0)),
            pl.BlockSpec((1, C), lambda j: (0, 0)),
            pl.BlockSpec((1, C), lambda j: (0, 0)),
            pl.BlockSpec((C, tn), lambda j: (0, j)),
        ],
        out_specs=pl.BlockSpec((M, tn), lambda j: (0, j)),
        compiler_params=pltpu.CompilerParams(dimension_semantics=("parallel",)),
    )(x.astype(jnp.float32), g, b, w.astype(jnp.bfloat16))


def _tanh_kernel(x_ref, o_ref):
    o_ref[...] = jnp.tanh(x_ref[...])


def pallas_tanh(x):
    M, C = x.shape
    return pl.pallas_call(
        _tanh_kernel,
        out_shape=jax.ShapeDtypeStruct((M, C), jnp.float32),
        grid=(1,),
        in_specs=[pl.BlockSpec((M, C), lambda i: (0, 0))],
        out_specs=pl.BlockSpec((M, C), lambda i: (0, 0)),
    )(x.astype(jnp.float32))


# ------------------------------ JAX-side glue ------------------------------ #

def _deconv_weight(w_t):
    """ConvTranspose weight (Cin, Cout, 4, 4) -> GEMM weight (Cin, 16*Cout),
    columns ordered (kh, kw, cout)."""
    cin, cout = w_t.shape[0], w_t.shape[1]
    return w_t.transpose(0, 2, 3, 1).reshape(cin, 16 * cout)


def _col2im_s2(y, n, h, w, cout):
    """Scatter-add the 16 per-tap GEMM outputs of a k=4 / s=2 / p=1 transposed conv
    (4-subpixel-phase formulation).  y: (n*h*w, 16*cout), columns (kh, kw, c).
    Returns the NHWC activation (n, 2h, 2w, cout).
    Placement rule: contribution (i, j, kh, kw) lands at (2i+kh-1, 2j+kw-1)."""
    Y = y.reshape(n, h, w, 4, 4, cout)

    def t(kh, kw):
        return Y[:, :, :, kh, kw, :]                       # (n, h, w, c)

    def dn_h(a):  # out row a <- in row a-1 (zero at a=0)
        return jnp.concatenate([jnp.zeros_like(a[:, :1]), a[:, :-1]], axis=1)

    def up_h(a):  # out row a <- in row a+1 (zero at a=h-1)
        return jnp.concatenate([a[:, 1:], jnp.zeros_like(a[:, :1])], axis=1)

    def dn_w(a):
        return jnp.concatenate([jnp.zeros_like(a[:, :, :1]), a[:, :, :-1]], axis=2)

    def up_w(a):
        return jnp.concatenate([a[:, :, 1:], jnp.zeros_like(a[:, :, :1])], axis=2)

    # Output phase (r, s): oh = 2a + r, ow = 2b + s.
    p00 = t(1, 1) + dn_h(t(3, 1)) + dn_w(t(1, 3)) + dn_h(dn_w(t(3, 3)))
    p01 = t(1, 2) + dn_h(t(3, 2)) + up_w(t(1, 0)) + dn_h(up_w(t(3, 0)))
    p10 = t(2, 1) + up_h(t(0, 1)) + dn_w(t(2, 3)) + up_h(dn_w(t(0, 3)))
    p11 = t(2, 2) + up_h(t(0, 2)) + up_w(t(2, 0)) + up_h(up_w(t(0, 0)))

    r0 = jnp.stack([p00, p01], axis=3)                     # (n, h, w, 2, c)  (s axis)
    r1 = jnp.stack([p10, p11], axis=3)
    q = jnp.stack([r0, r1], axis=2)                        # (n, h, 2, w, 2, c)
    return q.reshape(n, 2 * h, 2 * w, cout)


def generator_sec_forward(params, x_input_1, x_input_2):
    # Reconstruct the additively shared input (the *_sec protocol's non-linearities
    # reconstruct-and-reshare, so computing on the plaintext preserves the
    # sum-of-shares forward semantics).
    x = (x_input_1 + x_input_2).astype(jnp.float32)        # (N, nz, 1, 1)
    N = x.shape[0]

    # deconv1: ConvTranspose2d(nz, 256, 4, s=1, p=0) on a 1x1 input is a pure GEMM;
    # its (kh, kw, c)-ordered columns are already the NHWC (N, 4, 4, 256) activation.
    y1 = pallas_matmul(x.reshape(N, NZ), _deconv_weight(params["w1"]))
    h1 = y1.reshape(N * 16, NGF * 4)                       # NHWC slab

    # deconv2: BN1+ReLU1 fused as GEMM prologue; GEMM-then-col2im.
    y2 = pallas_bn_relu_matmul(h1, params["g1"], params["b1"],
                               _deconv_weight(params["w2"]))
    h2 = _col2im_s2(y2, N, 4, 4, NGF * 2).reshape(N * 64, NGF * 2)   # (N, 8, 8, 128)

    # deconv3
    y3 = pallas_bn_relu_matmul(h2, params["g2"], params["b2"],
                               _deconv_weight(params["w3"]))
    h3 = _col2im_s2(y3, N, 8, 8, NGF).reshape(N * 256, NGF)          # (N, 16, 16, 64)

    # deconv4 + tanh
    y4 = pallas_bn_relu_matmul(h3, params["g3"], params["b3"],
                               _deconv_weight(params["w4"]))
    pre = _col2im_s2(y4, N, 16, 16, NC)                              # (N, 32, 32, 3)

    out = pallas_tanh(pre.reshape(N * 8, 32 * 32 * NC // 8))         # lane-dense (., 384)
    out = out.reshape(N, 32, 32, NC).transpose(0, 3, 1, 2)           # NCHW like PyTorch

    # TODO(synk): no protocol-level re-randomization of the output shares; return the
    # trivial deterministic sharing (y, 0) whose sum equals the plaintext output.
    return out, jnp.zeros_like(out)


def _reference_forward(params, x1, x2):
    """Pure-JAX f32 reference (dilated-conv equivalence) for numerical validation."""
    x = (x1 + x2).astype(jnp.float32)

    def deconv_t(h, w_t, stride, pad):
        rhs = jnp.flip(w_t, axis=(2, 3)).transpose(1, 0, 2, 3)   # (Cout, Cin, kh, kw)
        return jax.lax.conv_general_dilated(
            h, rhs, window_strides=(1, 1),
            padding=((3 - pad, 3 - pad), (3 - pad, 3 - pad)),
            lhs_dilation=(stride, stride),
            dimension_numbers=("NCHW", "OIHW", "NCHW"))

    def bn_relu(y, g, b):
        mean = y.mean(axis=(0, 2, 3), keepdims=True)
        var = jnp.square(y - mean).mean(axis=(0, 2, 3), keepdims=True)
        yn = (y - mean) * jax.lax.rsqrt(var + BN_EPS)
        return jnp.maximum(yn * g.reshape(1, -1, 1, 1) + b.reshape(1, -1, 1, 1), 0.0)

    h = bn_relu(deconv_t(x, params["w1"], 1, 0), params["g1"], params["b1"])
    h = bn_relu(deconv_t(h, params["w2"], 2, 1), params["g2"], params["b2"])
    h = bn_relu(deconv_t(h, params["w3"], 2, 1), params["g3"], params["b3"])
    return jnp.tanh(deconv_t(h, params["w4"], 2, 1))


def init_params(key):
    ks = jax.random.split(key, 7)
    std = 0.02  # DCGAN weight init
    return {
        "w1": std * jax.random.normal(ks[0], (NZ, NGF * 4, 4, 4), jnp.float32),
        "w2": std * jax.random.normal(ks[1], (NGF * 4, NGF * 2, 4, 4), jnp.float32),
        "w3": std * jax.random.normal(ks[2], (NGF * 2, NGF, 4, 4), jnp.float32),
        "w4": std * jax.random.normal(ks[3], (NGF, NC, 4, 4), jnp.float32),
        "g1": 1.0 + 0.02 * jax.random.normal(ks[4], (NGF * 4,), jnp.float32),
        "b1": jnp.zeros((NGF * 4,), jnp.float32),
        "g2": 1.0 + 0.02 * jax.random.normal(ks[5], (NGF * 2,), jnp.float32),
        "b2": jnp.zeros((NGF * 2,), jnp.float32),
        "g3": 1.0 + 0.02 * jax.random.normal(ks[6], (NGF,), jnp.float32),
        "b3": jnp.zeros((NGF,), jnp.float32),
    }


if __name__ == "__main__":
    key = jax.random.PRNGKey(0)
    kp, k1, k2 = jax.random.split(key, 3)
    params = init_params(kp)

    batch = 2
    x1 = jax.random.normal(k1, (batch, NZ, 1, 1), jnp.float32)
    x2 = jax.random.normal(k2, (batch, NZ, 1, 1), jnp.float32)

    fwd = jax.jit(functools.partial(generator_sec_forward, params))
    o1, o2 = fwd(x1, x2)
    jax.block_until_ready((o1, o2))

    assert o1.shape == (batch, NC, 32, 32) and o2.shape == (batch, NC, 32, 32)
    assert bool(jnp.all(jnp.isfinite(o1)))
    assert bool(jnp.all(jnp.abs(o1 + o2) <= 1.0 + 1e-6))     # tanh range

    # Validate the GEMM+col2im / fused-BN lowering against a pure-f32 XLA reference
    # (loose tolerance: the Pallas path uses bf16 MXU operands with f32 accumulation).
    ref = jax.jit(functools.partial(_reference_forward, params))(x1, x2)
    err = float(jnp.max(jnp.abs((o1 + o2) - ref)))
    assert err < 0.2, f"mismatch vs f32 reference: max abs err = {err}"

    print("KERNEL_OK")
</pallas_src>

<mosaic_0001>
module attributes {stable_mosaic.version = 11 : i64} {
  func.func @_matmul_kernel(%arg0: i32, %arg1: memref<2x100xbf16, #tpu.memory_space<vmem>>, %arg2: memref<100x2048xbf16, #tpu.memory_space<vmem>>, %arg3: memref<2x2048xf32, #tpu.memory_space<vmem>>) attributes {dimension_semantics = [#tpu.dimension_semantics<parallel>], iteration_bounds = array<i64: 2>, scalar_prefetch = 0 : i64, scratch_operands = 0 : i64, tpu.core_type = #tpu.core_type<tc>, window_params = [{pipeline_mode = #tpu.pipeline_mode<synchronous>, transform_indices = @transform_0, window_bounds = array<i64: 2, 100>}, {transform_indices = @transform_1, window_bounds = array<i64: 100, 2048>}, {transform_indices = @transform_2, window_bounds = array<i64: 2, 2048>}]} {
    %c0 = arith.constant 0 : index
    %c0_0 = arith.constant 0 : index
    %0 = vector.load %arg1[%c0, %c0_0] : memref<2x100xbf16, #tpu.memory_space<vmem>>, vector<2x100xbf16>
    %c0_1 = arith.constant 0 : index
    %c0_2 = arith.constant 0 : index
    %1 = vector.load %arg2[%c0_1, %c0_2] : memref<100x2048xbf16, #tpu.memory_space<vmem>>, vector<100x2048xbf16>
    %cst = arith.constant dense<0.000000e+00> : vector<2x2048xf32>
    %2 = tpu.matmul %0, %1, %cst {dimension_numbers = #tpu.dot_dimension_numbers<[1], [0], [0], [1], [0, 0, 1, 1], [], []>} : vector<2x100xbf16>, vector<100x2048xbf16>, vector<2x2048xf32> -> vector<2x2048xf32>
    %c0_3 = arith.constant 0 : index
    %c0_4 = arith.constant 0 : index
    %3 = vector.load %arg3[%c0_3, %c0_4] : memref<2x2048xf32, #tpu.memory_space<vmem>>, vector<2x2048xf32>
    tpu.vector_store %arg3[%c0_3, %c0_4], %2 {strides = array<i32>} : memref<2x2048xf32, #tpu.memory_space<vmem>>, vector<2x2048xf32>,
    return
  }
  func.func @transform_0(%arg0: i32) -> (i32, i32) {
    %c0_i32 = arith.constant 0 : i32
    %c0_i32_0 = arith.constant 0 : i32
    %c0_i32_1 = arith.constant 0 : i32
    return %c0_i32, %c0_i32_0 : i32, i32
  }
  func.func @transform_1(%arg0: i32) -> (i32, i32) {
    %c0_i32 = arith.constant 0 : i32
    %c0_i32_0 = arith.constant 0 : i32
    return %c0_i32, %arg0 : i32, i32
  }
  func.func @transform_2(%arg0: i32) -> (i32, i32) {
    %c0_i32 = arith.constant 0 : i32
    %c0_i32_0 = arith.constant 0 : i32
    return %c0_i32, %arg0 : i32, i32
  }
}

module attributes {stable_mosaic.version = 11 : i64} {
  func.func @_bn_relu_matmul_kernel(%arg0: i32, %arg1: memref<32x256xf32, #tpu.memory_space<vmem>>, %arg2: memref<1x256xf32, #tpu.memory_space<vmem>>, %arg3: memref<1x256xf32, #tpu.memory_space<vmem>>, %arg4: memref<256x1024xbf16, #tpu.memory_space<vmem>>, %arg5: memref<32x1024xf32, #tpu.memory_space<vmem>>) attributes {dimension_semantics = [#tpu.dimension_semantics<parallel>], iteration_bounds = array<i64: 2>, scalar_prefetch = 0 : i64, scratch_operands = 0 : i64, tpu.core_type = #tpu.core_type<tc>, window_params = [{pipeline_mode = #tpu.pipeline_mode<synchronous>, transform_indices = @transform_0, window_bounds = array<i64: 32, 256>}, {pipeline_mode = #tpu.pipeline_mode<synchronous>, transform_indices = @transform_1, window_bounds = array<i64: 1, 256>}, {pipeline_mode = #tpu.pipeline_mode<synchronous>, transform_indices = @transform_2, window_bounds = array<i64: 1, 256>}, {transform_indices = @transform_3, window_bounds = array<i64: 256, 1024>}, {transform_indices = @transform_4, window_bounds = array<i64: 32, 1024>}]} {
    %c0 = arith.constant 0 : index
    %c0_0 = arith.constant 0 : index
    %0 = vector.load %arg1[%c0, %c0_0] : memref<32x256xf32, #tpu.memory_space<vmem>>, vector<32x256xf32>
    %cst = arith.constant dense<0.000000e+00> : vector<256xf32>
    %1 = vector.multi_reduction <add>, %0, %cst [0] : vector<32x256xf32> to vector<256xf32>
    %2 = vector.shape_cast %1 : vector<256xf32> to vector<1x256xf32>
    %cst_1 = arith.constant 3.200000e+01 : f32
    %3 = vector.broadcast %cst_1 : f32 to vector<1x256xf32>
    %4 = arith.divf %2, %3 : vector<1x256xf32>
    %5 = vector.broadcast %4 : vector<1x256xf32> to vector<32x256xf32>
    %6 = arith.subf %0, %5 : vector<32x256xf32>
    %7 = arith.mulf %6, %6 : vector<32x256xf32>
    %cst_2 = arith.constant dense<0.000000e+00> : vector<256xf32>
    %8 = vector.multi_reduction <add>, %7, %cst_2 [0] : vector<32x256xf32> to vector<256xf32>
    %9 = vector.shape_cast %8 : vector<256xf32> to vector<1x256xf32>
    %cst_3 = arith.constant 3.200000e+01 : f32
    %10 = vector.broadcast %cst_3 : f32 to vector<1x256xf32>
    %11 = arith.divf %9, %10 : vector<1x256xf32>
    %12 = vector.broadcast %4 : vector<1x256xf32> to vector<32x256xf32>
    %13 = arith.subf %0, %12 : vector<32x256xf32>
    %cst_4 = arith.constant 9.99999974E-6 : f32
    %14 = vector.broadcast %cst_4 : f32 to vector<1x256xf32>
    %15 = arith.addf %11, %14 : vector<1x256xf32>
    %16 = math.rsqrt %15 : vector<1x256xf32>
    %17 = vector.broadcast %16 : vector<1x256xf32> to vector<32x256xf32>
    %18 = arith.mulf %13, %17 : vector<32x256xf32>
    %c0_5 = arith.constant 0 : index
    %c0_6 = arith.constant 0 : index
    %19 = vector.load %arg2[%c0_5, %c0_6] : memref<1x256xf32, #tpu.memory_space<vmem>>, vector<1x256xf32>
    %20 = vector.broadcast %19 : vector<1x256xf32> to vector<32x256xf32>
    %21 = arith.mulf %18, %20 : vector<32x256xf32>
    %c0_7 = arith.constant 0 : index
    %c0_8 = arith.constant 0 : index
    %22 = vector.load %arg3[%c0_7, %c0_8] : memref<1x256xf32, #tpu.memory_space<vmem>>, vector<1x256xf32>
    %23 = vector.broadcast %22 : vector<1x256xf32> to vector<32x256xf32>
    %24 = arith.addf %21, %23 : vector<32x256xf32>
    %cst_9 = arith.constant 0.000000e+00 : f32
    %25 = vector.broadcast %cst_9 : f32 to vector<32x256xf32>
    %26 = arith.maximumf %24, %25 : vector<32x256xf32>
    %27 = arith.truncf %26 : vector<32x256xf32> to vector<32x256xbf16>
    %c0_10 = arith.constant 0 : index
    %c0_11 = arith.constant 0 : index
    %28 = vector.load %arg4[%c0_10, %c0_11] : memref<256x1024xbf16, #tpu.memory_space<vmem>>, vector<256x1024xbf16>
    %cst_12 = arith.constant dense<0.000000e+00> : vector<32x1024xf32>
    %29 = tpu.matmul %27, %28, %cst_12 {dimension_numbers = #tpu.dot_dimension_numbers<[1], [0], [0], [1], [0, 0, 1, 1], [], []>} : vector<32x256xbf16>, vector<256x1024xbf16>, vector<32x1024xf32> -> vector<32x1024xf32>
    %c0_13 = arith.constant 0 : index
    %c0_14 = arith.constant 0 : index
    %30 = vector.load %arg5[%c0_13, %c0_14] : memref<32x1024xf32, #tpu.memory_space<vmem>>, vector<32x1024xf32>
    tpu.vector_store %arg5[%c0_13, %c0_14], %29 {strides = array<i32>} : memref<32x1024xf32, #tpu.memory_space<vmem>>, vector<32x1024xf32>,
    return
  }
  func.func @transform_0(%arg0: i32) -> (i32, i32) {
    %c0_i32 = arith.constant 0 : i32
    %c0_i32_0 = arith.constant 0 : i32
    %c0_i32_1 = arith.constant 0 : i32
    return %c0_i32, %c0_i32_0 : i32, i32
  }
  func.func @transform_1(%arg0: i32) -> (i32, i32) {
    %c0_i32 = arith.constant 0 : i32
    %c0_i32_0 = arith.constant 0 : i32
    %c0_i32_1 = arith.constant 0 : i32
    return %c0_i32, %c0_i32_0 : i32, i32
  }
  func.func @transform_2(%arg0: i32) -> (i32, i32) {
    %c0_i32 = arith.constant 0 : i32
    %c0_i32_0 = arith.constant 0 : i32
    %c0_i32_1 = arith.constant 0 : i32
    return %c0_i32, %c0_i32_0 : i32, i32
  }
  func.func @transform_3(%arg0: i32) -> (i32, i32) {
    %c0_i32 = arith.constant 0 : i32
    %c0_i32_0 = arith.constant 0 : i32
    return %c0_i32, %arg0 : i32, i32
  }
  func.func @transform_4(%arg0: i32) -> (i32, i32) {
    %c0_i32 = arith.constant 0 : i32
    %c0_i32_0 = arith.constant 0 : i32
    return %c0_i32, %arg0 : i32, i32
  }
}

module attributes {stable_mosaic.version = 11 : i64} {
  func.func @_bn_relu_matmul_kernel(%arg0: i32, %arg1: memref<128x128xf32, #tpu.memory_space<vmem>>, %arg2: memref<1x128xf32, #tpu.memory_space<vmem>>, %arg3: memref<1x128xf32, #tpu.memory_space<vmem>>, %arg4: memref<128x512xbf16, #tpu.memory_space<vmem>>, %arg5: memref<128x512xf32, #tpu.memory_space<vmem>>) attributes {dimension_semantics = [#tpu.dimension_semantics<parallel>], iteration_bounds = array<i64: 2>, scalar_prefetch = 0 : i64, scratch_operands = 0 : i64, tpu.core_type = #tpu.core_type<tc>, window_params = [{pipeline_mode = #tpu.pipeline_mode<synchronous>, transform_indices = @transform_0, window_bounds = array<i64: 128, 128>}, {pipeline_mode = #tpu.pipeline_mode<synchronous>, transform_indices = @transform_1, window_bounds = array<i64: 1, 128>}, {pipeline_mode = #tpu.pipeline_mode<synchronous>, transform_indices = @transform_2, window_bounds = array<i64: 1, 128>}, {transform_indices = @transform_3, window_bounds = array<i64: 128, 512>}, {transform_indices = @transform_4, window_bounds = array<i64: 128, 512>}]} {
    %c0 = arith.constant 0 : index
    %c0_0 = arith.constant 0 : index
    %0 = vector.load %arg1[%c0, %c0_0] : memref<128x128xf32, #tpu.memory_space<vmem>>, vector<128x128xf32>
    %cst = arith.constant dense<0.000000e+00> : vector<128xf32>
    %1 = vector.multi_reduction <add>, %0, %cst [0] : vector<128x128xf32> to vector<128xf32>
    %2 = vector.shape_cast %1 : vector<128xf32> to vector<1x128xf32>
    %cst_1 = arith.constant 1.280000e+02 : f32
    %3 = vector.broadcast %cst_1 : f32 to vector<1x128xf32>
    %4 = arith.divf %2, %3 : vector<1x128xf32>
    %5 = vector.broadcast %4 : vector<1x128xf32> to vector<128x128xf32>
    %6 = arith.subf %0, %5 : vector<128x128xf32>
    %7 = arith.mulf %6, %6 : vector<128x128xf32>
    %cst_2 = arith.constant dense<0.000000e+00> : vector<128xf32>
    %8 = vector.multi_reduction <add>, %7, %cst_2 [0] : vector<128x128xf32> to vector<128xf32>
    %9 = vector.shape_cast %8 : vector<128xf32> to vector<1x128xf32>
    %cst_3 = arith.constant 1.280000e+02 : f32
    %10 = vector.broadcast %cst_3 : f32 to vector<1x128xf32>
    %11 = arith.divf %9, %10 : vector<1x128xf32>
    %12 = vector.broadcast %4 : vector<1x128xf32> to vector<128x128xf32>
    %13 = arith.subf %0, %12 : vector<128x128xf32>
    %cst_4 = arith.constant 9.99999974E-6 : f32
    %14 = vector.broadcast %cst_4 : f32 to vector<1x128xf32>
    %15 = arith.addf %11, %14 : vector<1x128xf32>
    %16 = math.rsqrt %15 : vector<1x128xf32>
    %17 = vector.broadcast %16 : vector<1x128xf32> to vector<128x128xf32>
    %18 = arith.mulf %13, %17 : vector<128x128xf32>
    %c0_5 = arith.constant 0 : index
    %c0_6 = arith.constant 0 : index
    %19 = vector.load %arg2[%c0_5, %c0_6] : memref<1x128xf32, #tpu.memory_space<vmem>>, vector<1x128xf32>
    %20 = vector.broadcast %19 : vector<1x128xf32> to vector<128x128xf32>
    %21 = arith.mulf %18, %20 : vector<128x128xf32>
    %c0_7 = arith.constant 0 : index
    %c0_8 = arith.constant 0 : index
    %22 = vector.load %arg3[%c0_7, %c0_8] : memref<1x128xf32, #tpu.memory_space<vmem>>, vector<1x128xf32>
    %23 = vector.broadcast %22 : vector<1x128xf32> to vector<128x128xf32>
    %24 = arith.addf %21, %23 : vector<128x128xf32>
    %cst_9 = arith.constant 0.000000e+00 : f32
    %25 = vector.broadcast %cst_9 : f32 to vector<128x128xf32>
    %26 = arith.maximumf %24, %25 : vector<128x128xf32>
    %27 = arith.truncf %26 : vector<128x128xf32> to vector<128x128xbf16>
    %c0_10 = arith.constant 0 : index
    %c0_11 = arith.constant 0 : index
    %28 = vector.load %arg4[%c0_10, %c0_11] : memref<128x512xbf16, #tpu.memory_space<vmem>>, vector<128x512xbf16>
    %cst_12 = arith.constant dense<0.000000e+00> : vector<128x512xf32>
    %29 = tpu.matmul %27, %28, %cst_12 {dimension_numbers = #tpu.dot_dimension_numbers<[1], [0], [0], [1], [0, 0, 1, 1], [], []>} : vector<128x128xbf16>, vector<128x512xbf16>, vector<128x512xf32> -> vector<128x512xf32>
    %c0_13 = arith.constant 0 : index
    %c0_14 = arith.constant 0 : index
    %30 = vector.load %arg5[%c0_13, %c0_14] : memref<128x512xf32, #tpu.memory_space<vmem>>, vector<128x512xf32>
    tpu.vector_store %arg5[%c0_13, %c0_14], %29 {strides = array<i32>} : memref<128x512xf32, #tpu.memory_space<vmem>>, vector<128x512xf32>,
    return
  }
  func.func @transform_0(%arg0: i32) -> (i32, i32) {
    %c0_i32 = arith.constant 0 : i32
    %c0_i32_0 = arith.constant 0 : i32
    %c0_i32_1 = arith.constant 0 : i32
    return %c0_i32, %c0_i32_0 : i32, i32
  }
  func.func @transform_1(%arg0: i32) -> (i32, i32) {
    %c0_i32 = arith.constant 0 : i32
    %c0_i32_0 = arith.constant 0 : i32
    %c0_i32_1 = arith.constant 0 : i32
    return %c0_i32, %c0_i32_0 : i32, i32
  }
  func.func @transform_2(%arg0: i32) -> (i32, i32) {
    %c0_i32 = arith.constant 0 : i32
    %c0_i32_0 = arith.constant 0 : i32
    %c0_i32_1 = arith.constant 0 : i32
    return %c0_i32, %c0_i32_0 : i32, i32
  }
  func.func @transform_3(%arg0: i32) -> (i32, i32) {
    %c0_i32 = arith.constant 0 : i32
    %c0_i32_0 = arith.constant 0 : i32
    return %c0_i32, %arg0 : i32, i32
  }
  func.func @transform_4(%arg0: i32) -> (i32, i32) {
    %c0_i32 = arith.constant 0 : i32
    %c0_i32_0 = arith.constant 0 : i32
    return %c0_i32, %arg0 : i32, i32
  }
}

module attributes {stable_mosaic.version = 11 : i64} {
  func.func @_bn_relu_matmul_kernel(%arg0: i32, %arg1: memref<512x64xf32, #tpu.memory_space<vmem>>, %arg2: memref<1x64xf32, #tpu.memory_space<vmem>>, %arg3: memref<1x64xf32, #tpu.memory_space<vmem>>, %arg4: memref<64x48xbf16, #tpu.memory_space<vmem>>, %arg5: memref<512x48xf32, #tpu.memory_space<vmem>>) attributes {dimension_semantics = [#tpu.dimension_semantics<parallel>], iteration_bounds = array<i64: 1>, scalar_prefetch = 0 : i64, scratch_operands = 0 : i64, tpu.core_type = #tpu.core_type<tc>, window_params = [{pipeline_mode = #tpu.pipeline_mode<synchronous>, transform_indices = @transform_0, window_bounds = array<i64: 512, 64>}, {pipeline_mode = #tpu.pipeline_mode<synchronous>, transform_indices = @transform_1, window_bounds = array<i64: 1, 64>}, {pipeline_mode = #tpu.pipeline_mode<synchronous>, transform_indices = @transform_2, window_bounds = array<i64: 1, 64>}, {transform_indices = @transform_3, window_bounds = array<i64: 64, 48>}, {transform_indices = @transform_4, window_bounds = array<i64: 512, 48>}]} {
    %c0 = arith.constant 0 : index
    %c0_0 = arith.constant 0 : index
    %0 = vector.load %arg1[%c0, %c0_0] : memref<512x64xf32, #tpu.memory_space<vmem>>, vector<512x64xf32>
    %cst = arith.constant dense<0.000000e+00> : vector<64xf32>
    %1 = vector.multi_reduction <add>, %0, %cst [0] : vector<512x64xf32> to vector<64xf32>
    %2 = vector.shape_cast %1 : vector<64xf32> to vector<1x64xf32>
    %cst_1 = arith.constant 5.120000e+02 : f32
    %3 = vector.broadcast %cst_1 : f32 to vector<1x64xf32>
    %4 = arith.divf %2, %3 : vector<1x64xf32>
    %5 = vector.broadcast %4 : vector<1x64xf32> to vector<512x64xf32>
    %6 = arith.subf %0, %5 : vector<512x64xf32>
    %7 = arith.mulf %6, %6 : vector<512x64xf32>
    %cst_2 = arith.constant dense<0.000000e+00> : vector<64xf32>
    %8 = vector.multi_reduction <add>, %7, %cst_2 [0] : vector<512x64xf32> to vector<64xf32>
    %9 = vector.shape_cast %8 : vector<64xf32> to vector<1x64xf32>
    %cst_3 = arith.constant 5.120000e+02 : f32
    %10 = vector.broadcast %cst_3 : f32 to vector<1x64xf32>
    %11 = arith.divf %9, %10 : vector<1x64xf32>
    %12 = vector.broadcast %4 : vector<1x64xf32> to vector<512x64xf32>
    %13 = arith.subf %0, %12 : vector<512x64xf32>
    %cst_4 = arith.constant 9.99999974E-6 : f32
    %14 = vector.broadcast %cst_4 : f32 to vector<1x64xf32>
    %15 = arith.addf %11, %14 : vector<1x64xf32>
    %16 = math.rsqrt %15 : vector<1x64xf32>
    %17 = vector.broadcast %16 : vector<1x64xf32> to vector<512x64xf32>
    %18 = arith.mulf %13, %17 : vector<512x64xf32>
    %c0_5 = arith.constant 0 : index
    %c0_6 = arith.constant 0 : index
    %19 = vector.load %arg2[%c0_5, %c0_6] : memref<1x64xf32, #tpu.memory_space<vmem>>, vector<1x64xf32>
    %20 = vector.broadcast %19 : vector<1x64xf32> to vector<512x64xf32>
    %21 = arith.mulf %18, %20 : vector<512x64xf32>
    %c0_7 = arith.constant 0 : index
    %c0_8 = arith.constant 0 : index
    %22 = vector.load %arg3[%c0_7, %c0_8] : memref<1x64xf32, #tpu.memory_space<vmem>>, vector<1x64xf32>
    %23 = vector.broadcast %22 : vector<1x64xf32> to vector<512x64xf32>
    %24 = arith.addf %21, %23 : vector<512x64xf32>
    %cst_9 = arith.constant 0.000000e+00 : f32
    %25 = vector.broadcast %cst_9 : f32 to vector<512x64xf32>
    %26 = arith.maximumf %24, %25 : vector<512x64xf32>
    %27 = arith.truncf %26 : vector<512x64xf32> to vector<512x64xbf16>
    %c0_10 = arith.constant 0 : index
    %c0_11 = arith.constant 0 : index
    %28 = vector.load %arg4[%c0_10, %c0_11] : memref<64x48xbf16, #tpu.memory_space<vmem>>, vector<64x48xbf16>
    %cst_12 = arith.constant dense<0.000000e+00> : vector<512x48xf32>
    %29 = tpu.matmul %27, %28, %cst_12 {dimension_numbers = #tpu.dot_dimension_numbers<[1], [0], [0], [1], [0, 0, 1, 1], [], []>} : vector<512x64xbf16>, vector<64x48xbf16>, vector<512x48xf32> -> vector<512x48xf32>
    %c0_13 = arith.constant 0 : index
    %c0_14 = arith.constant 0 : index
    %30 = vector.load %arg5[%c0_13, %c0_14] : memref<512x48xf32, #tpu.memory_space<vmem>>, vector<512x48xf32>
    tpu.vector_store %arg5[%c0_13, %c0_14], %29 {strides = array<i32>} : memref<512x48xf32, #tpu.memory_space<vmem>>, vector<512x48xf32>,
    return
  }
  func.func @transform_0(%arg0: i32) -> (i32, i32) {
    %c0_i32 = arith.constant 0 : i32
    %c0_i32_0 = arith.constant 0 : i32
    %c0_i32_1 = arith.constant 0 : i32
    return %c0_i32, %c0_i32_0 : i32, i32
  }
  func.func @transform_1(%arg0: i32) -> (i32, i32) {
    %c0_i32 = arith.constant 0 : i32
    %c0_i32_0 = arith.constant 0 : i32
    %c0_i32_1 = arith.constant 0 : i32
    return %c0_i32, %c0_i32_0 : i32, i32
  }
  func.func @transform_2(%arg0: i32) -> (i32, i32) {
    %c0_i32 = arith.constant 0 : i32
    %c0_i32_0 = arith.constant 0 : i32
    %c0_i32_1 = arith.constant 0 : i32
    return %c0_i32, %c0_i32_0 : i32, i32
  }
  func.func @transform_3(%arg0: i32) -> (i32, i32) {
    %c0_i32 = arith.constant 0 : i32
    %c0_i32_0 = arith.constant 0 : i32
    return %c0_i32, %arg0 : i32, i32
  }
  func.func @transform_4(%arg0: i32) -> (i32, i32) {
    %c0_i32 = arith.constant 0 : i32
    %c0_i32_0 = arith.constant 0 : i32
    return %c0_i32, %arg0 : i32, i32
  }
}

module attributes {stable_mosaic.version = 11 : i64} {
  func.func @_tanh_kernel(%arg0: i32, %arg1: memref<16x384xf32, #tpu.memory_space<vmem>>, %arg2: memref<16x384xf32, #tpu.memory_space<vmem>>) attributes {dimension_semantics = [#tpu.dimension_semantics<arbitrary>], iteration_bounds = array<i64: 1>, scalar_prefetch = 0 : i64, scratch_operands = 0 : i64, tpu.core_type = #tpu.core_type<tc>, window_params = [{pipeline_mode = #tpu.pipeline_mode<synchronous>, transform_indices = @transform_0, window_bounds = array<i64: 16, 384>}, {pipeline_mode = #tpu.pipeline_mode<synchronous>, transform_indices = @transform_1, window_bounds = array<i64: 16, 384>}]} {
    %c0 = arith.constant 0 : index
    %c0_0 = arith.constant 0 : index
    %0 = vector.load %arg1[%c0, %c0_0] : memref<16x384xf32, #tpu.memory_space<vmem>>, vector<16x384xf32>
    %1 = math.tanh %0 : vector<16x384xf32>
    %c0_1 = arith.constant 0 : index
    %c0_2 = arith.constant 0 : index
    %2 = vector.load %arg2[%c0_1, %c0_2] : memref<16x384xf32, #tpu.memory_space<vmem>>, vector<16x384xf32>
    tpu.vector_store %arg2[%c0_1, %c0_2], %1 {strides = array<i32>} : memref<16x384xf32, #tpu.memory_space<vmem>>, vector<16x384xf32>,
    return
  }
  func.func @transform_0(%arg0: i32) -> (i32, i32) {
    %c0_i32 = arith.constant 0 : i32
    %c0_i32_0 = arith.constant 0 : i32
    %c0_i32_1 = arith.constant 0 : i32
    return %c0_i32, %c0_i32_0 : i32, i32
  }
  func.func @transform_1(%arg0: i32) -> (i32, i32) {
    %c0_i32 = arith.constant 0 : i32
    %c0_i32_0 = arith.constant 0 : i32
    %c0_i32_1 = arith.constant 0 : i32
    return %c0_i32, %c0_i32_0 : i32, i32
  }
}

</mosaic_0001>

<llo_original>
// kernel: generator_sec_forward.5
$region0: #{generator_sec_forward.5}
  #allocation0 [shape = 'u32[]', space=smem, size = 0x4, offset = 0x4, fixed_abs, tag = 'smem constant byte address 0x4 - core index']
  #allocation1 [shape = 'u32[144,128]{1,0:T(1,128)}', space=vmem, size = 0x12000, scoped, tag = 'internal scratch']
  %s0 = inlined_call_operand.vmem [shape: bf16[2,100], index: 0, kind: input, shape index: {}]
  %s1 = inlined_call_operand.vmem [shape: bf16[100,4096], index: 1, kind: input, shape index: {}]
  %s2 = inlined_call_operand.vmem [shape: f32[2,4096], index: 2, kind: output, shape index: {}]
  %s3 = sld [smem:[#allocation0]]
  $region64: #{generator_sec_forward.5} parent=0
    _
  %s5 = ssub.s32 1, %s3
  %s6 = scalar_select 0, %s5, %s3
  $region1: #{generator_sec_forward.5} parent=0
    #allocation2 [shape = 'u8[851968]{0}', space=vmem, size = 0xd0000, scoped, tag = 'input window, operand 1']
    loop: start=0, step=1, limit=4
    $region2: #{generator_sec_forward.5} parent=1 // loop_pre_header
      _
    $region3: #{generator_sec_forward.5} parent=1 // loop_header
      %s8 = sphi 0, %s12
      %p9 = scmp.ge.s32.totalorder %s8, 4
      %s16 = sphi 0, %s16
      %s18 = sphi 0, %s16
      %s19 = sphi 0, %s18
      %s33 = sphi 0, %s19
      %s39 = sphi 0, %s41
      %s42 = sphi 0, %s39
      %s43 = sphi 0, %s42
      %s59 = sphi 0, %s43
      %s65 = sphi 0, %s67
      %s68 = sphi 0, %s65
      %s69 = sphi 0, %s68
      %s85 = sphi 0, %s69
    $region4: #{generator_sec_forward.5} parent=1 // loop_header_branch
      %11 = sbr.rel (%p9) target = $region8
    $region5: #{generator_sec_forward.5} parent=1 // loop_body
      %s13 = ssub.s32 %s8, 1
      %s14 = ssub.s32 %s8, 2
      %s15 = sadd.s32 %s8, 1
      %s17 = sadd.s32 %s16, 1
      %p20 = scmp.eq.s32.totalorder %s8, 1
      %p21 = scmp.ne.s32.totalorder %s16, %s18
      %p22 = scmp.eq.s32.totalorder %s8, 0
      %p23 = por %p21, %p22
      %p24 = scmp.ne.s32.totalorder %s16, %s18
      %p25 = scmp.eq.s32.totalorder %s13, 1
      %p26 = por %p24, %p25
      %p27 = scmp.ne.s32.totalorder %s18, %s19
      %p28 = scmp.eq.s32.totalorder %s13, 0
      %p29 = por %p27, %p28
      %p30 = scmp.ne.s32.totalorder %s18, %s19
      %p31 = scmp.eq.s32.totalorder %s14, 1
      %p32 = por %p30, %p31
      %p34 = scmp.ne.s32.totalorder %s19, %s33
      %p35 = scmp.eq.s32.totalorder %s14, 0
      %p36 = por %p34, %p35
      %s37 = ssub.s32 %s8, %s15
      %p38 = scmp.eq.s32.totalorder %s37, 0
      %s40 = sadd.s32 %s39, 1
      %s41 = scalar_select %p38, %s39, %s40
      %p44 = pneg %p38
      %p45 = scmp.eq.s32.totalorder %s8, 1
      %p46 = por %p44, %p45
      %p47 = scmp.ne.s32.totalorder %s39, %s42
      %p48 = scmp.eq.s32.totalorder %s8, 0
      %p49 = por %p47, %p48
      %p50 = scmp.ne.s32.totalorder %s39, %s42
      %p51 = scmp.eq.s32.totalorder %s13, 1
      %p52 = por %p50, %p51
      %p53 = scmp.ne.s32.totalorder %s42, %s43
      %p54 = scmp.eq.s32.totalorder %s13, 0
      %p55 = por %p53, %p54
      %p56 = scmp.ne.s32.totalorder %s42, %s43
      %p57 = scmp.eq.s32.totalorder %s14, 1
      %p58 = por %p56, %p57
      %p60 = scmp.ne.s32.totalorder %s43, %s59
      %p61 = scmp.eq.s32.totalorder %s14, 0
      %p62 = por %p60, %p61
      %s63 = ssub.s32 %s8, %s15
      %p64 = scmp.eq.s32.totalorder %s63, 0
      %s66 = sadd.s32 %s65, 1
      %s67 = scalar_select %p64, %s65, %s66
      %p70 = pneg %p64
      %p71 = scmp.eq.s32.totalorder %s8, 1
      %p72 = por %p70, %p71
      %p73 = scmp.ne.s32.totalorder %s65, %s68
      %p74 = scmp.eq.s32.totalorder %s8, 0
      %p75 = por %p73, %p74
      %p76 = scmp.ne.s32.totalorder %s65, %s68
      %p77 = scmp.eq.s32.totalorder %s13, 1
      %p78 = por %p76, %p77
      %p79 = scmp.ne.s32.totalorder %s68, %s69
      %p80 = scmp.eq.s32.totalorder %s13, 0
      %p81 = por %p79, %p80
      %p82 = scmp.ne.s32.totalorder %s68, %s69
      %p83 = scmp.eq.s32.totalorder %s14, 1
      %p84 = por %p82, %p83
      %p86 = scmp.ne.s32.totalorder %s69, %s85
      %p87 = scmp.eq.s32.totalorder %s14, 0
      %p88 = por %p86, %p87
      %p89 = scmp.le.s32.totalorder 1, %s8
      %p90 = scmp.lt.s32.totalorder %s8, 3
      %p91 = pnand %p89, %p90
      %p92 = pneg %p91
      // Predicated region
      $region9: #{generator_sec_forward.5} parent=5 // pred_check
        _
      $region10: #{generator_sec_forward.5} parent=5 // pred_check_branch
        %94 = sbr.rel (%p91) target = $region12
      $region11: #{generator_sec_forward.5} parent=5 // pred_region
        %s95 = ssub.s32 %s8, 1
        // Predicated region
        $region13: #{generator_sec_forward.5} parent=11 // pred_check
          %p96 = pneg %p29
        $region14: #{generator_sec_forward.5} parent=11 // pred_check_branch
          %98 = sbr.rel (%p96) target = $region16
        $region15: #{generator_sec_forward.5} parent=11 // pred_region
          _
        $region16: #{generator_sec_forward.5} parent=11 // pred_fallthru
          _
      $region12: #{generator_sec_forward.5} parent=5 // pred_fallthru
        _
      %p99 = scmp.lt.s32.totalorder %s8, 2
      // Predicated region
      $region17: #{generator_sec_forward.5} parent=5 // pred_check
        %p100 = pneg %p99
      $region18: #{generator_sec_forward.5} parent=5 // pred_check_branch
        %102 = sbr.rel (%p100) target = $region20
      $region19: #{generator_sec_forward.5} parent=5 // pred_region
        // Predicated region
        $region21: #{generator_sec_forward.5} parent=19 // pred_check
          %p103 = pneg %p49
        $region22: #{generator_sec_forward.5} parent=19 // pred_check_branch
          %105 = sbr.rel (%p103) target = $region24
        $region23: #{generator_sec_forward.5} parent=19 // pred_region
          %s106 = sand.u32 %s39, 1
          %s107 = sand.u32 %s39, 1
          %s108 = smul.addr %s107, 832
          %s109 = scalar_lea.vmem [#allocation2], %s108
          %s110 = smul.u32 16, %s8
          %s111 = smul.addr %s110, 4
          %s112 = scalar_lea.vmem %s1, %s111
          // Predicated region
          $region25: #{generator_sec_forward.5} parent=23 // pred_check
            _
          $region26: #{generator_sec_forward.5} parent=23 // pred_check_branch
            %114 = sbr.rel (0) target = $region28
          $region27: #{generator_sec_forward.5} parent=23 // pred_region
            // Predicated region
            $region29: #{generator_sec_forward.5} parent=27 // pred_check
              _
            $region30: #{generator_sec_forward.5} parent=27 // pred_check_branch
              %116 = sbr.rel (0) target = $region32
            $region31: #{generator_sec_forward.5} parent=27 // pred_region
              loop: start=0, step=1, limit=1
              $region33: #{generator_sec_forward.5} parent=31 // loop_pre_header
                _
              $region34: #{generator_sec_forward.5} parent=31 // loop_header
                %s118 = sphi 0, %s122
                %p119 = scmp.ge.s32.totalorder %s118, 1
                %s123 = sphi %s112, %s112
                %s124 = sphi %s109, %s109
              $region35: #{generator_sec_forward.5} parent=31 // loop_header_branch
                %121 = sbr.rel (%p119) target = $region39
              $region36: #{generator_sec_forward.5} parent=31 // loop_body
                %v125 = vld [vmem:[%s123] sm:$0xff]
                %126 = vst [vmem:[%s124] sm:$0xff] %v125
                %v127 = vld [vmem:[%s123 + $0x8] sm:$0xff]
                %128 = vst [vmem:[%s124 + $0x8] sm:$0xff] %v127
                %v129 = vld [vmem:[%s123 + $0x10] sm:$0xff]
                %130 = vst [vmem:[%s124 + $0x10] sm:$0xff] %v129
                %v131 = vld [vmem:[%s123 + $0x18] sm:$0xff]
                %132 = vst [vmem:[%s124 + $0x18] sm:$0xff] %v131
                %v133 = vld [vmem:[%s123 + $0x20] sm:$0xff]
                %134 = vst [vmem:[%s124 + $0x20] sm:$0xff] %v133
                %v135 = vld [vmem:[%s123 + $0x28] sm:$0xff]
                %136 = vst [vmem:[%s124 + $0x28] sm:$0xff] %v135
                %v137 = vld [vmem:[%s123 + $0x30] sm:$0xff]
                %138 = vst [vmem:[%s124 + $0x30] sm:$0xff] %v137
                %v139 = vld [vmem:[%s123 + $0x38] sm:$0xff]
                %140 = vst [vmem:[%s124 + $0x38] sm:$0xff] %v139
                %v141 = vld [vmem:[%s123 + $0x80] sm:$0xff]
                %142 = vst [vmem:[%s124 + $0x40] sm:$0xff] %v141
                %v143 = vld [vmem:[%s123 + $0x88] sm:$0xff]
                %144 = vst [vmem:[%s124 + $0x48] sm:$0xff] %v143
                %v145 = vld [vmem:[%s123 + $0x90] sm:$0xff]
                %146 = vst [vmem:[%s124 + $0x50] sm:$0xff] %v145
                %v147 = vld [vmem:[%s123 + $0x98] sm:$0xff]
                %148 = vst [vmem:[%s124 + $0x58] sm:$0xff] %v147
                %v149 = vld [vmem:[%s123 + $0xa0] sm:$0xff]
                %150 = vst [vmem:[%s124 + $0x60] sm:$0xff] %v149
                %v151 = vld [vmem:[%s123 + $0xa8] sm:$0xff]
                %152 = vst [vmem:[%s124 + $0x68] sm:$0xff] %v151
                %v153 = vld [vmem:[%s123 + $0xb0] sm:$0xff]
                %154 = vst [vmem:[%s124 + $0x70] sm:$0xff] %v153
                %v155 = vld [vmem:[%s123 + $0xb8] sm:$0xff]
                %156 = vst [vmem:[%s124 + $0x78] sm:$0xff] %v155
                %v157 = vld [vmem:[%s123 + $0x100] sm:$0xff]
                %158 = vst [vmem:[%s124 + $0x80] sm:$0xff] %v157
                %v159 = vld [vmem:[%s123 + $0x108] sm:$0xff]
                %160 = vst [vmem:[%s124 + $0x88] sm:$0xff] %v159
                %v161 = vld [vmem:[%s123 + $0x110] sm:$0xff]
                %162 = vst [vmem:[%s124 + $0x90] sm:$0xff] %v161
                %v163 = vld [vmem:[%s123 + $0x118] sm:$0xff]
                %164 = vst [vmem:[%s124 + $0x98] sm:$0xff] %v163
                %v165 = vld [vmem:[%s123 + $0x120] sm:$0xff]
                %166 = vst [vmem:[%s124 + $0xa0] sm:$0xff] %v165
                %v167 = vld [vmem:[%s123 + $0x128] sm:$0xff]
                %168 = vst [vmem:[%s124 + $0xa8] sm:$0xff] %v167
                %v169 = vld [vmem:[%s123 + $0x130] sm:$0xff]
                %170 = vst [vmem:[%s124 + $0xb0] sm:$0xff] %v169
                %v171 = vld [vmem:[%s123 + $0x138] sm:$0xff]
                %172 = vst [vmem:[%s124 + $0xb8] sm:$0xff] %v171
                %v173 = vld [vmem:[%s123 + $0x180] sm:$0xff]
                %174 = vst [vmem:[%s124 + $0xc0] sm:$0xff] %v173
                %v175 = vld [vmem:[%s123 + $0x188] sm:$0xff]
                %176 = vst [vmem:[%s124 + $0xc8] sm:$0xff] %v175
                %v177 = vld [vmem:[%s123 + $0x190] sm:$0xff]
                %178 = vst [vmem:[%s124 + $0xd0] sm:$0xff] %v177
                %v179 = vld [vmem:[%s123 + $0x198] sm:$0xff]
                %180 = vst [vmem:[%s124 + $0xd8] sm:$0xff] %v179
                %v181 = vld [vmem:[%s123 + $0x1a0] sm:$0xff]
                %182 = vst [vmem:[%s124 + $0xe0] sm:$0xff] %v181
                %v183 = vld [vmem:[%s123 + $0x1a8] sm:$0xff]
                %184 = vst [vmem:[%s124 + $0xe8] sm:$0xff] %v183
                %v185 = vld [vmem:[%s123 + $0x1b0] sm:$0xff]
                %186 = vst [vmem:[%s124 + $0xf0] sm:$0xff] %v185
                %v187 = vld [vmem:[%s123 + $0x1b8] sm:$0xff]
                %188 = vst [vmem:[%s124 + $0xf8] sm:$0xff] %v187
                %v189 = vld [vmem:[%s123 + $0x200] sm:$0xff]
                %190 = vst [vmem:[%s124 + $0x100] sm:$0xff] %v189
                %v191 = vld [vmem:[%s123 + $0x208] sm:$0xff]
                %192 = vst [vmem:[%s124 + $0x108] sm:$0xff] %v191
                %v193 = vld [vmem:[%s123 + $0x210] sm:$0xff]
                %194 = vst [vmem:[%s124 + $0x110] sm:$0xff] %v193
                %v195 = vld [vmem:[%s123 + $0x218] sm:$0xff]
                %196 = vst [vmem:[%s124 + $0x118] sm:$0xff] %v195
                %v197 = vld [vmem:[%s123 + $0x220] sm:$0xff]
                %198 = vst [vmem:[%s124 + $0x120] sm:$0xff] %v197
                %v199 = vld [vmem:[%s123 + $0x228] sm:$0xff]
                %200 = vst [vmem:[%s124 + $0x128] sm:$0xff] %v199
                %v201 = vld [vmem:[%s123 + $0x230] sm:$0xff]
                %202 = vst [vmem:[%s124 + $0x130] sm:$0xff] %v201
                %v203 = vld [vmem:[%s123 + $0x238] sm:$0xff]
                %204 = vst [vmem:[%s124 + $0x138] sm:$0xff] %v203
                %v205 = vld [vmem:[%s123 + $0x280] sm:$0xff]
                %206 = vst [vmem:[%s124 + $0x140] sm:$0xff] %v205
                %v207 = vld [vmem:[%s123 + $0x288] sm:$0xff]
                %208 = vst [vmem:[%s124 + $0x148] sm:$0xff] %v207
                %v209 = vld [vmem:[%s123 + $0x290] sm:$0xff]
                %210 = vst [vmem:[%s124 + $0x150] sm:$0xff] %v209
                %v211 = vld [vmem:[%s123 + $0x298] sm:$0xff]
                %212 = vst [vmem:[%s124 + $0x158] sm:$0xff] %v211
                %v213 = vld [vmem:[%s123 + $0x2a0] sm:$0xff]
                %214 = vst [vmem:[%s124 + $0x160] sm:$0xff] %v213
                %v215 = vld [vmem:[%s123 + $0x2a8] sm:$0xff]
                %216 = vst [vmem:[%s124 + $0x168] sm:$0xff] %v215
                %v217 = vld [vmem:[%s123 + $0x2b0] sm:$0xff]
                %218 = vst [vmem:[%s124 + $0x170] sm:$0xff] %v217
                %v219 = vld [vmem:[%s123 + $0x2b8] sm:$0xff]
                %220 = vst [vmem:[%s124 + $0x178] sm:$0xff] %v219
                %v221 = vld [vmem:[%s123 + $0x300] sm:$0xff]
                %222 = vst [vmem:[%s124 + $0x180] sm:$0xff] %v221
                %v223 = vld [vmem:[%s123 + $0x308] sm:$0xff]
                %224 = vst [vmem:[%s124 + $0x188] sm:$0xff] %v223
                %v225 = vld [vmem:[%s123 + $0x310] sm:$0xff]
                %226 = vst [vmem:[%s124 + $0x190] sm:$0xff] %v225
                %v227 = vld [vmem:[%s123 + $0x318] sm:$0xff]
                %228 = vst [vmem:[%s124 + $0x198] sm:$0xff] %v227
                %v229 = vld [vmem:[%s123 + $0x320] sm:$0xff]
                %230 = vst [vmem:[%s124 + $0x1a0] sm:$0xff] %v229
                %v231 = vld [vmem:[%s123 + $0x328] sm:$0xff]
                %232 = vst [vmem:[%s124 + $0x1a8] sm:$0xff] %v231
                %v233 = vld [vmem:[%s123 + $0x330] sm:$0xff]
                %234 = vst [vmem:[%s124 + $0x1b0] sm:$0xff] %v233
                %v235 = vld [vmem:[%s123 + $0x338] sm:$0xff]
                %236 = vst [vmem:[%s124 + $0x1b8] sm:$0xff] %v235
                %v237 = vld [vmem:[%s123 + $0x380] sm:$0xff]
                %238 = vst [vmem:[%s124 + $0x1c0] sm:$0xff] %v237
                %v239 = vld [vmem:[%s123 + $0x388] sm:$0xff]
                %240 = vst [vmem:[%s124 + $0x1c8] sm:$0xff] %v239
                %v241 = vld [vmem:[%s123 + $0x390] sm:$0xff]
                %242 = vst [vmem:[%s124 + $0x1d0] sm:$0xff] %v241
                %v243 = vld [vmem:[%s123 + $0x398] sm:$0xff]
                %244 = vst [vmem:[%s124 + $0x1d8] sm:$0xff] %v243
                %v245 = vld [vmem:[%s123 + $0x3a0] sm:$0xff]
                %246 = vst [vmem:[%s124 + $0x1e0] sm:$0xff] %v245
                %v247 = vld [vmem:[%s123 + $0x3a8] sm:$0xff]
                %248 = vst [vmem:[%s124 + $0x1e8] sm:$0xff] %v247
                %v249 = vld [vmem:[%s123 + $0x3b0] sm:$0xff]
                %250 = vst [vmem:[%s124 + $0x1f0] sm:$0xff] %v249
                %v251 = vld [vmem:[%s123 + $0x3b8] sm:$0xff]
                %252 = vst [vmem:[%s124 + $0x1f8] sm:$0xff] %v251
                %v253 = vld [vmem:[%s123 + $0x400] sm:$0xff]
                %254 = vst [vmem:[%s124 + $0x200] sm:$0xff] %v253
                %v255 = vld [vmem:[%s123 + $0x408] sm:$0xff]
                %256 = vst [vmem:[%s124 + $0x208] sm:$0xff] %v255
                %v257 = vld [vmem:[%s123 + $0x410] sm:$0xff]
                %258 = vst [vmem:[%s124 + $0x210] sm:$0xff] %v257
                %v259 = vld [vmem:[%s123 + $0x418] sm:$0xff]
                %260 = vst [vmem:[%s124 + $0x218] sm:$0xff] %v259
                %v261 = vld [vmem:[%s123 + $0x420] sm:$0xff]
                %262 = vst [vmem:[%s124 + $0x220] sm:$0xff] %v261
                %v263 = vld [vmem:[%s123 + $0x428] sm:$0xff]
                %264 = vst [vmem:[%s124 + $0x228] sm:$0xff] %v263
                %v265 = vld [vmem:[%s123 + $0x430] sm:$0xff]
                %266 = vst [vmem:[%s124 + $0x230] sm:$0xff] %v265
                %v267 = vld [vmem:[%s123 + $0x438] sm:$0xff]
                %268 = vst [vmem:[%s124 + $0x238] sm:$0xff] %v267
                %v269 = vld [vmem:[%s123 + $0x480] sm:$0xff]
                %270 = vst [vmem:[%s124 + $0x240] sm:$0xff] %v269
                %v271 = vld [vmem:[%s123 + $0x488] sm:$0xff]
                %272 = vst [vmem:[%s124 + $0x248] sm:$0xff] %v271
                %v273 = vld [vmem:[%s123 + $0x490] sm:$0xff]
                %274 = vst [vmem:[%s124 + $0x250] sm:$0xff] %v273
                %v275 = vld [vmem:[%s123 + $0x498] sm:$0xff]
                %276 = vst [vmem:[%s124 + $0x258] sm:$0xff] %v275
                %v277 = vld [vmem:[%s123 + $0x4a0] sm:$0xff]
                %278 = vst [vmem:[%s124 + $0x260] sm:$0xff] %v277
                %v279 = vld [vmem:[%s123 + $0x4a8] sm:$0xff]
                %280 = vst [vmem:[%s124 + $0x268] sm:$0xff] %v279
                %v281 = vld [vmem:[%s123 + $0x4b0] sm:$0xff]
                %282 = vst [vmem:[%s124 + $0x270] sm:$0xff] %v281
                %v283 = vld [vmem:[%s123 + $0x4b8] sm:$0xff]
                %284 = vst [vmem:[%s124 + $0x278] sm:$0xff] %v283
                %v285 = vld [vmem:[%s123 + $0x500] sm:$0xff]
                %286 = vst [vmem:[%s124 + $0x280] sm:$0xff] %v285
                %v287 = vld [vmem:[%s123 + $0x508] sm:$0xff]
                %288 = vst [vmem:[%s124 + $0x288] sm:$0xff] %v287
                %v289 = vld [vmem:[%s123 + $0x510] sm:$0xff]
                %290 = vst [vmem:[%s124 + $0x290] sm:$0xff] %v289
                %v291 = vld [vmem:[%s123 + $0x518] sm:$0xff]
                %292 = vst [vmem:[%s124 + $0x298] sm:$0xff] %v291
                %v293 = vld [vmem:[%s123 + $0x520] sm:$0xff]
                %294 = vst [vmem:[%s124 + $0x2a0] sm:$0xff] %v293
                %v295 = vld [vmem:[%s123 + $0x528] sm:$0xff]
                %296 = vst [vmem:[%s124 + $0x2a8] sm:$0xff] %v295
                %v297 = vld [vmem:[%s123 + $0x530] sm:$0xff]
                %298 = vst [vmem:[%s124 + $0x2b0] sm:$0xff] %v297
                %v299 = vld [vmem:[%s123 + $0x538] sm:$0xff]
                %300 = vst [vmem:[%s124 + $0x2b8] sm:$0xff] %v299
                %v301 = vld [vmem:[%s123 + $0x580] sm:$0xff]
                %302 = vst [vmem:[%s124 + $0x2c0] sm:$0xff] %v301
                %v303 = vld [vmem:[%s123 + $0x588] sm:$0xff]
                %304 = vst [vmem:[%s124 + $0x2c8] sm:$0xff] %v303
                %v305 = vld [vmem:[%s123 + $0x590] sm:$0xff]
                %306 = vst [vmem:[%s124 + $0x2d0] sm:$0xff] %v305
                %v307 = vld [vmem:[%s123 + $0x598] sm:$0xff]
                %308 = vst [vmem:[%s124 + $0x2d8] sm:$0xff] %v307
                %v309 = vld [vmem:[%s123 + $0x5a0] sm:$0xff]
                %310 = vst [vmem:[%s124 + $0x2e0] sm:$0xff] %v309
                %v311 = vld [vmem:[%s123 + $0x5a8] sm:$0xff]
                %312 = vst [vmem:[%s124 + $0x2e8] sm:$0xff] %v311
                %v313 = vld [vmem:[%s123 + $0x5b0] sm:$0xff]
                %314 = vst [vmem:[%s124 + $0x2f0] sm:$0xff] %v313
                %v315 = vld [vmem:[%s123 + $0x5b8] sm:$0xff]
                %316 = vst [vmem:[%s124 + $0x2f8] sm:$0xff] %v315
                %v317 = vld [vmem:[%s123 + $0x600] sm:$0xff]
                %318 = vst [vmem:[%s124 + $0x300] sm:$0xff] %v317
                %v319 = vld [vmem:[%s123 + $0x608] sm:$0xff]
                %320 = vst [vmem:[%s124 + $0x308] sm:$0xff] %v319
                %v321 = vld [vmem:[%s123 + $0x610] sm:$0xff]
                %322 = vst [vmem:[%s124 + $0x310] sm:$0xff] %v321
                %v323 = vld [vmem:[%s123 + $0x618] sm:$0xff]
                %324 = vst [vmem:[%s124 + $0x318] sm:$0xff] %v323
                %v325 = vld [vmem:[%s123 + $0x620] sm:$0xff]
                %326 = vst [vmem:[%s124 + $0x320] sm:$0xff] %v325
                %v327 = vld [vmem:[%s123 + $0x628] sm:$0xff]
                %328 = vst [vmem:[%s124 + $0x328] sm:$0xff] %v327
                %v329 = vld [vmem:[%s123 + $0x630] sm:$0xff]
                %330 = vst [vmem:[%s124 + $0x330] sm:$0xff] %v329
                %v331 = vld [vmem:[%s123 + $0x638] sm:$0xff]
                %332 = vst [vmem:[%s124 + $0x338] sm:$0xff] %v331
              $region37: #{generator_sec_forward.5} parent=31 // loop_footer
                %s122 = sadd.s32 1, %s118
              $region38: #{generator_sec_forward.5} parent=31 // loop_footer_branch
                %117 = sbr.rel target = $region34
              $region39: #{generator_sec_forward.5} parent=31 // loop_exit
                _
            $region32: #{generator_sec_forward.5} parent=27 // pred_fallthru
              _
            // Predicated region
            $region40: #{generator_sec_forward.5} parent=27 // pred_check
              _
            $region41: #{generator_sec_forward.5} parent=27 // pred_check_branch
              %334 = sbr.rel target = $region43
            $region42: #{generator_sec_forward.5} parent=27 // pred_region
              _
            $region43: #{generator_sec_forward.5} parent=27 // pred_fallthru
              _
          $region28: #{generator_sec_forward.5} parent=23 // pred_fallthru
            _
          %335 = vnop
        $region24: #{generator_sec_forward.5} parent=19 // pred_fallthru
          _
      $region20: #{generator_sec_forward.5} parent=5 // pred_fallthru
        _
      %p336 = scmp.le.s32.totalorder 1, %s8
      %p337 = scmp.lt.s32.totalorder %s8, 3
      %p338 = pnand %p336, %p337
      %p339 = pneg %p338
      // Predicated region
      $region44: #{generator_sec_forward.5} parent=5 // pred_check
        _
      $region45: #{generator_sec_forward.5} parent=5 // pred_check_branch
        %341 = sbr.rel (%p338) target = $region47
      $region46: #{generator_sec_forward.5} parent=5 // pred_region
        %s342 = ssub.s32 %s8, 1
        %s343 = sand.u32 %s42, 1
        %s344 = sand.u32 %s42, 1
        %s345 = smul.addr %s344, 832
        %s346 = scalar_lea.vmem [#allocation2], %s345
        // Predicated region
        $region48: #{generator_sec_forward.5} parent=46 // pred_check
          %p347 = pneg %p55
        $region49: #{generator_sec_forward.5} parent=46 // pred_check_branch
          %349 = sbr.rel (%p347) target = $region51
        $region50: #{generator_sec_forward.5} parent=46 // pred_region
          _
        $region51: #{generator_sec_forward.5} parent=46 // pred_fallthru
          _
        %p350 = pneg %p29
        %p351 = pneg %p26
        %s352 = sand.u32 %s42, 1
        %s353 = sand.u32 %s42, 1
        %s354 = smul.addr %s353, 832
        %s355 = scalar_lea.vmem [#allocation2], %s354
        %p356 = pneg %p55
        %p357 = pneg %p52
        %p358 = pneg %p81
        %p359 = pneg %p78
        %s360 = smul.u32 16, %s13
        %p361 = scmp.lt.s32.totalorder %s360, 31
        %s362 = scalar_select %p361, %s360, 31
        %s363 = smul.addr %s362, 2
        %s364 = scalar_lea.vmem %s2, %s363
        %s365 = smul.u32 16, %s13
        %s366 = smul.u32 16, %s13
        %p367 = scmp.lt.s32.totalorder %s366, 31
        %s368 = scalar_select %p367, %s366, 31
        %s369 = smul.addr %s368, 2
        %s370 = scalar_lea.vmem %s2, %s369
        %s371 = smul.u32 16, %s13
        %v373 = vld [vmem:[%s0] sm:$0x1]
        %v374 = vld [vmem:[%s346] sm:$0xff]
        %v375 = vld [vmem:[%s346 + $0x8] sm:$0xff]
        %v376 = vld [vmem:[%s346 + $0x10] sm:$0xff]
        %v377 = vld [vmem:[%s346 + $0x18] sm:$0xff]
        %v378 = vld [vmem:[%s346 + $0x20] sm:$0xff]
        %v379 = vld [vmem:[%s346 + $0x28] sm:$0xff]
        %v380 = vld [vmem:[%s346 + $0x30] sm:$0xff]
        %v381 = vld [vmem:[%s346 + $0x38] sm:$0xff]
        %v382 = vld [vmem:[%s346 + $0x40] sm:$0xff]
        %v383 = vld [vmem:[%s346 + $0x48] sm:$0xff]
        %v384 = vld [vmem:[%s346 + $0x50] sm:$0xff]
        %v385 = vld [vmem:[%s346 + $0x58] sm:$0xff]
        %v386 = vld [vmem:[%s346 + $0x60] sm:$0xff]
        %v387 = vld [vmem:[%s346 + $0x68] sm:$0xff]
        %v388 = vld [vmem:[%s346 + $0x70] sm:$0xff]
        %v389 = vld [vmem:[%s346 + $0x78] sm:$0xff]
        %v390 = vld [vmem:[%s346 + $0x80] sm:$0xff]
        %v391 = vld [vmem:[%s346 + $0x88] sm:$0xff]
        %v392 = vld [vmem:[%s346 + $0x90] sm:$0xff]
        %v393 = vld [vmem:[%s346 + $0x98] sm:$0xff]
        %v394 = vld [vmem:[%s346 + $0xa0] sm:$0xff]
        %v395 = vld [vmem:[%s346 + $0xa8] sm:$0xff]
        %v396 = vld [vmem:[%s346 + $0xb0] sm:$0xff]
        %v397 = vld [vmem:[%s346 + $0xb8] sm:$0xff]
        %v398 = vld [vmem:[%s346 + $0xc0] sm:$0xff]
        %v399 = vld [vmem:[%s346 + $0xc8] sm:$0xff]
        %v400 = vld [vmem:[%s346 + $0xd0] sm:$0xff]
        %v401 = vld [vmem:[%s346 + $0xd8] sm:$0xff]
        %v402 = vld [vmem:[%s346 + $0xe0] sm:$0xff]
        %v403 = vld [vmem:[%s346 + $0xe8] sm:$0xff]
        %v404 = vld [vmem:[%s346 + $0xf0] sm:$0xff]
        %v405 = vld [vmem:[%s346 + $0xf8] sm:$0xff]
        %v406 = vld [vmem:[%s346 + $0x100] sm:$0xff]
        %v407 = vld [vmem:[%s346 + $0x108] sm:$0xff]
        %v408 = vld [vmem:[%s346 + $0x110] sm:$0xff]
        %v409 = vld [vmem:[%s346 + $0x118] sm:$0xff]
        %v410 = vld [vmem:[%s346 + $0x120] sm:$0xff]
        %v411 = vld [vmem:[%s346 + $0x128] sm:$0xff]
        %v412 = vld [vmem:[%s346 + $0x130] sm:$0xff]
        %v413 = vld [vmem:[%s346 + $0x138] sm:$0xff]
        %v414 = vld [vmem:[%s346 + $0x140] sm:$0xff]
        %v415 = vld [vmem:[%s346 + $0x148] sm:$0xff]
        %v416 = vld [vmem:[%s346 + $0x150] sm:$0xff]
        %v417 = vld [vmem:[%s346 + $0x158] sm:$0xff]
        %v418 = vld [vmem:[%s346 + $0x160] sm:$0xff]
        %v419 = vld [vmem:[%s346 + $0x168] sm:$0xff]
        %v420 = vld [vmem:[%s346 + $0x170] sm:$0xff]
        %v421 = vld [vmem:[%s346 + $0x178] sm:$0xff]
        %v422 = vld [vmem:[%s346 + $0x180] sm:$0xff]
        %v423 = vld [vmem:[%s346 + $0x188] sm:$0xff]
        %v424 = vld [vmem:[%s346 + $0x190] sm:$0xff]
        %v425 = vld [vmem:[%s346 + $0x198] sm:$0xff]
        %v426 = vld [vmem:[%s346 + $0x1a0] sm:$0xff]
        %v427 = vld [vmem:[%s346 + $0x1a8] sm:$0xff]
        %v428 = vld [vmem:[%s346 + $0x1b0] sm:$0xff]
        %v429 = vld [vmem:[%s346 + $0x1b8] sm:$0xff]
        %v430 = vld [vmem:[%s346 + $0x1c0] sm:$0xff]
        %v431 = vld [vmem:[%s346 + $0x1c8] sm:$0xff]
        %v432 = vld [vmem:[%s346 + $0x1d0] sm:$0xff]
        %v433 = vld [vmem:[%s346 + $0x1d8] sm:$0xff]
        %v434 = vld [vmem:[%s346 + $0x1e0] sm:$0xff]
        %v435 = vld [vmem:[%s346 + $0x1e8] sm:$0xff]
        %v436 = vld [vmem:[%s346 + $0x1f0] sm:$0xff]
        %v437 = vld [vmem:[%s346 + $0x1f8] sm:$0xff]
        %v438 = vld [vmem:[%s346 + $0x200] sm:$0xff]
        %v439 = vld [vmem:[%s346 + $0x208] sm:$0xff]
        %v440 = vld [vmem:[%s346 + $0x210] sm:$0xff]
        %v441 = vld [vmem:[%s346 + $0x218] sm:$0xff]
        %v442 = vld [vmem:[%s346 + $0x220] sm:$0xff]
        %v443 = vld [vmem:[%s346 + $0x228] sm:$0xff]
        %v444 = vld [vmem:[%s346 + $0x230] sm:$0xff]
        %v445 = vld [vmem:[%s346 + $0x238] sm:$0xff]
        %v446 = vld [vmem:[%s346 + $0x240] sm:$0xff]
        %v447 = vld [vmem:[%s346 + $0x248] sm:$0xff]
        %v448 = vld [vmem:[%s346 + $0x250] sm:$0xff]
        %v449 = vld [vmem:[%s346 + $0x258] sm:$0xff]
        %v450 = vld [vmem:[%s346 + $0x260] sm:$0xff]
        %v451 = vld [vmem:[%s346 + $0x268] sm:$0xff]
        %v452 = vld [vmem:[%s346 + $0x270] sm:$0xff]
        %v453 = vld [vmem:[%s346 + $0x278] sm:$0xff]
        %v454 = vld [vmem:[%s346 + $0x280] sm:$0xff]
        %v455 = vld [vmem:[%s346 + $0x288] sm:$0xff]
        %v456 = vld [vmem:[%s346 + $0x290] sm:$0xff]
        %v457 = vld [vmem:[%s346 + $0x298] sm:$0xff]
        %v458 = vld [vmem:[%s346 + $0x2a0] sm:$0xff]
        %v459 = vld [vmem:[%s346 + $0x2a8] sm:$0xff]
        %v460 = vld [vmem:[%s346 + $0x2b0] sm:$0xff]
        %v461 = vld [vmem:[%s346 + $0x2b8] sm:$0xff]
        %v462 = vld [vmem:[%s346 + $0x2c0] sm:$0xff]
        %v463 = vld [vmem:[%s346 + $0x2c8] sm:$0xff]
        %v464 = vld [vmem:[%s346 + $0x2d0] sm:$0xff]
        %v465 = vld [vmem:[%s346 + $0x2d8] sm:$0xff]
        %v466 = vld [vmem:[%s346 + $0x2e0] sm:$0xff]
        %v467 = vld [vmem:[%s346 + $0x2e8] sm:$0xff]
        %v468 = vld [vmem:[%s346 + $0x2f0] sm:$0xff]
        %v469 = vld [vmem:[%s346 + $0x2f8] sm:$0xff]
        %v470 = vld [vmem:[%s346 + $0x300] sm:$0x33]
        %v471 = vld [vmem:[%s346 + $0x308] sm:$0x33]
        %v472 = vld [vmem:[%s346 + $0x310] sm:$0x33]
        %v473 = vld [vmem:[%s346 + $0x318] sm:$0x33]
        %v474 = vld [vmem:[%s346 + $0x320] sm:$0x33]
        %v475 = vld [vmem:[%s346 + $0x328] sm:$0x33]
        %v476 = vld [vmem:[%s346 + $0x330] sm:$0x33]
        %v477 = vld [vmem:[%s346 + $0x338] sm:$0x33]
        %v582 = vunpack.c.l.b16 %v374
        %v583 = vunpack.c.h.b16 %v374
        %v584 = vunpack.c.l.b16 %v375
        %v585 = vunpack.c.h.b16 %v375
        %v586 = vunpack.c.l.b16 %v376
        %v587 = vunpack.c.h.b16 %v376
        %v588 = vunpack.c.l.b16 %v377
        %v589 = vunpack.c.h.b16 %v377
        %v590 = vunpack.c.l.b16 %v378
        %v591 = vunpack.c.h.b16 %v378
        %v592 = vunpack.c.l.b16 %v379
        %v593 = vunpack.c.h.b16 %v379
        %v594 = vunpack.c.l.b16 %v380
        %v595 = vunpack.c.h.b16 %v380
        %v596 = vunpack.c.l.b16 %v381
        %v597 = vunpack.c.h.b16 %v381
        %v598 = vunpack.c.l.b16 %v382
        %v599 = vunpack.c.h.b16 %v382
        %v600 = vunpack.c.l.b16 %v383
        %v601 = vunpack.c.h.b16 %v383
        %v602 = vunpack.c.l.b16 %v384
        %v603 = vunpack.c.h.b16 %v384
        %v604 = vunpack.c.l.b16 %v385
        %v605 = vunpack.c.h.b16 %v385
        %v606 = vunpack.c.l.b16 %v386
        %v607 = vunpack.c.h.b16 %v386
        %v608 = vunpack.c.l.b16 %v387
        %v609 = vunpack.c.h.b16 %v387
        %v610 = vunpack.c.l.b16 %v388
        %v611 = vunpack.c.h.b16 %v388
        %v612 = vunpack.c.l.b16 %v389
        %v613 = vunpack.c.h.b16 %v389
        %v614 = vunpack.c.l.b16 %v390
        %v615 = vunpack.c.h.b16 %v390
        %v616 = vunpack.c.l.b16 %v391
        %v617 = vunpack.c.h.b16 %v391
        %v618 = vunpack.c.l.b16 %v392
        %v619 = vunpack.c.h.b16 %v392
        %v620 = vunpack.c.l.b16 %v393
        %v621 = vunpack.c.h.b16 %v393
        %v622 = vunpack.c.l.b16 %v394
        %v623 = vunpack.c.h.b16 %v394
        %v624 = vunpack.c.l.b16 %v395
        %v625 = vunpack.c.h.b16 %v395
        %v626 = vunpack.c.l.b16 %v396
        %v627 = vunpack.c.h.b16 %v396
        %v628 = vunpack.c.l.b16 %v397
        %v629 = vunpack.c.h.b16 %v397
        %v630 = vunpack.c.l.b16 %v398
        %v631 = vunpack.c.h.b16 %v398
        %v632 = vunpack.c.l.b16 %v399
        %v633 = vunpack.c.h.b16 %v399
        %v634 = vunpack.c.l.b16 %v400
        %v635 = vunpack.c.h.b16 %v400
        %v636 = vunpack.c.l.b16 %v401
        %v637 = vunpack.c.h.b16 %v401
        %v638 = vunpack.c.l.b16 %v402
        %v639 = vunpack.c.h.b16 %v402
        %v640 = vunpack.c.l.b16 %v403
        %v641 = vunpack.c.h.b16 %v403
        %v642 = vunpack.c.l.b16 %v404
        %v643 = vunpack.c.h.b16 %v404
        %v644 = vunpack.c.l.b16 %v405
        %v645 = vunpack.c.h.b16 %v405
        %v646 = vunpack.c.l.b16 %v406
        %v647 = vunpack.c.h.b16 %v406
        %v648 = vunpack.c.l.b16 %v407
        %v649 = vunpack.c.h.b16 %v407
        %v650 = vunpack.c.l.b16 %v408
        %v651 = vunpack.c.h.b16 %v408
        %v652 = vunpack.c.l.b16 %v409
        %v653 = vunpack.c.h.b16 %v409
        %v654 = vunpack.c.l.b16 %v410
        %v655 = vunpack.c.h.b16 %v410
        %v656 = vunpack.c.l.b16 %v411
        %v657 = vunpack.c.h.b16 %v411
        %v658 = vunpack.c.l.b16 %v412
        %v659 = vunpack.c.h.b16 %v412
        %v660 = vunpack.c.l.b16 %v413
        %v661 = vunpack.c.h.b16 %v413
        %v662 = vunpack.c.l.b16 %v414
        %v663 = vunpack.c.h.b16 %v414
        %v664 = vunpack.c.l.b16 %v415
        %v665 = vunpack.c.h.b16 %v415
        %v666 = vunpack.c.l.b16 %v416
        %v667 = vunpack.c.h.b16 %v416
        %v668 = vunpack.c.l.b16 %v417
        %v669 = vunpack.c.h.b16 %v417
        %v670 = vunpack.c.l.b16 %v418
        %v671 = vunpack.c.h.b16 %v418
        %v672 = vunpack.c.l.b16 %v419
        %v673 = vunpack.c.h.b16 %v419
        %v674 = vunpack.c.l.b16 %v420
        %v675 = vunpack.c.h.b16 %v420
        %v676 = vunpack.c.l.b16 %v421
        %v677 = vunpack.c.h.b16 %v421
        %v678 = vunpack.c.l.b16 %v422
        %v679 = vunpack.c.h.b16 %v422
        %v680 = vunpack.c.l.b16 %v423
        %v681 = vunpack.c.h.b16 %v423
        %v682 = vunpack.c.l.b16 %v424
        %v683 = vunpack.c.h.b16 %v424
        %v684 = vunpack.c.l.b16 %v425
        %v685 = vunpack.c.h.b16 %v425
        %v686 = vunpack.c.l.b16 %v426
        %v687 = vunpack.c.h.b16 %v426
        %v688 = vunpack.c.l.b16 %v427
        %v689 = vunpack.c.h.b16 %v427
        %v690 = vunpack.c.l.b16 %v428
        %v691 = vunpack.c.h.b16 %v428
        %v692 = vunpack.c.l.b16 %v429
        %v693 = vunpack.c.h.b16 %v429
        %v694 = vunpack.c.l.b16 %v430
        %v695 = vunpack.c.h.b16 %v430
        %v696 = vunpack.c.l.b16 %v431
        %v697 = vunpack.c.h.b16 %v431
        %v698 = vunpack.c.l.b16 %v432
        %v699 = vunpack.c.h.b16 %v432
        %v700 = vunpack.c.l.b16 %v433
        %v701 = vunpack.c.h.b16 %v433
        %v702 = vunpack.c.l.b16 %v434
        %v703 = vunpack.c.h.b16 %v434
        %v704 = vunpack.c.l.b16 %v435
        %v705 = vunpack.c.h.b16 %v435
        %v706 = vunpack.c.l.b16 %v436
        %v707 = vunpack.c.h.b16 %v436
        %v708 = vunpack.c.l.b16 %v437
        %v709 = vunpack.c.h.b16 %v437
        %v710 = vunpack.c.l.b16 %v438
        %v711 = vunpack.c.h.b16 %v438
        %v712 = vunpack.c.l.b16 %v439
        %v713 = vunpack.c.h.b16 %v439
        %v714 = vunpack.c.l.b16 %v440
        %v715 = vunpack.c.h.b16 %v440
        %v716 = vunpack.c.l.b16 %v441
        %v717 = vunpack.c.h.b16 %v441
        %v718 = vunpack.c.l.b16 %v442
        %v719 = vunpack.c.h.b16 %v442
        %v720 = vunpack.c.l.b16 %v443
        %v721 = vunpack.c.h.b16 %v443
        %v722 = vunpack.c.l.b16 %v444
        %v723 = vunpack.c.h.b16 %v444
        %v724 = vunpack.c.l.b16 %v445
        %v725 = vunpack.c.h.b16 %v445
        %v726 = vunpack.c.l.b16 %v446
        %v727 = vunpack.c.h.b16 %v446
        %v728 = vunpack.c.l.b16 %v447
        %v729 = vunpack.c.h.b16 %v447
        %v730 = vunpack.c.l.b16 %v448
        %v731 = vunpack.c.h.b16 %v448
        %v732 = vunpack.c.l.b16 %v449
        %v733 = vunpack.c.h.b16 %v449
        %v734 = vunpack.c.l.b16 %v450
        %v735 = vunpack.c.h.b16 %v450
        %v736 = vunpack.c.l.b16 %v451
        %v737 = vunpack.c.h.b16 %v451
        %v738 = vunpack.c.l.b16 %v452
        %v739 = vunpack.c.h.b16 %v452
        %v740 = vunpack.c.l.b16 %v453
        %v741 = vunpack.c.h.b16 %v453
        %v742 = vunpack.c.l.b16 %v454
        %v743 = vunpack.c.h.b16 %v454
        %v744 = vunpack.c.l.b16 %v455
        %v745 = vunpack.c.h.b16 %v455
        %v746 = vunpack.c.l.b16 %v456
        %v747 = vunpack.c.h.b16 %v456
        %v748 = vunpack.c.l.b16 %v457
        %v749 = vunpack.c.h.b16 %v457
        %v750 = vunpack.c.l.b16 %v458
        %v751 = vunpack.c.h.b16 %v458
        %v752 = vunpack.c.l.b16 %v459
        %v753 = vunpack.c.h.b16 %v459
        %v754 = vunpack.c.l.b16 %v460
        %v755 = vunpack.c.h.b16 %v460
        %v756 = vunpack.c.l.b16 %v461
        %v757 = vunpack.c.h.b16 %v461
        %v758 = vunpack.c.l.b16 %v462
        %v759 = vunpack.c.h.b16 %v462
        %v760 = vunpack.c.l.b16 %v463
        %v761 = vunpack.c.h.b16 %v463
        %v762 = vunpack.c.l.b16 %v464
        %v763 = vunpack.c.h.b16 %v464
        %v764 = vunpack.c.l.b16 %v465
        %v765 = vunpack.c.h.b16 %v465
        %v766 = vunpack.c.l.b16 %v466
        %v767 = vunpack.c.h.b16 %v466
        %v768 = vunpack.c.l.b16 %v467
        %v769 = vunpack.c.h.b16 %v467
        %v770 = vunpack.c.l.b16 %v468
        %v771 = vunpack.c.h.b16 %v468
        %v772 = vunpack.c.l.b16 %v469
        %v773 = vunpack.c.h.b16 %v469
        %v774 = vunpack.c.l.b16 %v470
        %v775 = vunpack.c.h.b16 %v470
        %v776 = vunpack.c.l.b16 %v471
        %v777 = vunpack.c.h.b16 %v471
        %v778 = vunpack.c.l.b16 %v472
        %v779 = vunpack.c.h.b16 %v472
        %v780 = vunpack.c.l.b16 %v473
        %v781 = vunpack.c.h.b16 %v473
        %v782 = vunpack.c.l.b16 %v474
        %v783 = vunpack.c.h.b16 %v474
        %v784 = vunpack.c.l.b16 %v475
        %v785 = vunpack.c.h.b16 %v475
        %v786 = vunpack.c.l.b16 %v476
        %v787 = vunpack.c.h.b16 %v476
        %v788 = vunpack.c.l.b16 %v477
        %v789 = vunpack.c.h.b16 %v477
        %v790 = vpack.c.b16 %v598, %v582
        %v791 = vpack.c.b16 %v599, %v583
        %v792 = vpack.c.b16 %v600, %v584
        %v793 = vpack.c.b16 %v601, %v585
        %v794 = vpack.c.b16 %v602, %v586
        %v795 = vpack.c.b16 %v603, %v587
        %v796 = vpack.c.b16 %v604, %v588
        %v797 = vpack.c.b16 %v605, %v589
        %v798 = vpack.c.b16 %v606, %v590
        %v799 = vpack.c.b16 %v607, %v591
        %v800 = vpack.c.b16 %v608, %v592
        %v801 = vpack.c.b16 %v609, %v593
        %v802 = vpack.c.b16 %v610, %v594
        %v803 = vpack.c.b16 %v611, %v595
        %v804 = vpack.c.b16 %v612, %v596
        %v805 = vpack.c.b16 %v613, %v597
        %v806 = vpack.c.b16 %v630, %v614
        %v807 = vpack.c.b16 %v631, %v615
        %v808 = vpack.c.b16 %v632, %v616
        %v809 = vpack.c.b16 %v633, %v617
        %v810 = vpack.c.b16 %v634, %v618
        %v811 = vpack.c.b16 %v635, %v619
        %v812 = vpack.c.b16 %v636, %v620
        %v813 = vpack.c.b16 %v637, %v621
        %v814 = vpack.c.b16 %v638, %v622
        %v815 = vpack.c.b16 %v639, %v623
        %v816 = vpack.c.b16 %v640, %v624
        %v817 = vpack.c.b16 %v641, %v625
        %v818 = vpack.c.b16 %v642, %v626
        %v819 = vpack.c.b16 %v643, %v627
        %v820 = vpack.c.b16 %v644, %v628
        %v821 = vpack.c.b16 %v645, %v629
        %v822 = vpack.c.b16 %v662, %v646
        %v823 = vpack.c.b16 %v663, %v647
        %v824 = vpack.c.b16 %v664, %v648
        %v825 = vpack.c.b16 %v665, %v649
        %v826 = vpack.c.b16 %v666, %v650
        %v827 = vpack.c.b16 %v667, %v651
        %v828 = vpack.c.b16 %v668, %v652
        %v829 = vpack.c.b16 %v669, %v653
        %v830 = vpack.c.b16 %v670, %v654
        %v831 = vpack.c.b16 %v671, %v655
        %v832 = vpack.c.b16 %v672, %v656
        %v833 = vpack.c.b16 %v673, %v657
        %v834 = vpack.c.b16 %v674, %v658
        %v835 = vpack.c.b16 %v675, %v659
        %v836 = vpack.c.b16 %v676, %v660
        %v837 = vpack.c.b16 %v677, %v661
        %v838 = vpack.c.b16 %v694, %v678
        %v839 = vpack.c.b16 %v695, %v679
        %v840 = vpack.c.b16 %v696, %v680
        %v841 = vpack.c.b16 %v697, %v681
        %v842 = vpack.c.b16 %v698, %v682
        %v843 = vpack.c.b16 %v699, %v683
        %v844 = vpack.c.b16 %v700, %v684
        %v845 = vpack.c.b16 %v701, %v685
        %v846 = vpack.c.b16 %v702, %v686
        %v847 = vpack.c.b16 %v703, %v687
        %v848 = vpack.c.b16 %v704, %v688
        %v849 = vpack.c.b16 %v705, %v689
        %v850 = vpack.c.b16 %v706, %v690
        %v851 = vpack.c.b16 %v707, %v691
        %v852 = vpack.c.b16 %v708, %v692
        %v853 = vpack.c.b16 %v709, %v693
        %v854 = vpack.c.b16 %v726, %v710
        %v855 = vpack.c.b16 %v727, %v711
        %v856 = vpack.c.b16 %v728, %v712
        %v857 = vpack.c.b16 %v729, %v713
        %v858 = vpack.c.b16 %v730, %v714
        %v859 = vpack.c.b16 %v731, %v715
        %v860 = vpack.c.b16 %v732, %v716
        %v861 = vpack.c.b16 %v733, %v717
        %v862 = vpack.c.b16 %v734, %v718
        %v863 = vpack.c.b16 %v735, %v719
        %v864 = vpack.c.b16 %v736, %v720
        %v865 = vpack.c.b16 %v737, %v721
        %v866 = vpack.c.b16 %v738, %v722
        %v867 = vpack.c.b16 %v739, %v723
        %v868 = vpack.c.b16 %v740, %v724
        %v869 = vpack.c.b16 %v741, %v725
        %v870 = vpack.c.b16 %v758, %v742
        %v871 = vpack.c.b16 %v759, %v743
        %v872 = vpack.c.b16 %v760, %v744
        %v873 = vpack.c.b16 %v761, %v745
        %v874 = vpack.c.b16 %v762, %v746
        %v875 = vpack.c.b16 %v763, %v747
        %v876 = vpack.c.b16 %v764, %v748
        %v877 = vpack.c.b16 %v765, %v749
        %v878 = vpack.c.b16 %v766, %v750
        %v879 = vpack.c.b16 %v767, %v751
        %v880 = vpack.c.b16 %v768, %v752
        %v881 = vpack.c.b16 %v769, %v753
        %v882 = vpack.c.b16 %v770, %v754
        %v883 = vpack.c.b16 %v771, %v755
        %v884 = vpack.c.b16 %v772, %v756
        %v885 = vpack.c.b16 %v773, %v757
        %v886 = vpack.c.b16 %v774, %v774
        %v887 = vpack.c.b16 %v775, %v775
        %v888 = vpack.c.b16 %v776, %v776
        %v889 = vpack.c.b16 %v777, %v777
        %v890 = vpack.c.b16 %v778, %v778
        %v891 = vpack.c.b16 %v779, %v779
        %v892 = vpack.c.b16 %v780, %v780
        %v893 = vpack.c.b16 %v781, %v781
        %v894 = vpack.c.b16 %v782, %v782
        %v895 = vpack.c.b16 %v783, %v783
        %v896 = vpack.c.b16 %v784, %v784
        %v897 = vpack.c.b16 %v785, %v785
        %v898 = vpack.c.b16 %v786, %v786
        %v899 = vpack.c.b16 %v787, %v787
        %v900 = vpack.c.b16 %v788, %v788
        %v901 = vpack.c.b16 %v789, %v789
        %vm998 = vcmask 818176
        %v1000 = vsel %vm998, %v373, 0
        %vm1002 = vcmask 1041408
        %v1004 = vsel %vm1002, %v886, 0
        %v1007 = vsel %vm1002, %v887, 0
        %v1010 = vsel %vm1002, %v888, 0
        %v1013 = vsel %vm1002, %v889, 0
        %v1016 = vsel %vm1002, %v890, 0
        %v1019 = vsel %vm1002, %v891, 0
        %v1022 = vsel %vm1002, %v892, 0
        %v1025 = vsel %vm1002, %v893, 0
        %v1028 = vsel %vm1002, %v894, 0
        %v1031 = vsel %vm1002, %v895, 0
        %v1034 = vsel %vm1002, %v896, 0
        %v1037 = vsel %vm1002, %v897, 0
        %v1040 = vsel %vm1002, %v898, 0
        %v1043 = vsel %vm1002, %v899, 0
        %v1046 = vsel %vm1002, %v900, 0
        %v1049 = vsel %vm1002, %v901, 0
        %1051 = vmatprep.subr.bf16.mxu0 %v791
        %1052 = vmatpush1.bf16.msra.mxu0 %v790
        %1053 = vmatprep.subr.bf16.mxu0 %v807
        %1054 = vmatpush1.bf16.msra.mxu0 %v806
        %1055 = vmatprep.subr.bf16.mxu0 %v823
        %1056 = vmatpush1.bf16.msra.mxu0 %v822
        %1057 = vmatprep.subr.bf16.mxu0 %v839
        %1058 = vmatpush1.bf16.msra.mxu0 %v838
        %1059 = vmatprep.subr.bf16.mxu0 %v855
        %1060 = vmatpush1.bf16.msra.mxu0 %v854
        %1061 = vmatprep.subr.bf16.mxu0 %v871
        %1062 = vmatpush1.bf16.msra.mxu0 %v870
        %1063 = vmatprep.subr.bf16.mxu0 %v1007
        %1064 = vmatpush1.bf16.msra.mxu0 %v1004
        %1065 = vmatprep.subr.bf16.mxu0 0
        %1066 = vmatpush1.bf16.msra.mxu0 0
        %1067 = vmatprep.subr.bf16.mxu0 0
        %1068 = vmatpush1.bf16.msra.mxu0 0
        %1069 = vmatprep.subr.bf16.mxu0 0
        %1070 = vmatpush1.bf16.msra.mxu0 0
        %1071 = vmatprep.subr.bf16.mxu0 0
        %1072 = vmatpush1.bf16.msra.mxu0 0
        %1073 = vmatprep.subr.bf16.mxu0 0
        %1074 = vmatpush1.bf16.msra.mxu0 0
        %1075 = vmatprep.subr.bf16.mxu0 0
        %1076 = vmatpush1.bf16.msra.mxu0 0
        %1077 = vmatprep.subr.bf16.mxu0 0
        %1078 = vmatpush1.bf16.msra.mxu0 0
        %1079 = vmatprep.subr.bf16.mxu0 0
        %1080 = vmatpush1.bf16.msra.mxu0 0
        %1081 = vmatprep.subr.bf16.mxu0 0
        %1082 = vmatpush1.bf16.msra.mxu0 0
        %1083 = vmatprep.mubr.bf16.mxu0 0
        %1084 = vmatmul.mubr.bf16.gmra.mrb[0].mxu0 %v1000
        %v1085 = vpop.f32.mrb[0].mxu0
        %v1086 = vadd.f32 0.0, %v1085
        %v1087 = vpop.f32.mrb[0].mxu0
        %v1088 = vadd.f32 0.0, %v1087
        %v1089 = vpop.f32.mrb[0].mxu0
        %v1090 = vpop.f32.mrb[0].mxu0
        %1091 = vdwg.mxu0
        %1092 = vmatprep.subr.bf16.mxu0 %v793
        %1093 = vmatpush1.bf16.msra.mxu0 %v792
        %1094 = vmatprep.subr.bf16.mxu0 %v809
        %1095 = vmatpush1.bf16.msra.mxu0 %v808
        %1096 = vmatprep.subr.bf16.mxu0 %v825
        %1097 = vmatpush1.bf16.msra.mxu0 %v824
        %1098 = vmatprep.subr.bf16.mxu0 %v841
        %1099 = vmatpush1.bf16.msra.mxu0 %v840
        %1100 = vmatprep.subr.bf16.mxu0 %v857
        %1101 = vmatpush1.bf16.msra.mxu0 %v856
        %1102 = vmatprep.subr.bf16.mxu0 %v873
        %1103 = vmatpush1.bf16.msra.mxu0 %v872
        %1104 = vmatprep.subr.bf16.mxu0 %v1013
        %1105 = vmatpush1.bf16.msra.mxu0 %v1010
        %1106 = vmatprep.subr.bf16.mxu0 0
        %1107 = vmatpush1.bf16.msra.mxu0 0
        %1108 = vmatprep.subr.bf16.mxu0 0
        %1109 = vmatpush1.bf16.msra.mxu0 0
        %1110 = vmatprep.subr.bf16.mxu0 0
        %1111 = vmatpush1.bf16.msra.mxu0 0
        %1112 = vmatprep.subr.bf16.mxu0 0
        %1113 = vmatpush1.bf16.msra.mxu0 0
        %1114 = vmatprep.subr.bf16.mxu0 0
        %1115 = vmatpush1.bf16.msra.mxu0 0
        %1116 = vmatprep.subr.bf16.mxu0 0
        %1117 = vmatpush1.bf16.msra.mxu0 0
        %1118 = vmatprep.subr.bf16.mxu0 0
        %1119 = vmatpush1.bf16.msra.mxu0 0
        %1120 = vmatprep.subr.bf16.mxu0 0
        %1121 = vmatpush1.bf16.msra.mxu0 0
        %1122 = vmatprep.subr.bf16.mxu0 0
        %1123 = vmatpush1.bf16.msra.mxu0 0
        %1124 = vmatprep.mubr.bf16.mxu0 0
        %1125 = vmatmul.mubr.bf16.gmra.mrb[0].mxu0 %v1000
        %v1126 = vpop.f32.mrb[0].mxu0
        %v1127 = vadd.f32 0.0, %v1126
        %v1128 = vpop.f32.mrb[0].mxu0
        %v1129 = vadd.f32 0.0, %v1128
        %v1130 = vpop.f32.mrb[0].mxu0
        %v1131 = vpop.f32.mrb[0].mxu0
        %1132 = vdwg.mxu0
        %1133 = vmatprep.subr.bf16.mxu0 %v795
        %1134 = vmatpush1.bf16.msra.mxu0 %v794
        %1135 = vmatprep.subr.bf16.mxu0 %v811
        %1136 = vmatpush1.bf16.msra.mxu0 %v810
        %1137 = vmatprep.subr.bf16.mxu0 %v827
        %1138 = vmatpush1.bf16.msra.mxu0 %v826
        %1139 = vmatprep.subr.bf16.mxu0 %v843
        %1140 = vmatpush1.bf16.msra.mxu0 %v842
        %1141 = vmatprep.subr.bf16.mxu0 %v859
        %1142 = vmatpush1.bf16.msra.mxu0 %v858
        %1143 = vmatprep.subr.bf16.mxu0 %v875
        %1144 = vmatpush1.bf16.msra.mxu0 %v874
        %1145 = vmatprep.subr.bf16.mxu0 %v1019
        %1146 = vmatpush1.bf16.msra.mxu0 %v1016
        %1147 = vmatprep.subr.bf16.mxu0 0
        %1148 = vmatpush1.bf16.msra.mxu0 0
        %1149 = vmatprep.subr.bf16.mxu0 0
        %1150 = vmatpush1.bf16.msra.mxu0 0
        %1151 = vmatprep.subr.bf16.mxu0 0
        %1152 = vmatpush1.bf16.msra.mxu0 0
        %1153 = vmatprep.subr.bf16.mxu0 0
        %1154 = vmatpush1.bf16.msra.mxu0 0
        %1155 = vmatprep.subr.bf16.mxu0 0
        %1156 = vmatpush1.bf16.msra.mxu0 0
        %1157 = vmatprep.subr.bf16.mxu0 0
        %1158 = vmatpush1.bf16.msra.mxu0 0
        %1159 = vmatprep.subr.bf16.mxu0 0
        %1160 = vmatpush1.bf16.msra.mxu0 0
        %1161 = vmatprep.subr.bf16.mxu0 0
        %1162 = vmatpush1.bf16.msra.mxu0 0
        %1163 = vmatprep.subr.bf16.mxu0 0
        %1164 = vmatpush1.bf16.msra.mxu0 0
        %1165 = vmatprep.mubr.bf16.mxu0 0
        %1166 = vmatmul.mubr.bf16.gmra.mrb[0].mxu0 %v1000
        %v1167 = vpop.f32.mrb[0].mxu0
        %v1168 = vadd.f32 0.0, %v1167
        %v1169 = vpop.f32.mrb[0].mxu0
        %v1170 = vadd.f32 0.0, %v1169
        %v1171 = vpop.f32.mrb[0].mxu0
        %v1172 = vpop.f32.mrb[0].mxu0
        %1173 = vdwg.mxu0
        %1174 = vmatprep.subr.bf16.mxu0 %v797
        %1175 = vmatpush1.bf16.msra.mxu0 %v796
        %1176 = vmatprep.subr.bf16.mxu0 %v813
        %1177 = vmatpush1.bf16.msra.mxu0 %v812
        %1178 = vmatprep.subr.bf16.mxu0 %v829
        %1179 = vmatpush1.bf16.msra.mxu0 %v828
        %1180 = vmatprep.subr.bf16.mxu0 %v845
        %1181 = vmatpush1.bf16.msra.mxu0 %v844
        %1182 = vmatprep.subr.bf16.mxu0 %v861
        %1183 = vmatpush1.bf16.msra.mxu0 %v860
        %1184 = vmatprep.subr.bf16.mxu0 %v877
        %1185 = vmatpush1.bf16.msra.mxu0 %v876
        %1186 = vmatprep.subr.bf16.mxu0 %v1025
        %1187 = vmatpush1.bf16.msra.mxu0 %v1022
        %1188 = vmatprep.subr.bf16.mxu0 0
        %1189 = vmatpush1.bf16.msra.mxu0 0
        %1190 = vmatprep.subr.bf16.mxu0 0
        %1191 = vmatpush1.bf16.msra.mxu0 0
        %1192 = vmatprep.subr.bf16.mxu0 0
        %1193 = vmatpush1.bf16.msra.mxu0 0
        %1194 = vmatprep.subr.bf16.mxu0 0
        %1195 = vmatpush1.bf16.msra.mxu0 0
        %1196 = vmatprep.subr.bf16.mxu0 0
        %1197 = vmatpush1.bf16.msra.mxu0 0
        %1198 = vmatprep.subr.bf16.mxu0 0
        %1199 = vmatpush1.bf16.msra.mxu0 0
        %1200 = vmatprep.subr.bf16.mxu0 0
        %1201 = vmatpush1.bf16.msra.mxu0 0
        %1202 = vmatprep.subr.bf16.mxu0 0
        %1203 = vmatpush1.bf16.msra.mxu0 0
        %1204 = vmatprep.subr.bf16.mxu0 0
        %1205 = vmatpush1.bf16.msra.mxu0 0
        %1206 = vmatprep.mubr.bf16.mxu0 0
        %1207 = vmatmul.mubr.bf16.gmra.mrb[0].mxu0 %v1000
        %v1208 = vpop.f32.mrb[0].mxu0
        %v1209 = vadd.f32 0.0, %v1208
        %v1210 = vpop.f32.mrb[0].mxu0
        %v1211 = vadd.f32 0.0, %v1210
        %v1212 = vpop.f32.mrb[0].mxu0
        %v1213 = vpop.f32.mrb[0].mxu0
        %1214 = vdwg.mxu0
        %1215 = vmatprep.subr.bf16.mxu0 %v799
        %1216 = vmatpush1.bf16.msra.mxu0 %v798
        %1217 = vmatprep.subr.bf16.mxu0 %v815
        %1218 = vmatpush1.bf16.msra.mxu0 %v814
        %1219 = vmatprep.subr.bf16.mxu0 %v831
        %1220 = vmatpush1.bf16.msra.mxu0 %v830
        %1221 = vmatprep.subr.bf16.mxu0 %v847
        %1222 = vmatpush1.bf16.msra.mxu0 %v846
        %1223 = vmatprep.subr.bf16.mxu0 %v863
        %1224 = vmatpush1.bf16.msra.mxu0 %v862
        %1225 = vmatprep.subr.bf16.mxu0 %v879
        %1226 = vmatpush1.bf16.msra.mxu0 %v878
        %1227 = vmatprep.subr.bf16.mxu0 %v1031
        %1228 = vmatpush1.bf16.msra.mxu0 %v1028
        %1229 = vmatprep.subr.bf16.mxu0 0
        %1230 = vmatpush1.bf16.msra.mxu0 0
        %1231 = vmatprep.subr.bf16.mxu0 0
        %1232 = vmatpush1.bf16.msra.mxu0 0
        %1233 = vmatprep.subr.bf16.mxu0 0
        %1234 = vmatpush1.bf16.msra.mxu0 0
        %1235 = vmatprep.subr.bf16.mxu0 0
        %1236 = vmatpush1.bf16.msra.mxu0 0
        %1237 = vmatprep.subr.bf16.mxu0 0
        %1238 = vmatpush1.bf16.msra.mxu0 0
        %1239 = vmatprep.subr.bf16.mxu0 0
        %1240 = vmatpush1.bf16.msra.mxu0 0
        %1241 = vmatprep.subr.bf16.mxu0 0
        %1242 = vmatpush1.bf16.msra.mxu0 0
        %1243 = vmatprep.subr.bf16.mxu0 0
        %1244 = vmatpush1.bf16.msra.mxu0 0
        %1245 = vmatprep.subr.bf16.mxu0 0
        %1246 = vmatpush1.bf16.msra.mxu0 0
        %1247 = vmatprep.mubr.bf16.mxu0 0
        %1248 = vmatmul.mubr.bf16.gmra.mrb[0].mxu0 %v1000
        %v1249 = vpop.f32.mrb[0].mxu0
        %v1250 = vadd.f32 0.0, %v1249
        %v1251 = vpop.f32.mrb[0].mxu0
        %v1252 = vadd.f32 0.0, %v1251
        %v1253 = vpop.f32.mrb[0].mxu0
        %v1254 = vpop.f32.mrb[0].mxu0
        %1255 = vdwg.mxu0
        %1256 = vmatprep.subr.bf16.mxu0 %v801
        %1257 = vmatpush1.bf16.msra.mxu0 %v800
        %1258 = vmatprep.subr.bf16.mxu0 %v817
        %1259 = vmatpush1.bf16.msra.mxu0 %v816
        %1260 = vmatprep.subr.bf16.mxu0 %v833
        %1261 = vmatpush1.bf16.msra.mxu0 %v832
        %1262 = vmatprep.subr.bf16.mxu0 %v849
        %1263 = vmatpush1.bf16.msra.mxu0 %v848
        %1264 = vmatprep.subr.bf16.mxu0 %v865
        %1265 = vmatpush1.bf16.msra.mxu0 %v864
        %1266 = vmatprep.subr.bf16.mxu0 %v881
        %1267 = vmatpush1.bf16.msra.mxu0 %v880
        %1268 = vmatprep.subr.bf16.mxu0 %v1037
        %1269 = vmatpush1.bf16.msra.mxu0 %v1034
        %1270 = vmatprep.subr.bf16.mxu0 0
        %1271 = vmatpush1.bf16.msra.mxu0 0
        %1272 = vmatprep.subr.bf16.mxu0 0
        %1273 = vmatpush1.bf16.msra.mxu0 0
        %1274 = vmatprep.subr.bf16.mxu0 0
        %1275 = vmatpush1.bf16.msra.mxu0 0
        %1276 = vmatprep.subr.bf16.mxu0 0
        %1277 = vmatpush1.bf16.msra.mxu0 0
        %1278 = vmatprep.subr.bf16.mxu0 0
        %1279 = vmatpush1.bf16.msra.mxu0 0
        %1280 = vmatprep.subr.bf16.mxu0 0
        %1281 = vmatpush1.bf16.msra.mxu0 0
        %1282 = vmatprep.subr.bf16.mxu0 0
        %1283 = vmatpush1.bf16.msra.mxu0 0
        %1284 = vmatprep.subr.bf16.mxu0 0
        %1285 = vmatpush1.bf16.msra.mxu0 0
        %1286 = vmatprep.subr.bf16.mxu0 0
        %1287 = vmatpush1.bf16.msra.mxu0 0
        %1288 = vmatprep.mubr.bf16.mxu0 0
        %1289 = vmatmul.mubr.bf16.gmra.mrb[0].mxu0 %v1000
        %v1290 = vpop.f32.mrb[0].mxu0
        %v1291 = vadd.f32 0.0, %v1290
        %v1292 = vpop.f32.mrb[0].mxu0
        %v1293 = vadd.f32 0.0, %v1292
        %v1294 = vpop.f32.mrb[0].mxu0
        %v1295 = vpop.f32.mrb[0].mxu0
        %1296 = vdwg.mxu0
        %1297 = vmatprep.subr.bf16.mxu0 %v803
        %1298 = vmatpush1.bf16.msra.mxu0 %v802
        %1299 = vmatprep.subr.bf16.mxu0 %v819
        %1300 = vmatpush1.bf16.msra.mxu0 %v818
        %1301 = vmatprep.subr.bf16.mxu0 %v835
        %1302 = vmatpush1.bf16.msra.mxu0 %v834
        %1303 = vmatprep.subr.bf16.mxu0 %v851
        %1304 = vmatpush1.bf16.msra.mxu0 %v850
        %1305 = vmatprep.subr.bf16.mxu0 %v867
        %1306 = vmatpush1.bf16.msra.mxu0 %v866
        %1307 = vmatprep.subr.bf16.mxu0 %v883
        %1308 = vmatpush1.bf16.msra.mxu0 %v882
        %1309 = vmatprep.subr.bf16.mxu0 %v1043
        %1310 = vmatpush1.bf16.msra.mxu0 %v1040
        %1311 = vmatprep.subr.bf16.mxu0 0
        %1312 = vmatpush1.bf16.msra.mxu0 0
        %1313 = vmatprep.subr.bf16.mxu0 0
        %1314 = vmatpush1.bf16.msra.mxu0 0
        %1315 = vmatprep.subr.bf16.mxu0 0
        %1316 = vmatpush1.bf16.msra.mxu0 0
        %1317 = vmatprep.subr.bf16.mxu0 0
        %1318 = vmatpush1.bf16.msra.mxu0 0
        %1319 = vmatprep.subr.bf16.mxu0 0
        %1320 = vmatpush1.bf16.msra.mxu0 0
        %1321 = vmatprep.subr.bf16.mxu0 0
        %1322 = vmatpush1.bf16.msra.mxu0 0
        %1323 = vmatprep.subr.bf16.mxu0 0
        %1324 = vmatpush1.bf16.msra.mxu0 0
        %1325 = vmatprep.subr.bf16.mxu0 0
        %1326 = vmatpush1.bf16.msra.mxu0 0
        %1327 = vmatprep.subr.bf16.mxu0 0
        %1328 = vmatpush1.bf16.msra.mxu0 0
        %1329 = vmatprep.mubr.bf16.mxu0 0
        %1330 = vmatmul.mubr.bf16.gmra.mrb[0].mxu0 %v1000
        %v1331 = vpop.f32.mrb[0].mxu0
        %v1332 = vadd.f32 0.0, %v1331
        %v1333 = vpop.f32.mrb[0].mxu0
        %v1334 = vadd.f32 0.0, %v1333
        %v1335 = vpop.f32.mrb[0].mxu0
        %v1336 = vpop.f32.mrb[0].mxu0
        %1337 = vdwg.mxu0
        %1338 = vmatprep.subr.bf16.mxu0 %v805
        %1339 = vmatpush1.bf16.msra.mxu0 %v804
        %1340 = vmatprep.subr.bf16.mxu0 %v821
        %1341 = vmatpush1.bf16.msra.mxu0 %v820
        %1342 = vmatprep.subr.bf16.mxu0 %v837
        %1343 = vmatpush1.bf16.msra.mxu0 %v836
        %1344 = vmatprep.subr.bf16.mxu0 %v853
        %1345 = vmatpush1.bf16.msra.mxu0 %v852
        %1346 = vmatprep.subr.bf16.mxu0 %v869
        %1347 = vmatpush1.bf16.msra.mxu0 %v868
        %1348 = vmatprep.subr.bf16.mxu0 %v885
        %1349 = vmatpush1.bf16.msra.mxu0 %v884
        %1350 = vmatprep.subr.bf16.mxu0 %v1049
        %1351 = vmatpush1.bf16.msra.mxu0 %v1046
        %1352 = vmatprep.subr.bf16.mxu0 0
        %1353 = vmatpush1.bf16.msra.mxu0 0
        %1354 = vmatprep.subr.bf16.mxu0 0
        %1355 = vmatpush1.bf16.msra.mxu0 0
        %1356 = vmatprep.subr.bf16.mxu0 0
        %1357 = vmatpush1.bf16.msra.mxu0 0
        %1358 = vmatprep.subr.bf16.mxu0 0
        %1359 = vmatpush1.bf16.msra.mxu0 0
        %1360 = vmatprep.subr.bf16.mxu0 0
        %1361 = vmatpush1.bf16.msra.mxu0 0
        %1362 = vmatprep.subr.bf16.mxu0 0
        %1363 = vmatpush1.bf16.msra.mxu0 0
        %1364 = vmatprep.subr.bf16.mxu0 0
        %1365 = vmatpush1.bf16.msra.mxu0 0
        %1366 = vmatprep.subr.bf16.mxu0 0
        %1367 = vmatpush1.bf16.msra.mxu0 0
        %1368 = vmatprep.subr.bf16.mxu0 0
        %1369 = vmatpush1.bf16.msra.mxu0 0
        %1370 = vmatprep.mubr.bf16.mxu0 0
        %1371 = vmatmul.mubr.bf16.gmra.mrb[0].mxu0 %v1000
        %v1372 = vpop.f32.mrb[0].mxu0
        %v1373 = vadd.f32 0.0, %v1372
        %v1374 = vpop.f32.mrb[0].mxu0
        %v1375 = vadd.f32 0.0, %v1374
        %v1376 = vpop.f32.mrb[0].mxu0
        %v1377 = vpop.f32.mrb[0].mxu0
        %1378 = vdwg.mxu0
        %v1395 = vcombine.low %v1086, %v1088
        %v1396 = vcombine.low %v1127, %v1129
        %v1398 = vunpack.c.l.s4 1983009808
        %v1399 = vunpack.c.0.s8 %v1398
        %v1400 = vlaneseq
        %v1401 = vshrl.u32 %v1400, 7
        %v1402 = vsub.s32 %v1399, %v1401
        %v1403 = vrot.slane %v1395, %v1402
        %v1405 = vunpack.c.l.s4 1983009808
        %v1406 = vunpack.c.0.s8 %v1405
        %v1407 = vlaneseq
        %v1408 = vshrl.u32 %v1407, 7
        %v1409 = vsub.s32 %v1406, %v1408
        %v1410 = vrot.slane %v1396, %v1409
        %v1411 = vcombine.low %v1403, %v1410
        %v1412 = vcombine.low %v1168, %v1170
        %v1413 = vcombine.low %v1209, %v1211
        %v1415 = vunpack.c.l.s4 1983009808
        %v1416 = vunpack.c.0.s8 %v1415
        %v1417 = vlaneseq
        %v1418 = vshrl.u32 %v1417, 7
        %v1419 = vsub.s32 %v1416, %v1418
        %v1420 = vrot.slane %v1412, %v1419
        %v1422 = vunpack.c.l.s4 1983009808
        %v1423 = vunpack.c.0.s8 %v1422
        %v1424 = vlaneseq
        %v1425 = vshrl.u32 %v1424, 7
        %v1426 = vsub.s32 %v1423, %v1425
        %v1427 = vrot.slane %v1413, %v1426
        %v1428 = vcombine.low %v1420, %v1427
        %v1429 = vcombine.low %v1250, %v1252
        %v1430 = vcombine.low %v1291, %v1293
        %v1432 = vunpack.c.l.s4 1983009808
        %v1433 = vunpack.c.0.s8 %v1432
        %v1434 = vlaneseq
        %v1435 = vshrl.u32 %v1434, 7
        %v1436 = vsub.s32 %v1433, %v1435
        %v1437 = vrot.slane %v1429, %v1436
        %v1439 = vunpack.c.l.s4 1983009808
        %v1440 = vunpack.c.0.s8 %v1439
        %v1441 = vlaneseq
        %v1442 = vshrl.u32 %v1441, 7
        %v1443 = vsub.s32 %v1440, %v1442
        %v1444 = vrot.slane %v1430, %v1443
        %v1445 = vcombine.low %v1437, %v1444
        %v1446 = vcombine.low %v1332, %v1334
        %v1447 = vcombine.low %v1373, %v1375
        %v1449 = vunpack.c.l.s4 1983009808
        %v1450 = vunpack.c.0.s8 %v1449
        %v1451 = vlaneseq
        %v1452 = vshrl.u32 %v1451, 7
        %v1453 = vsub.s32 %v1450, %v1452
        %v1454 = vrot.slane %v1446, %v1453
        %v1456 = vunpack.c.l.s4 1983009808
        %v1457 = vunpack.c.0.s8 %v1456
        %v1458 = vlaneseq
        %v1459 = vshrl.u32 %v1458, 7
        %v1460 = vsub.s32 %v1457, %v1459
        %v1461 = vrot.slane %v1447, %v1460
        %v1462 = vcombine.low %v1454, %v1461
        %1467 = vst [vmem:[%s370] sm:$0xff] %v1411
        %1468 = vst [vmem:[%s370 + $0x8] sm:$0xff] %v1428
        %1469 = vst [vmem:[%s370 + $0x10] sm:$0xff] %v1445
        %1470 = vst [vmem:[%s370 + $0x18] sm:$0xff] %v1462
        %s1471 = smul.u32 16, %s13
        %p1472 = scmp.lt.s32.totalorder %s1471, 31
        %s1473 = scalar_select %p1472, %s1471, 31
        %s1474 = smul.addr %s1473, 2
        %s1475 = scalar_lea.vmem %s2, %s1474
        // Predicated region
        $region52: #{generator_sec_forward.5} parent=46 // pred_check
          %p1476 = pneg %p78
        $region53: #{generator_sec_forward.5} parent=46 // pred_check_branch
          %1478 = sbr.rel (%p1476) target = $region55
        $region54: #{generator_sec_forward.5} parent=46 // pred_region
          %s1479 = smul.u32 16, %s13
        $region55: #{generator_sec_forward.5} parent=46 // pred_fallthru
          _
      $region47: #{generator_sec_forward.5} parent=5 // pred_fallthru
        _
      %p1480 = scmp.le.s32.totalorder 2, %s8
      // Predicated region
      $region56: #{generator_sec_forward.5} parent=5 // pred_check
        %p1481 = pneg %p1480
      $region57: #{generator_sec_forward.5} parent=5 // pred_check_branch
        %1483 = sbr.rel (%p1481) target = $region59
      $region58: #{generator_sec_forward.5} parent=5 // pred_region
        %s1484 = ssub.s32 %s8, 2
        // Predicated region
        $region60: #{generator_sec_forward.5} parent=58 // pred_check
          %p1485 = pneg %p84
        $region61: #{generator_sec_forward.5} parent=58 // pred_check_branch
          %1487 = sbr.rel (%p1485) target = $region63
        $region62: #{generator_sec_forward.5} parent=58 // pred_region
          %s1488 = smul.u32 16, %s14
          %p1489 = scmp.lt.s32.totalorder %s1488, 31
          %s1490 = scalar_select %p1489, %s1488, 31
          %s1491 = smul.addr %s1490, 2
          %s1492 = scalar_lea.vmem %s2, %s1491
        $region63: #{generator_sec_forward.5} parent=58 // pred_fallthru
          _
      $region59: #{generator_sec_forward.5} parent=5 // pred_fallthru
        _
    $region6: #{generator_sec_forward.5} parent=1 // loop_footer
      %s12 = sadd.s32 1, %s8
    $region7: #{generator_sec_forward.5} parent=1 // loop_footer_branch
      %7 = sbr.rel target = $region3
    $region8: #{generator_sec_forward.5} parent=1 // loop_exit
      _

// kernel: generator_sec_forward.6
$region0: #{generator_sec_forward.6}
  #allocation0 [shape = 'u32[]', space=smem, size = 0x4, offset = 0x4, fixed_abs, tag = 'smem constant byte address 0x4 - core index']
  #allocation1 [shape = 'u32[144,128]{1,0:T(1,128)}', space=vmem, size = 0x12000, scoped, tag = 'internal scratch']
  %s0 = inlined_call_operand.vmem [shape: f32[32,256], index: 0, kind: input, shape index: {}]
  %s1 = inlined_call_operand.vmem [shape: f32[1,256], index: 1, kind: input, shape index: {}]
  %s2 = inlined_call_operand.vmem [shape: f32[1,256], index: 2, kind: input, shape index: {}]
  %s3 = inlined_call_operand.vmem [shape: bf16[256,2048], index: 3, kind: input, shape index: {}]
  %s4 = inlined_call_operand.vmem [shape: f32[32,2048], index: 4, kind: output, shape index: {}]
  %s5 = sld [smem:[#allocation0]]
  $region91: #{generator_sec_forward.6} parent=0
    _
  %s7 = ssub.s32 1, %s5
  %s8 = scalar_select 0, %s7, %s5
  $region1: #{generator_sec_forward.6} parent=0
    #allocation2 [shape = 'u8[1048576]{0}', space=vmem, size = 0x100000, scoped, tag = 'input window, operand 3']
    #allocation3 [shape = 'u8[262144]{0}', space=vmem, size = 0x40000, scoped, tag = 'output window, operand 0']
    loop: start=0, step=1, limit=4
    $region2: #{generator_sec_forward.6} parent=1 // loop_pre_header
      _
    $region3: #{generator_sec_forward.6} parent=1 // loop_header
      %s10 = sphi 0, %s14
      %p11 = scmp.ge.s32.totalorder %s10, 4
      %s18 = sphi 0, %s18
      %s20 = sphi 0, %s18
      %s21 = sphi 0, %s20
      %s35 = sphi 0, %s21
      %s39 = sphi 0, %s39
      %s41 = sphi 0, %s39
      %s42 = sphi 0, %s41
      %s56 = sphi 0, %s42
      %s60 = sphi 0, %s60
      %s62 = sphi 0, %s60
      %s63 = sphi 0, %s62
      %s77 = sphi 0, %s63
      %s83 = sphi 0, %s85
      %s86 = sphi 0, %s83
      %s87 = sphi 0, %s86
      %s103 = sphi 0, %s87
      %s109 = sphi 0, %s111
      %s112 = sphi 0, %s109
      %s113 = sphi 0, %s112
      %s129 = sphi 0, %s113
    $region4: #{generator_sec_forward.6} parent=1 // loop_header_branch
      %13 = sbr.rel (%p11) target = $region8
    $region5: #{generator_sec_forward.6} parent=1 // loop_body
      %s15 = ssub.s32 %s10, 1
      %s16 = ssub.s32 %s10, 2
      %s17 = sadd.s32 %s10, 1
      %s19 = sadd.s32 %s18, 1
      %p22 = scmp.eq.s32.totalorder %s10, 1
      %p23 = scmp.ne.s32.totalorder %s18, %s20
      %p24 = scmp.eq.s32.totalorder %s10, 0
      %p25 = por %p23, %p24
      %p26 = scmp.ne.s32.totalorder %s18, %s20
      %p27 = scmp.eq.s32.totalorder %s15, 1
      %p28 = por %p26, %p27
      %p29 = scmp.ne.s32.totalorder %s20, %s21
      %p30 = scmp.eq.s32.totalorder %s15, 0
      %p31 = por %p29, %p30
      %p32 = scmp.ne.s32.totalorder %s20, %s21
      %p33 = scmp.eq.s32.totalorder %s16, 1
      %p34 = por %p32, %p33
      %p36 = scmp.ne.s32.totalorder %s21, %s35
      %p37 = scmp.eq.s32.totalorder %s16, 0
      %p38 = por %p36, %p37
      %s40 = sadd.s32 %s39, 1
      %p43 = scmp.eq.s32.totalorder %s10, 1
      %p44 = scmp.ne.s32.totalorder %s39, %s41
      %p45 = scmp.eq.s32.totalorder %s10, 0
      %p46 = por %p44, %p45
      %p47 = scmp.ne.s32.totalorder %s39, %s41
      %p48 = scmp.eq.s32.totalorder %s15, 1
      %p49 = por %p47, %p48
      %p50 = scmp.ne.s32.totalorder %s41, %s42
      %p51 = scmp.eq.s32.totalorder %s15, 0
      %p52 = por %p50, %p51
      %p53 = scmp.ne.s32.totalorder %s41, %s42
      %p54 = scmp.eq.s32.totalorder %s16, 1
      %p55 = por %p53, %p54
      %p57 = scmp.ne.s32.totalorder %s42, %s56
      %p58 = scmp.eq.s32.totalorder %s16, 0
      %p59 = por %p57, %p58
      %s61 = sadd.s32 %s60, 1
      %p64 = scmp.eq.s32.totalorder %s10, 1
      %p65 = scmp.ne.s32.totalorder %s60, %s62
      %p66 = scmp.eq.s32.totalorder %s10, 0
      %p67 = por %p65, %p66
      %p68 = scmp.ne.s32.totalorder %s60, %s62
      %p69 = scmp.eq.s32.totalorder %s15, 1
      %p70 = por %p68, %p69
      %p71 = scmp.ne.s32.totalorder %s62, %s63
      %p72 = scmp.eq.s32.totalorder %s15, 0
      %p73 = por %p71, %p72
      %p74 = scmp.ne.s32.totalorder %s62, %s63
      %p75 = scmp.eq.s32.totalorder %s16, 1
      %p76 = por %p74, %p75
      %p78 = scmp.ne.s32.totalorder %s63, %s77
      %p79 = scmp.eq.s32.totalorder %s16, 0
      %p80 = por %p78, %p79
      %s81 = ssub.s32 %s10, %s17
      %p82 = scmp.eq.s32.totalorder %s81, 0
      %s84 = sadd.s32 %s83, 1
      %s85 = scalar_select %p82, %s83, %s84
      %p88 = pneg %p82
      %p89 = scmp.eq.s32.totalorder %s10, 1
      %p90 = por %p88, %p89
      %p91 = scmp.ne.s32.totalorder %s83, %s86
      %p92 = scmp.eq.s32.totalorder %s10, 0
      %p93 = por %p91, %p92
      %p94 = scmp.ne.s32.totalorder %s83, %s86
      %p95 = scmp.eq.s32.totalorder %s15, 1
      %p96 = por %p94, %p95
      %p97 = scmp.ne.s32.totalorder %s86, %s87
      %p98 = scmp.eq.s32.totalorder %s15, 0
      %p99 = por %p97, %p98
      %p100 = scmp.ne.s32.totalorder %s86, %s87
      %p101 = scmp.eq.s32.totalorder %s16, 1
      %p102 = por %p100, %p101
      %p104 = scmp.ne.s32.totalorder %s87, %s103
      %p105 = scmp.eq.s32.totalorder %s16, 0
      %p106 = por %p104, %p105
      %s107 = ssub.s32 %s10, %s17
      %p108 = scmp.eq.s32.totalorder %s107, 0
      %s110 = sadd.s32 %s109, 1
      %s111 = scalar_select %p108, %s109, %s110
      %p114 = pneg %p108
      %p115 = scmp.eq.s32.totalorder %s10, 1
      %p116 = por %p114, %p115
      %p117 = scmp.ne.s32.totalorder %s109, %s112
      %p118 = scmp.eq.s32.totalorder %s10, 0
      %p119 = por %p117, %p118
      %p120 = scmp.ne.s32.totalorder %s109, %s112
      %p121 = scmp.eq.s32.totalorder %s15, 1
      %p122 = por %p120, %p121
      %p123 = scmp.ne.s32.totalorder %s112, %s113
      %p124 = scmp.eq.s32.totalorder %s15, 0
      %p125 = por %p123, %p124
      %p126 = scmp.ne.s32.totalorder %s112, %s113
      %p127 = scmp.eq.s32.totalorder %s16, 1
      %p128 = por %p126, %p127
      %p130 = scmp.ne.s32.totalorder %s113, %s129
      %p131 = scmp.eq.s32.totalorder %s16, 0
      %p132 = por %p130, %p131
      %p133 = scmp.le.s32.totalorder 1, %s10
      %p134 = scmp.lt.s32.totalorder %s10, 3
      %p135 = pnand %p133, %p134
      %p136 = pneg %p135
      // Predicated region
      $region9: #{generator_sec_forward.6} parent=5 // pred_check
        _
      $region10: #{generator_sec_forward.6} parent=5 // pred_check_branch
        %138 = sbr.rel (%p135) target = $region12
      $region11: #{generator_sec_forward.6} parent=5 // pred_region
        %s139 = ssub.s32 %s10, 1
        // Predicated region
        $region13: #{generator_sec_forward.6} parent=11 // pred_check
          %p140 = pneg %p31
        $region14: #{generator_sec_forward.6} parent=11 // pred_check_branch
          %142 = sbr.rel (%p140) target = $region16
        $region15: #{generator_sec_forward.6} parent=11 // pred_region
          _
        $region16: #{generator_sec_forward.6} parent=11 // pred_fallthru
          _
        // Predicated region
        $region17: #{generator_sec_forward.6} parent=11 // pred_check
          %p143 = pneg %p52
        $region18: #{generator_sec_forward.6} parent=11 // pred_check_branch
          %145 = sbr.rel (%p143) target = $region20
        $region19: #{generator_sec_forward.6} parent=11 // pred_region
          _
        $region20: #{generator_sec_forward.6} parent=11 // pred_fallthru
          _
        // Predicated region
        $region21: #{generator_sec_forward.6} parent=11 // pred_check
          %p146 = pneg %p73
        $region22: #{generator_sec_forward.6} parent=11 // pred_check_branch
          %148 = sbr.rel (%p146) target = $region24
        $region23: #{generator_sec_forward.6} parent=11 // pred_region
          _
        $region24: #{generator_sec_forward.6} parent=11 // pred_fallthru
          _
      $region12: #{generator_sec_forward.6} parent=5 // pred_fallthru
        _
      %p149 = scmp.lt.s32.totalorder %s10, 2
      // Predicated region
      $region25: #{generator_sec_forward.6} parent=5 // pred_check
        %p150 = pneg %p149
      $region26: #{generator_sec_forward.6} parent=5 // pred_check_branch
        %152 = sbr.rel (%p150) target = $region28
      $region27: #{generator_sec_forward.6} parent=5 // pred_region
        // Predicated region
        $region29: #{generator_sec_forward.6} parent=27 // pred_check
          %p153 = pneg %p93
        $region30: #{generator_sec_forward.6} parent=27 // pred_check_branch
          %155 = sbr.rel (%p153) target = $region32
        $region31: #{generator_sec_forward.6} parent=27 // pred_region
          %s156 = sand.u32 %s83, 1
          %s157 = sand.u32 %s83, 1
          %s158 = smul.addr %s157, 1024
          %s159 = scalar_lea.vmem [#allocation2], %s158
          %s160 = smul.u32 8, %s10
          %s161 = smul.addr %s160, 4
          %s162 = scalar_lea.vmem %s3, %s161
          // Predicated region
          $region33: #{generator_sec_forward.6} parent=31 // pred_check
            _
          $region34: #{generator_sec_forward.6} parent=31 // pred_check_branch
            %164 = sbr.rel (0) target = $region36
          $region35: #{generator_sec_forward.6} parent=31 // pred_region
            // Predicated region
            $region37: #{generator_sec_forward.6} parent=35 // pred_check
              _
            $region38: #{generator_sec_forward.6} parent=35 // pred_check_branch
              %166 = sbr.rel (0) target = $region40
            $region39: #{generator_sec_forward.6} parent=35 // pred_region
              loop: start=0, step=1, limit=1
              $region41: #{generator_sec_forward.6} parent=39 // loop_pre_header
                _
              $region42: #{generator_sec_forward.6} parent=39 // loop_header
                %s168 = sphi 0, %s172
                %p169 = scmp.ge.s32.totalorder %s168, 1
                %s173 = sphi %s162, %s162
                %s174 = sphi %s159, %s159
              $region43: #{generator_sec_forward.6} parent=39 // loop_header_branch
                %171 = sbr.rel (%p169) target = $region47
              $region44: #{generator_sec_forward.6} parent=39 // loop_body
                %v175 = vld [vmem:[%s173] sm:$0xff]
                %176 = vst [vmem:[%s174] sm:$0xff] %v175
                %v177 = vld [vmem:[%s173 + $0x8] sm:$0xff]
                %178 = vst [vmem:[%s174 + $0x8] sm:$0xff] %v177
                %v179 = vld [vmem:[%s173 + $0x10] sm:$0xff]
                %180 = vst [vmem:[%s174 + $0x10] sm:$0xff] %v179
                %v181 = vld [vmem:[%s173 + $0x18] sm:$0xff]
                %182 = vst [vmem:[%s174 + $0x18] sm:$0xff] %v181
                %v183 = vld [vmem:[%s173 + $0x40] sm:$0xff]
                %184 = vst [vmem:[%s174 + $0x20] sm:$0xff] %v183
                %v185 = vld [vmem:[%s173 + $0x48] sm:$0xff]
                %186 = vst [vmem:[%s174 + $0x28] sm:$0xff] %v185
                %v187 = vld [vmem:[%s173 + $0x50] sm:$0xff]
                %188 = vst [vmem:[%s174 + $0x30] sm:$0xff] %v187
                %v189 = vld [vmem:[%s173 + $0x58] sm:$0xff]
                %190 = vst [vmem:[%s174 + $0x38] sm:$0xff] %v189
                %v191 = vld [vmem:[%s173 + $0x80] sm:$0xff]
                %192 = vst [vmem:[%s174 + $0x40] sm:$0xff] %v191
                %v193 = vld [vmem:[%s173 + $0x88] sm:$0xff]
                %194 = vst [vmem:[%s174 + $0x48] sm:$0xff] %v193
                %v195 = vld [vmem:[%s173 + $0x90] sm:$0xff]
                %196 = vst [vmem:[%s174 + $0x50] sm:$0xff] %v195
                %v197 = vld [vmem:[%s173 + $0x98] sm:$0xff]
                %198 = vst [vmem:[%s174 + $0x58] sm:$0xff] %v197
                %v199 = vld [vmem:[%s173 + $0xc0] sm:$0xff]
                %200 = vst [vmem:[%s174 + $0x60] sm:$0xff] %v199
                %v201 = vld [vmem:[%s173 + $0xc8] sm:$0xff]
                %202 = vst [vmem:[%s174 + $0x68] sm:$0xff] %v201
                %v203 = vld [vmem:[%s173 + $0xd0] sm:$0xff]
                %204 = vst [vmem:[%s174 + $0x70] sm:$0xff] %v203
                %v205 = vld [vmem:[%s173 + $0xd8] sm:$0xff]
                %206 = vst [vmem:[%s174 + $0x78] sm:$0xff] %v205
                %v207 = vld [vmem:[%s173 + $0x100] sm:$0xff]
                %208 = vst [vmem:[%s174 + $0x80] sm:$0xff] %v207
                %v209 = vld [vmem:[%s173 + $0x108] sm:$0xff]
                %210 = vst [vmem:[%s174 + $0x88] sm:$0xff] %v209
                %v211 = vld [vmem:[%s173 + $0x110] sm:$0xff]
                %212 = vst [vmem:[%s174 + $0x90] sm:$0xff] %v211
                %v213 = vld [vmem:[%s173 + $0x118] sm:$0xff]
                %214 = vst [vmem:[%s174 + $0x98] sm:$0xff] %v213
                %v215 = vld [vmem:[%s173 + $0x140] sm:$0xff]
                %216 = vst [vmem:[%s174 + $0xa0] sm:$0xff] %v215
                %v217 = vld [vmem:[%s173 + $0x148] sm:$0xff]
                %218 = vst [vmem:[%s174 + $0xa8] sm:$0xff] %v217
                %v219 = vld [vmem:[%s173 + $0x150] sm:$0xff]
                %220 = vst [vmem:[%s174 + $0xb0] sm:$0xff] %v219
                %v221 = vld [vmem:[%s173 + $0x158] sm:$0xff]
                %222 = vst [vmem:[%s174 + $0xb8] sm:$0xff] %v221
                %v223 = vld [vmem:[%s173 + $0x180] sm:$0xff]
                %224 = vst [vmem:[%s174 + $0xc0] sm:$0xff] %v223
                %v225 = vld [vmem:[%s173 + $0x188] sm:$0xff]
                %226 = vst [vmem:[%s174 + $0xc8] sm:$0xff] %v225
                %v227 = vld [vmem:[%s173 + $0x190] sm:$0xff]
                %228 = vst [vmem:[%s174 + $0xd0] sm:$0xff] %v227
                %v229 = vld [vmem:[%s173 + $0x198] sm:$0xff]
                %230 = vst [vmem:[%s174 + $0xd8] sm:$0xff] %v229
                %v231 = vld [vmem:[%s173 + $0x1c0] sm:$0xff]
                %232 = vst [vmem:[%s174 + $0xe0] sm:$0xff] %v231
                %v233 = vld [vmem:[%s173 + $0x1c8] sm:$0xff]
                %234 = vst [vmem:[%s174 + $0xe8] sm:$0xff] %v233
                %v235 = vld [vmem:[%s173 + $0x1d0] sm:$0xff]
                %236 = vst [vmem:[%s174 + $0xf0] sm:$0xff] %v235
                %v237 = vld [vmem:[%s173 + $0x1d8] sm:$0xff]
                %238 = vst [vmem:[%s174 + $0xf8] sm:$0xff] %v237
                %v239 = vld [vmem:[%s173 + $0x200] sm:$0xff]
                %240 = vst [vmem:[%s174 + $0x100] sm:$0xff] %v239
                %v241 = vld [vmem:[%s173 + $0x208] sm:$0xff]
                %242 = vst [vmem:[%s174 + $0x108] sm:$0xff] %v241
                %v243 = vld [vmem:[%s173 + $0x210] sm:$0xff]
                %244 = vst [vmem:[%s174 + $0x110] sm:$0xff] %v243
                %v245 = vld [vmem:[%s173 + $0x218] sm:$0xff]
                %246 = vst [vmem:[%s174 + $0x118] sm:$0xff] %v245
                %v247 = vld [vmem:[%s173 + $0x240] sm:$0xff]
                %248 = vst [vmem:[%s174 + $0x120] sm:$0xff] %v247
                %v249 = vld [vmem:[%s173 + $0x248] sm:$0xff]
                %250 = vst [vmem:[%s174 + $0x128] sm:$0xff] %v249
                %v251 = vld [vmem:[%s173 + $0x250] sm:$0xff]
                %252 = vst [vmem:[%s174 + $0x130] sm:$0xff] %v251
                %v253 = vld [vmem:[%s173 + $0x258] sm:$0xff]
                %254 = vst [vmem:[%s174 + $0x138] sm:$0xff] %v253
                %v255 = vld [vmem:[%s173 + $0x280] sm:$0xff]
                %256 = vst [vmem:[%s174 + $0x140] sm:$0xff] %v255
                %v257 = vld [vmem:[%s173 + $0x288] sm:$0xff]
                %258 = vst [vmem:[%s174 + $0x148] sm:$0xff] %v257
                %v259 = vld [vmem:[%s173 + $0x290] sm:$0xff]
                %260 = vst [vmem:[%s174 + $0x150] sm:$0xff] %v259
                %v261 = vld [vmem:[%s173 + $0x298] sm:$0xff]
                %262 = vst [vmem:[%s174 + $0x158] sm:$0xff] %v261
                %v263 = vld [vmem:[%s173 + $0x2c0] sm:$0xff]
                %264 = vst [vmem:[%s174 + $0x160] sm:$0xff] %v263
                %v265 = vld [vmem:[%s173 + $0x2c8] sm:$0xff]
                %266 = vst [vmem:[%s174 + $0x168] sm:$0xff] %v265
                %v267 = vld [vmem:[%s173 + $0x2d0] sm:$0xff]
                %268 = vst [vmem:[%s174 + $0x170] sm:$0xff] %v267
                %v269 = vld [vmem:[%s173 + $0x2d8] sm:$0xff]
                %270 = vst [vmem:[%s174 + $0x178] sm:$0xff] %v269
                %v271 = vld [vmem:[%s173 + $0x300] sm:$0xff]
                %272 = vst [vmem:[%s174 + $0x180] sm:$0xff] %v271
                %v273 = vld [vmem:[%s173 + $0x308] sm:$0xff]
                %274 = vst [vmem:[%s174 + $0x188] sm:$0xff] %v273
                %v275 = vld [vmem:[%s173 + $0x310] sm:$0xff]
                %276 = vst [vmem:[%s174 + $0x190] sm:$0xff] %v275
                %v277 = vld [vmem:[%s173 + $0x318] sm:$0xff]
                %278 = vst [vmem:[%s174 + $0x198] sm:$0xff] %v277
                %v279 = vld [vmem:[%s173 + $0x340] sm:$0xff]
                %280 = vst [vmem:[%s174 + $0x1a0] sm:$0xff] %v279
                %v281 = vld [vmem:[%s173 + $0x348] sm:$0xff]
                %282 = vst [vmem:[%s174 + $0x1a8] sm:$0xff] %v281
                %v283 = vld [vmem:[%s173 + $0x350] sm:$0xff]
                %284 = vst [vmem:[%s174 + $0x1b0] sm:$0xff] %v283
                %v285 = vld [vmem:[%s173 + $0x358] sm:$0xff]
                %286 = vst [vmem:[%s174 + $0x1b8] sm:$0xff] %v285
                %v287 = vld [vmem:[%s173 + $0x380] sm:$0xff]
                %288 = vst [vmem:[%s174 + $0x1c0] sm:$0xff] %v287
                %v289 = vld [vmem:[%s173 + $0x388] sm:$0xff]
                %290 = vst [vmem:[%s174 + $0x1c8] sm:$0xff] %v289
                %v291 = vld [vmem:[%s173 + $0x390] sm:$0xff]
                %292 = vst [vmem:[%s174 + $0x1d0] sm:$0xff] %v291
                %v293 = vld [vmem:[%s173 + $0x398] sm:$0xff]
                %294 = vst [vmem:[%s174 + $0x1d8] sm:$0xff] %v293
                %v295 = vld [vmem:[%s173 + $0x3c0] sm:$0xff]
                %296 = vst [vmem:[%s174 + $0x1e0] sm:$0xff] %v295
                %v297 = vld [vmem:[%s173 + $0x3c8] sm:$0xff]
                %298 = vst [vmem:[%s174 + $0x1e8] sm:$0xff] %v297
                %v299 = vld [vmem:[%s173 + $0x3d0] sm:$0xff]
                %300 = vst [vmem:[%s174 + $0x1f0] sm:$0xff] %v299
                %v301 = vld [vmem:[%s173 + $0x3d8] sm:$0xff]
                %302 = vst [vmem:[%s174 + $0x1f8] sm:$0xff] %v301
                %v303 = vld [vmem:[%s173 + $0x400] sm:$0xff]
                %304 = vst [vmem:[%s174 + $0x200] sm:$0xff] %v303
                %v305 = vld [vmem:[%s173 + $0x408] sm:$0xff]
                %306 = vst [vmem:[%s174 + $0x208] sm:$0xff] %v305
                %v307 = vld [vmem:[%s173 + $0x410] sm:$0xff]
                %308 = vst [vmem:[%s174 + $0x210] sm:$0xff] %v307
                %v309 = vld [vmem:[%s173 + $0x418] sm:$0xff]
                %310 = vst [vmem:[%s174 + $0x218] sm:$0xff] %v309
                %v311 = vld [vmem:[%s173 + $0x440] sm:$0xff]
                %312 = vst [vmem:[%s174 + $0x220] sm:$0xff] %v311
                %v313 = vld [vmem:[%s173 + $0x448] sm:$0xff]
                %314 = vst [vmem:[%s174 + $0x228] sm:$0xff] %v313
                %v315 = vld [vmem:[%s173 + $0x450] sm:$0xff]
                %316 = vst [vmem:[%s174 + $0x230] sm:$0xff] %v315
                %v317 = vld [vmem:[%s173 + $0x458] sm:$0xff]
                %318 = vst [vmem:[%s174 + $0x238] sm:$0xff] %v317
                %v319 = vld [vmem:[%s173 + $0x480] sm:$0xff]
                %320 = vst [vmem:[%s174 + $0x240] sm:$0xff] %v319
                %v321 = vld [vmem:[%s173 + $0x488] sm:$0xff]
                %322 = vst [vmem:[%s174 + $0x248] sm:$0xff] %v321
                %v323 = vld [vmem:[%s173 + $0x490] sm:$0xff]
                %324 = vst [vmem:[%s174 + $0x250] sm:$0xff] %v323
                %v325 = vld [vmem:[%s173 + $0x498] sm:$0xff]
                %326 = vst [vmem:[%s174 + $0x258] sm:$0xff] %v325
                %v327 = vld [vmem:[%s173 + $0x4c0] sm:$0xff]
                %328 = vst [vmem:[%s174 + $0x260] sm:$0xff] %v327
                %v329 = vld [vmem:[%s173 + $0x4c8] sm:$0xff]
                %330 = vst [vmem:[%s174 + $0x268] sm:$0xff] %v329
                %v331 = vld [vmem:[%s173 + $0x4d0] sm:$0xff]
                %332 = vst [vmem:[%s174 + $0x270] sm:$0xff] %v331
                %v333 = vld [vmem:[%s173 + $0x4d8] sm:$0xff]
                %334 = vst [vmem:[%s174 + $0x278] sm:$0xff] %v333
                %v335 = vld [vmem:[%s173 + $0x500] sm:$0xff]
                %336 = vst [vmem:[%s174 + $0x280] sm:$0xff] %v335
                %v337 = vld [vmem:[%s173 + $0x508] sm:$0xff]
                %338 = vst [vmem:[%s174 + $0x288] sm:$0xff] %v337
                %v339 = vld [vmem:[%s173 + $0x510] sm:$0xff]
                %340 = vst [vmem:[%s174 + $0x290] sm:$0xff] %v339
                %v341 = vld [vmem:[%s173 + $0x518] sm:$0xff]
                %342 = vst [vmem:[%s174 + $0x298] sm:$0xff] %v341
                %v343 = vld [vmem:[%s173 + $0x540] sm:$0xff]
                %344 = vst [vmem:[%s174 + $0x2a0] sm:$0xff] %v343
                %v345 = vld [vmem:[%s173 + $0x548] sm:$0xff]
                %346 = vst [vmem:[%s174 + $0x2a8] sm:$0xff] %v345
                %v347 = vld [vmem:[%s173 + $0x550] sm:$0xff]
                %348 = vst [vmem:[%s174 + $0x2b0] sm:$0xff] %v347
                %v349 = vld [vmem:[%s173 + $0x558] sm:$0xff]
                %350 = vst [vmem:[%s174 + $0x2b8] sm:$0xff] %v349
                %v351 = vld [vmem:[%s173 + $0x580] sm:$0xff]
                %352 = vst [vmem:[%s174 + $0x2c0] sm:$0xff] %v351
                %v353 = vld [vmem:[%s173 + $0x588] sm:$0xff]
                %354 = vst [vmem:[%s174 + $0x2c8] sm:$0xff] %v353
                %v355 = vld [vmem:[%s173 + $0x590] sm:$0xff]
                %356 = vst [vmem:[%s174 + $0x2d0] sm:$0xff] %v355
                %v357 = vld [vmem:[%s173 + $0x598] sm:$0xff]
                %358 = vst [vmem:[%s174 + $0x2d8] sm:$0xff] %v357
                %v359 = vld [vmem:[%s173 + $0x5c0] sm:$0xff]
                %360 = vst [vmem:[%s174 + $0x2e0] sm:$0xff] %v359
                %v361 = vld [vmem:[%s173 + $0x5c8] sm:$0xff]
                %362 = vst [vmem:[%s174 + $0x2e8] sm:$0xff] %v361
                %v363 = vld [vmem:[%s173 + $0x5d0] sm:$0xff]
                %364 = vst [vmem:[%s174 + $0x2f0] sm:$0xff] %v363
                %v365 = vld [vmem:[%s173 + $0x5d8] sm:$0xff]
                %366 = vst [vmem:[%s174 + $0x2f8] sm:$0xff] %v365
                %v367 = vld [vmem:[%s173 + $0x600] sm:$0xff]
                %368 = vst [vmem:[%s174 + $0x300] sm:$0xff] %v367
                %v369 = vld [vmem:[%s173 + $0x608] sm:$0xff]
                %370 = vst [vmem:[%s174 + $0x308] sm:$0xff] %v369
                %v371 = vld [vmem:[%s173 + $0x610] sm:$0xff]
                %372 = vst [vmem:[%s174 + $0x310] sm:$0xff] %v371
                %v373 = vld [vmem:[%s173 + $0x618] sm:$0xff]
                %374 = vst [vmem:[%s174 + $0x318] sm:$0xff] %v373
                %v375 = vld [vmem:[%s173 + $0x640] sm:$0xff]
                %376 = vst [vmem:[%s174 + $0x320] sm:$0xff] %v375
                %v377 = vld [vmem:[%s173 + $0x648] sm:$0xff]
                %378 = vst [vmem:[%s174 + $0x328] sm:$0xff] %v377
                %v379 = vld [vmem:[%s173 + $0x650] sm:$0xff]
                %380 = vst [vmem:[%s174 + $0x330] sm:$0xff] %v379
                %v381 = vld [vmem:[%s173 + $0x658] sm:$0xff]
                %382 = vst [vmem:[%s174 + $0x338] sm:$0xff] %v381
                %v383 = vld [vmem:[%s173 + $0x680] sm:$0xff]
                %384 = vst [vmem:[%s174 + $0x340] sm:$0xff] %v383
                %v385 = vld [vmem:[%s173 + $0x688] sm:$0xff]
                %386 = vst [vmem:[%s174 + $0x348] sm:$0xff] %v385
                %v387 = vld [vmem:[%s173 + $0x690] sm:$0xff]
                %388 = vst [vmem:[%s174 + $0x350] sm:$0xff] %v387
                %v389 = vld [vmem:[%s173 + $0x698] sm:$0xff]
                %390 = vst [vmem:[%s174 + $0x358] sm:$0xff] %v389
                %v391 = vld [vmem:[%s173 + $0x6c0] sm:$0xff]
                %392 = vst [vmem:[%s174 + $0x360] sm:$0xff] %v391
                %v393 = vld [vmem:[%s173 + $0x6c8] sm:$0xff]
                %394 = vst [vmem:[%s174 + $0x368] sm:$0xff] %v393
                %v395 = vld [vmem:[%s173 + $0x6d0] sm:$0xff]
                %396 = vst [vmem:[%s174 + $0x370] sm:$0xff] %v395
                %v397 = vld [vmem:[%s173 + $0x6d8] sm:$0xff]
                %398 = vst [vmem:[%s174 + $0x378] sm:$0xff] %v397
                %v399 = vld [vmem:[%s173 + $0x700] sm:$0xff]
                %400 = vst [vmem:[%s174 + $0x380] sm:$0xff] %v399
                %v401 = vld [vmem:[%s173 + $0x708] sm:$0xff]
                %402 = vst [vmem:[%s174 + $0x388] sm:$0xff] %v401
                %v403 = vld [vmem:[%s173 + $0x710] sm:$0xff]
                %404 = vst [vmem:[%s174 + $0x390] sm:$0xff] %v403
                %v405 = vld [vmem:[%s173 + $0x718] sm:$0xff]
                %406 = vst [vmem:[%s174 + $0x398] sm:$0xff] %v405
                %v407 = vld [vmem:[%s173 + $0x740] sm:$0xff]
                %408 = vst [vmem:[%s174 + $0x3a0] sm:$0xff] %v407
                %v409 = vld [vmem:[%s173 + $0x748] sm:$0xff]
                %410 = vst [vmem:[%s174 + $0x3a8] sm:$0xff] %v409
                %v411 = vld [vmem:[%s173 + $0x750] sm:$0xff]
                %412 = vst [vmem:[%s174 + $0x3b0] sm:$0xff] %v411
                %v413 = vld [vmem:[%s173 + $0x758] sm:$0xff]
                %414 = vst [vmem:[%s174 + $0x3b8] sm:$0xff] %v413
                %v415 = vld [vmem:[%s173 + $0x780] sm:$0xff]
                %416 = vst [vmem:[%s174 + $0x3c0] sm:$0xff] %v415
                %v417 = vld [vmem:[%s173 + $0x788] sm:$0xff]
                %418 = vst [vmem:[%s174 + $0x3c8] sm:$0xff] %v417
                %v419 = vld [vmem:[%s173 + $0x790] sm:$0xff]
                %420 = vst [vmem:[%s174 + $0x3d0] sm:$0xff] %v419
                %v421 = vld [vmem:[%s173 + $0x798] sm:$0xff]
                %422 = vst [vmem:[%s174 + $0x3d8] sm:$0xff] %v421
                %v423 = vld [vmem:[%s173 + $0x7c0] sm:$0xff]
                %424 = vst [vmem:[%s174 + $0x3e0] sm:$0xff] %v423
                %v425 = vld [vmem:[%s173 + $0x7c8] sm:$0xff]
                %426 = vst [vmem:[%s174 + $0x3e8] sm:$0xff] %v425
                %v427 = vld [vmem:[%s173 + $0x7d0] sm:$0xff]
                %428 = vst [vmem:[%s174 + $0x3f0] sm:$0xff] %v427
                %v429 = vld [vmem:[%s173 + $0x7d8] sm:$0xff]
                %430 = vst [vmem:[%s174 + $0x3f8] sm:$0xff] %v429
              $region45: #{generator_sec_forward.6} parent=39 // loop_footer
                %s172 = sadd.s32 1, %s168
              $region46: #{generator_sec_forward.6} parent=39 // loop_footer_branch
                %167 = sbr.rel target = $region42
              $region47: #{generator_sec_forward.6} parent=39 // loop_exit
                _
            $region40: #{generator_sec_forward.6} parent=35 // pred_fallthru
              _
            // Predicated region
            $region48: #{generator_sec_forward.6} parent=35 // pred_check
              _
            $region49: #{generator_sec_forward.6} parent=35 // pred_check_branch
              %432 = sbr.rel target = $region51
            $region50: #{generator_sec_forward.6} parent=35 // pred_region
              _
            $region51: #{generator_sec_forward.6} parent=35 // pred_fallthru
              _
          $region36: #{generator_sec_forward.6} parent=31 // pred_fallthru
            _
          %433 = vnop
        $region32: #{generator_sec_forward.6} parent=27 // pred_fallthru
          _
      $region28: #{generator_sec_forward.6} parent=5 // pred_fallthru
        _
      %p434 = scmp.le.s32.totalorder 1, %s10
      %p435 = scmp.lt.s32.totalorder %s10, 3
      %p436 = pnand %p434, %p435
      %p437 = pneg %p436
      // Predicated region
      $region52: #{generator_sec_forward.6} parent=5 // pred_check
        _
      $region53: #{generator_sec_forward.6} parent=5 // pred_check_branch
        %439 = sbr.rel (%p436) target = $region55
      $region54: #{generator_sec_forward.6} parent=5 // pred_region
        %s440 = ssub.s32 %s10, 1
        %s441 = sand.u32 %s86, 1
        %s442 = sand.u32 %s86, 1
        %s443 = smul.addr %s442, 1024
        %s444 = scalar_lea.vmem [#allocation2], %s443
        // Predicated region
        $region56: #{generator_sec_forward.6} parent=54 // pred_check
          %p445 = pneg %p99
        $region57: #{generator_sec_forward.6} parent=54 // pred_check_branch
          %447 = sbr.rel (%p445) target = $region59
        $region58: #{generator_sec_forward.6} parent=54 // pred_region
          _
        $region59: #{generator_sec_forward.6} parent=54 // pred_fallthru
          _
        %p448 = pneg %p31
        %p449 = pneg %p28
        %p450 = pneg %p52
        %p451 = pneg %p49
        %p452 = pneg %p73
        %p453 = pneg %p70
        %s454 = sand.u32 %s86, 1
        %s455 = sand.u32 %s86, 1
        %s456 = smul.addr %s455, 1024
        %s457 = scalar_lea.vmem [#allocation2], %s456
        %p458 = pneg %p99
        %p459 = pneg %p96
        %p460 = pneg %p125
        %p461 = pneg %p122
        %s462 = sand.u32 %s112, 1
        %s463 = sand.u32 %s112, 1
        %s464 = smul.addr %s463, 256
        %s465 = scalar_lea.vmem [#allocation3], %s464
        %s466 = smul.u32 8, %s15
        %s467 = smul.u32 8, %s15
        %v468 = vld [vmem:[%s0] sm:$0xff]
        %v469 = vld [vmem:[%s0 + $0x8] sm:$0xff]
        %v470 = vld [vmem:[%s0 + $0x10] sm:$0xff]
        %v471 = vld [vmem:[%s0 + $0x18] sm:$0xff]
        %v472 = vld [vmem:[%s0 + $0x20] sm:$0xff]
        %v473 = vld [vmem:[%s0 + $0x28] sm:$0xff]
        %v474 = vld [vmem:[%s0 + $0x30] sm:$0xff]
        %v475 = vld [vmem:[%s0 + $0x38] sm:$0xff]
        %v476 = vadd.f32 %v468, %v470
        %v477 = vadd.f32 %v476, %v472
        %v478 = vadd.f32 %v477, %v474
        %v479 = vrot.slane %v478, 4
        %v480 = vadd.f32 %v478, %v479
        %v481 = vrot.slane %v480, 2
        %v482 = vadd.f32 %v480, %v481
        %v483 = vrot.slane %v482, 1
        %v484 = vadd.f32 %v482, %v483
        %v485 = vadd.f32 %v469, %v471
        %v486 = vadd.f32 %v485, %v473
        %v487 = vadd.f32 %v486, %v475
        %v488 = vrot.slane %v487, 4
        %v489 = vadd.f32 %v487, %v488
        %v490 = vrot.slane %v489, 2
        %v491 = vadd.f32 %v489, %v490
        %v492 = vrot.slane %v491, 1
        %v493 = vadd.f32 %v491, %v492
        %v494 = vrcp.pop 32.0
        %v495 = vmul.f32 %v484, %v494
        %v496 = vmul.f32 %v493, %v494
        %v497 = vsub.f32 %v468, %v495
        %v498 = vsub.f32 %v469, %v496
        %v499 = vsub.f32 %v470, %v495
        %v500 = vsub.f32 %v471, %v496
        %v501 = vsub.f32 %v472, %v495
        %v502 = vsub.f32 %v473, %v496
        %v503 = vsub.f32 %v474, %v495
        %v504 = vsub.f32 %v475, %v496
        %v505 = vmul.f32 %v497, %v497
        %v506 = vmul.f32 %v498, %v498
        %v507 = vmul.f32 %v499, %v499
        %v508 = vmul.f32 %v500, %v500
        %v509 = vmul.f32 %v501, %v501
        %v510 = vmul.f32 %v502, %v502
        %v511 = vmul.f32 %v503, %v503
        %v512 = vmul.f32 %v504, %v504
        %v513 = vadd.f32 %v505, %v507
        %v514 = vadd.f32 %v513, %v509
        %v515 = vadd.f32 %v514, %v511
        %v516 = vrot.slane %v515, 4
        %v517 = vadd.f32 %v515, %v516
        %v518 = vrot.slane %v517, 2
        %v519 = vadd.f32 %v517, %v518
        %v520 = vrot.slane %v519, 1
        %v521 = vadd.f32 %v519, %v520
        %v522 = vadd.f32 %v506, %v508
        %v523 = vadd.f32 %v522, %v510
        %v524 = vadd.f32 %v523, %v512
        %v525 = vrot.slane %v524, 4
        %v526 = vadd.f32 %v524, %v525
        %v527 = vrot.slane %v526, 2
        %v528 = vadd.f32 %v526, %v527
        %v529 = vrot.slane %v528, 1
        %v530 = vadd.f32 %v528, %v529
        %v531 = vmul.f32 %v521, %v494
        %v532 = vmul.f32 %v530, %v494
        %v533 = vadd.f32 %v531, 1e-05
        %v534 = vadd.f32 %v532, 1e-05
        %v535 = vrsqrt.pop %v533
        %v536 = vrsqrt.pop %v534
        %v537 = vmul.f32 %v497, %v535
        %v538 = vmul.f32 %v498, %v536
        %v539 = vmul.f32 %v499, %v535
        %v540 = vmul.f32 %v500, %v536
        %v541 = vmul.f32 %v501, %v535
        %v542 = vmul.f32 %v502, %v536
        %v543 = vmul.f32 %v503, %v535
        %v544 = vmul.f32 %v504, %v536
        %v545 = vld [vmem:[%s1] sm:$0x3]
        %v547 = vlaneseq
        %v548 = vshrl.u32 %v547, 7
        %v549 = vsub.s32 0, %v548
        %v550 = vrot.slane %v545, %v549
        %v551 = vlaneseq
        %v552 = vshrl.u32 %v551, 7
        %v553 = vsub.s32 1, %v552
        %v554 = vrot.slane %v545, %v553
        %v557 = vmul.f32 %v537, %v550
        %v558 = vmul.f32 %v538, %v554
        %v559 = vmul.f32 %v539, %v550
        %v560 = vmul.f32 %v540, %v554
        %v561 = vmul.f32 %v541, %v550
        %v562 = vmul.f32 %v542, %v554
        %v563 = vmul.f32 %v543, %v550
        %v564 = vmul.f32 %v544, %v554
        %v565 = vld [vmem:[%s2] sm:$0x3]
        %v567 = vlaneseq
        %v568 = vshrl.u32 %v567, 7
        %v569 = vsub.s32 0, %v568
        %v570 = vrot.slane %v565, %v569
        %v571 = vlaneseq
        %v572 = vshrl.u32 %v571, 7
        %v573 = vsub.s32 1, %v572
        %v574 = vrot.slane %v565, %v573
        %v577 = vadd.f32 %v557, %v570
        %v578 = vadd.f32 %v558, %v574
        %v579 = vadd.f32 %v559, %v570
        %v580 = vadd.f32 %v560, %v574
        %v581 = vadd.f32 %v561, %v570
        %v582 = vadd.f32 %v562, %v574
        %v583 = vadd.f32 %v563, %v570
        %v584 = vadd.f32 %v564, %v574
        %v585 = vmax.f32 %v577, 0.0
        %v586 = vmax.f32 %v578, 0.0
        %v587 = vmax.f32 %v579, 0.0
        %v588 = vmax.f32 %v580, 0.0
        %v589 = vmax.f32 %v581, 0.0
        %v590 = vmax.f32 %v582, 0.0
        %v591 = vmax.f32 %v583, 0.0
        %v592 = vmax.f32 %v584, 0.0
        %v593 = vpack.c.bf16 %v587, %v585
        %v594 = vpack.c.bf16 %v588, %v586
        %v595 = vpack.c.bf16 %v591, %v589
        %v596 = vpack.c.bf16 %v592, %v590
        %v597 = vld [vmem:[%s444] sm:$0xff]
        %v598 = vld [vmem:[%s444 + $0x8] sm:$0xff]
        %v599 = vld [vmem:[%s444 + $0x10] sm:$0xff]
        %v600 = vld [vmem:[%s444 + $0x18] sm:$0xff]
        %v601 = vld [vmem:[%s444 + $0x20] sm:$0xff]
        %v602 = vld [vmem:[%s444 + $0x28] sm:$0xff]
        %v603 = vld [vmem:[%s444 + $0x30] sm:$0xff]
        %v604 = vld [vmem:[%s444 + $0x38] sm:$0xff]
        %v605 = vld [vmem:[%s444 + $0x40] sm:$0xff]
        %v606 = vld [vmem:[%s444 + $0x48] sm:$0xff]
        %v607 = vld [vmem:[%s444 + $0x50] sm:$0xff]
        %v608 = vld [vmem:[%s444 + $0x58] sm:$0xff]
        %v609 = vld [vmem:[%s444 + $0x60] sm:$0xff]
        %v610 = vld [vmem:[%s444 + $0x68] sm:$0xff]
        %v611 = vld [vmem:[%s444 + $0x70] sm:$0xff]
        %v612 = vld [vmem:[%s444 + $0x78] sm:$0xff]
        %v613 = vld [vmem:[%s444 + $0x80] sm:$0xff]
        %v614 = vld [vmem:[%s444 + $0x88] sm:$0xff]
        %v615 = vld [vmem:[%s444 + $0x90] sm:$0xff]
        %v616 = vld [vmem:[%s444 + $0x98] sm:$0xff]
        %v617 = vld [vmem:[%s444 + $0xa0] sm:$0xff]
        %v618 = vld [vmem:[%s444 + $0xa8] sm:$0xff]
        %v619 = vld [vmem:[%s444 + $0xb0] sm:$0xff]
        %v620 = vld [vmem:[%s444 + $0xb8] sm:$0xff]
        %v621 = vld [vmem:[%s444 + $0xc0] sm:$0xff]
        %v622 = vld [vmem:[%s444 + $0xc8] sm:$0xff]
        %v623 = vld [vmem:[%s444 + $0xd0] sm:$0xff]
        %v624 = vld [vmem:[%s444 + $0xd8] sm:$0xff]
        %v625 = vld [vmem:[%s444 + $0xe0] sm:$0xff]
        %v626 = vld [vmem:[%s444 + $0xe8] sm:$0xff]
        %v627 = vld [vmem:[%s444 + $0xf0] sm:$0xff]
        %v628 = vld [vmem:[%s444 + $0xf8] sm:$0xff]
        %v629 = vld [vmem:[%s444 + $0x100] sm:$0xff]
        %v630 = vld [vmem:[%s444 + $0x108] sm:$0xff]
        %v631 = vld [vmem:[%s444 + $0x110] sm:$0xff]
        %v632 = vld [vmem:[%s444 + $0x118] sm:$0xff]
        %v633 = vld [vmem:[%s444 + $0x120] sm:$0xff]
        %v634 = vld [vmem:[%s444 + $0x128] sm:$0xff]
        %v635 = vld [vmem:[%s444 + $0x130] sm:$0xff]
        %v636 = vld [vmem:[%s444 + $0x138] sm:$0xff]
        %v637 = vld [vmem:[%s444 + $0x140] sm:$0xff]
        %v638 = vld [vmem:[%s444 + $0x148] sm:$0xff]
        %v639 = vld [vmem:[%s444 + $0x150] sm:$0xff]
        %v640 = vld [vmem:[%s444 + $0x158] sm:$0xff]
        %v641 = vld [vmem:[%s444 + $0x160] sm:$0xff]
        %v642 = vld [vmem:[%s444 + $0x168] sm:$0xff]
        %v643 = vld [vmem:[%s444 + $0x170] sm:$0xff]
        %v644 = vld [vmem:[%s444 + $0x178] sm:$0xff]
        %v645 = vld [vmem:[%s444 + $0x180] sm:$0xff]
        %v646 = vld [vmem:[%s444 + $0x188] sm:$0xff]
        %v647 = vld [vmem:[%s444 + $0x190] sm:$0xff]
        %v648 = vld [vmem:[%s444 + $0x198] sm:$0xff]
        %v649 = vld [vmem:[%s444 + $0x1a0] sm:$0xff]
        %v650 = vld [vmem:[%s444 + $0x1a8] sm:$0xff]
        %v651 = vld [vmem:[%s444 + $0x1b0] sm:$0xff]
        %v652 = vld [vmem:[%s444 + $0x1b8] sm:$0xff]
        %v653 = vld [vmem:[%s444 + $0x1c0] sm:$0xff]
        %v654 = vld [vmem:[%s444 + $0x1c8] sm:$0xff]
        %v655 = vld [vmem:[%s444 + $0x1d0] sm:$0xff]
        %v656 = vld [vmem:[%s444 + $0x1d8] sm:$0xff]
        %v657 = vld [vmem:[%s444 + $0x1e0] sm:$0xff]
        %v658 = vld [vmem:[%s444 + $0x1e8] sm:$0xff]
        %v659 = vld [vmem:[%s444 + $0x1f0] sm:$0xff]
        %v660 = vld [vmem:[%s444 + $0x1f8] sm:$0xff]
        %v661 = vld [vmem:[%s444 + $0x200] sm:$0xff]
        %v662 = vld [vmem:[%s444 + $0x208] sm:$0xff]
        %v663 = vld [vmem:[%s444 + $0x210] sm:$0xff]
        %v664 = vld [vmem:[%s444 + $0x218] sm:$0xff]
        %v665 = vld [vmem:[%s444 + $0x220] sm:$0xff]
        %v666 = vld [vmem:[%s444 + $0x228] sm:$0xff]
        %v667 = vld [vmem:[%s444 + $0x230] sm:$0xff]
        %v668 = vld [vmem:[%s444 + $0x238] sm:$0xff]
        %v669 = vld [vmem:[%s444 + $0x240] sm:$0xff]
        %v670 = vld [vmem:[%s444 + $0x248] sm:$0xff]
        %v671 = vld [vmem:[%s444 + $0x250] sm:$0xff]
        %v672 = vld [vmem:[%s444 + $0x258] sm:$0xff]
        %v673 = vld [vmem:[%s444 + $0x260] sm:$0xff]
        %v674 = vld [vmem:[%s444 + $0x268] sm:$0xff]
        %v675 = vld [vmem:[%s444 + $0x270] sm:$0xff]
        %v676 = vld [vmem:[%s444 + $0x278] sm:$0xff]
        %v677 = vld [vmem:[%s444 + $0x280] sm:$0xff]
        %v678 = vld [vmem:[%s444 + $0x288] sm:$0xff]
        %v679 = vld [vmem:[%s444 + $0x290] sm:$0xff]
        %v680 = vld [vmem:[%s444 + $0x298] sm:$0xff]
        %v681 = vld [vmem:[%s444 + $0x2a0] sm:$0xff]
        %v682 = vld [vmem:[%s444 + $0x2a8] sm:$0xff]
        %v683 = vld [vmem:[%s444 + $0x2b0] sm:$0xff]
        %v684 = vld [vmem:[%s444 + $0x2b8] sm:$0xff]
        %v685 = vld [vmem:[%s444 + $0x2c0] sm:$0xff]
        %v686 = vld [vmem:[%s444 + $0x2c8] sm:$0xff]
        %v687 = vld [vmem:[%s444 + $0x2d0] sm:$0xff]
        %v688 = vld [vmem:[%s444 + $0x2d8] sm:$0xff]
        %v689 = vld [vmem:[%s444 + $0x2e0] sm:$0xff]
        %v690 = vld [vmem:[%s444 + $0x2e8] sm:$0xff]
        %v691 = vld [vmem:[%s444 + $0x2f0] sm:$0xff]
        %v692 = vld [vmem:[%s444 + $0x2f8] sm:$0xff]
        %v693 = vld [vmem:[%s444 + $0x300] sm:$0xff]
        %v694 = vld [vmem:[%s444 + $0x308] sm:$0xff]
        %v695 = vld [vmem:[%s444 + $0x310] sm:$0xff]
        %v696 = vld [vmem:[%s444 + $0x318] sm:$0xff]
        %v697 = vld [vmem:[%s444 + $0x320] sm:$0xff]
        %v698 = vld [vmem:[%s444 + $0x328] sm:$0xff]
        %v699 = vld [vmem:[%s444 + $0x330] sm:$0xff]
        %v700 = vld [vmem:[%s444 + $0x338] sm:$0xff]
        %v701 = vld [vmem:[%s444 + $0x340] sm:$0xff]
        %v702 = vld [vmem:[%s444 + $0x348] sm:$0xff]
        %v703 = vld [vmem:[%s444 + $0x350] sm:$0xff]
        %v704 = vld [vmem:[%s444 + $0x358] sm:$0xff]
        %v705 = vld [vmem:[%s444 + $0x360] sm:$0xff]
        %v706 = vld [vmem:[%s444 + $0x368] sm:$0xff]
        %v707 = vld [vmem:[%s444 + $0x370] sm:$0xff]
        %v708 = vld [vmem:[%s444 + $0x378] sm:$0xff]
        %v709 = vld [vmem:[%s444 + $0x380] sm:$0xff]
        %v710 = vld [vmem:[%s444 + $0x388] sm:$0xff]
        %v711 = vld [vmem:[%s444 + $0x390] sm:$0xff]
        %v712 = vld [vmem:[%s444 + $0x398] sm:$0xff]
        %v713 = vld [vmem:[%s444 + $0x3a0] sm:$0xff]
        %v714 = vld [vmem:[%s444 + $0x3a8] sm:$0xff]
        %v715 = vld [vmem:[%s444 + $0x3b0] sm:$0xff]
        %v716 = vld [vmem:[%s444 + $0x3b8] sm:$0xff]
        %v717 = vld [vmem:[%s444 + $0x3c0] sm:$0xff]
        %v718 = vld [vmem:[%s444 + $0x3c8] sm:$0xff]
        %v719 = vld [vmem:[%s444 + $0x3d0] sm:$0xff]
        %v720 = vld [vmem:[%s444 + $0x3d8] sm:$0xff]
        %v721 = vld [vmem:[%s444 + $0x3e0] sm:$0xff]
        %v722 = vld [vmem:[%s444 + $0x3e8] sm:$0xff]
        %v723 = vld [vmem:[%s444 + $0x3f0] sm:$0xff]
        %v724 = vld [vmem:[%s444 + $0x3f8] sm:$0xff]
        %v853 = vunpack.c.l.b16 %v597
        %v854 = vunpack.c.h.b16 %v597
        %v855 = vunpack.c.l.b16 %v598
        %v856 = vunpack.c.h.b16 %v598
        %v857 = vunpack.c.l.b16 %v599
        %v858 = vunpack.c.h.b16 %v599
        %v859 = vunpack.c.l.b16 %v600
        %v860 = vunpack.c.h.b16 %v600
        %v861 = vunpack.c.l.b16 %v601
        %v862 = vunpack.c.h.b16 %v601
        %v863 = vunpack.c.l.b16 %v602
        %v864 = vunpack.c.h.b16 %v602
        %v865 = vunpack.c.l.b16 %v603
        %v866 = vunpack.c.h.b16 %v603
        %v867 = vunpack.c.l.b16 %v604
        %v868 = vunpack.c.h.b16 %v604
        %v869 = vunpack.c.l.b16 %v605
        %v870 = vunpack.c.h.b16 %v605
        %v871 = vunpack.c.l.b16 %v606
        %v872 = vunpack.c.h.b16 %v606
        %v873 = vunpack.c.l.b16 %v607
        %v874 = vunpack.c.h.b16 %v607
        %v875 = vunpack.c.l.b16 %v608
        %v876 = vunpack.c.h.b16 %v608
        %v877 = vunpack.c.l.b16 %v609
        %v878 = vunpack.c.h.b16 %v609
        %v879 = vunpack.c.l.b16 %v610
        %v880 = vunpack.c.h.b16 %v610
        %v881 = vunpack.c.l.b16 %v611
        %v882 = vunpack.c.h.b16 %v611
        %v883 = vunpack.c.l.b16 %v612
        %v884 = vunpack.c.h.b16 %v612
        %v885 = vunpack.c.l.b16 %v613
        %v886 = vunpack.c.h.b16 %v613
        %v887 = vunpack.c.l.b16 %v614
        %v888 = vunpack.c.h.b16 %v614
        %v889 = vunpack.c.l.b16 %v615
        %v890 = vunpack.c.h.b16 %v615
        %v891 = vunpack.c.l.b16 %v616
        %v892 = vunpack.c.h.b16 %v616
        %v893 = vunpack.c.l.b16 %v617
        %v894 = vunpack.c.h.b16 %v617
        %v895 = vunpack.c.l.b16 %v618
        %v896 = vunpack.c.h.b16 %v618
        %v897 = vunpack.c.l.b16 %v619
        %v898 = vunpack.c.h.b16 %v619
        %v899 = vunpack.c.l.b16 %v620
        %v900 = vunpack.c.h.b16 %v620
        %v901 = vunpack.c.l.b16 %v621
        %v902 = vunpack.c.h.b16 %v621
        %v903 = vunpack.c.l.b16 %v622
        %v904 = vunpack.c.h.b16 %v622
        %v905 = vunpack.c.l.b16 %v623
        %v906 = vunpack.c.h.b16 %v623
        %v907 = vunpack.c.l.b16 %v624
        %v908 = vunpack.c.h.b16 %v624
        %v909 = vunpack.c.l.b16 %v625
        %v910 = vunpack.c.h.b16 %v625
        %v911 = vunpack.c.l.b16 %v626
        %v912 = vunpack.c.h.b16 %v626
        %v913 = vunpack.c.l.b16 %v627
        %v914 = vunpack.c.h.b16 %v627
        %v915 = vunpack.c.l.b16 %v628
        %v916 = vunpack.c.h.b16 %v628
        %v917 = vunpack.c.l.b16 %v629
        %v918 = vunpack.c.h.b16 %v629
        %v919 = vunpack.c.l.b16 %v630
        %v920 = vunpack.c.h.b16 %v630
        %v921 = vunpack.c.l.b16 %v631
        %v922 = vunpack.c.h.b16 %v631
        %v923 = vunpack.c.l.b16 %v632
        %v924 = vunpack.c.h.b16 %v632
        %v925 = vunpack.c.l.b16 %v633
        %v926 = vunpack.c.h.b16 %v633
        %v927 = vunpack.c.l.b16 %v634
        %v928 = vunpack.c.h.b16 %v634
        %v929 = vunpack.c.l.b16 %v635
        %v930 = vunpack.c.h.b16 %v635
        %v931 = vunpack.c.l.b16 %v636
        %v932 = vunpack.c.h.b16 %v636
        %v933 = vunpack.c.l.b16 %v637
        %v934 = vunpack.c.h.b16 %v637
        %v935 = vunpack.c.l.b16 %v638
        %v936 = vunpack.c.h.b16 %v638
        %v937 = vunpack.c.l.b16 %v639
        %v938 = vunpack.c.h.b16 %v639
        %v939 = vunpack.c.l.b16 %v640
        %v940 = vunpack.c.h.b16 %v640
        %v941 = vunpack.c.l.b16 %v641
        %v942 = vunpack.c.h.b16 %v641
        %v943 = vunpack.c.l.b16 %v642
        %v944 = vunpack.c.h.b16 %v642
        %v945 = vunpack.c.l.b16 %v643
        %v946 = vunpack.c.h.b16 %v643
        %v947 = vunpack.c.l.b16 %v644
        %v948 = vunpack.c.h.b16 %v644
        %v949 = vunpack.c.l.b16 %v645
        %v950 = vunpack.c.h.b16 %v645
        %v951 = vunpack.c.l.b16 %v646
        %v952 = vunpack.c.h.b16 %v646
        %v953 = vunpack.c.l.b16 %v647
        %v954 = vunpack.c.h.b16 %v647
        %v955 = vunpack.c.l.b16 %v648
        %v956 = vunpack.c.h.b16 %v648
        %v957 = vunpack.c.l.b16 %v649
        %v958 = vunpack.c.h.b16 %v649
        %v959 = vunpack.c.l.b16 %v650
        %v960 = vunpack.c.h.b16 %v650
        %v961 = vunpack.c.l.b16 %v651
        %v962 = vunpack.c.h.b16 %v651
        %v963 = vunpack.c.l.b16 %v652
        %v964 = vunpack.c.h.b16 %v652
        %v965 = vunpack.c.l.b16 %v653
        %v966 = vunpack.c.h.b16 %v653
        %v967 = vunpack.c.l.b16 %v654
        %v968 = vunpack.c.h.b16 %v654
        %v969 = vunpack.c.l.b16 %v655
        %v970 = vunpack.c.h.b16 %v655
        %v971 = vunpack.c.l.b16 %v656
        %v972 = vunpack.c.h.b16 %v656
        %v973 = vunpack.c.l.b16 %v657
        %v974 = vunpack.c.h.b16 %v657
        %v975 = vunpack.c.l.b16 %v658
        %v976 = vunpack.c.h.b16 %v658
        %v977 = vunpack.c.l.b16 %v659
        %v978 = vunpack.c.h.b16 %v659
        %v979 = vunpack.c.l.b16 %v660
        %v980 = vunpack.c.h.b16 %v660
        %v981 = vunpack.c.l.b16 %v661
        %v982 = vunpack.c.h.b16 %v661
        %v983 = vunpack.c.l.b16 %v662
        %v984 = vunpack.c.h.b16 %v662
        %v985 = vunpack.c.l.b16 %v663
        %v986 = vunpack.c.h.b16 %v663
        %v987 = vunpack.c.l.b16 %v664
        %v988 = vunpack.c.h.b16 %v664
        %v989 = vunpack.c.l.b16 %v665
        %v990 = vunpack.c.h.b16 %v665
        %v991 = vunpack.c.l.b16 %v666
        %v992 = vunpack.c.h.b16 %v666
        %v993 = vunpack.c.l.b16 %v667
        %v994 = vunpack.c.h.b16 %v667
        %v995 = vunpack.c.l.b16 %v668
        %v996 = vunpack.c.h.b16 %v668
        %v997 = vunpack.c.l.b16 %v669
        %v998 = vunpack.c.h.b16 %v669
        %v999 = vunpack.c.l.b16 %v670
        %v1000 = vunpack.c.h.b16 %v670
        %v1001 = vunpack.c.l.b16 %v671
        %v1002 = vunpack.c.h.b16 %v671
        %v1003 = vunpack.c.l.b16 %v672
        %v1004 = vunpack.c.h.b16 %v672
        %v1005 = vunpack.c.l.b16 %v673
        %v1006 = vunpack.c.h.b16 %v673
        %v1007 = vunpack.c.l.b16 %v674
        %v1008 = vunpack.c.h.b16 %v674
        %v1009 = vunpack.c.l.b16 %v675
        %v1010 = vunpack.c.h.b16 %v675
        %v1011 = vunpack.c.l.b16 %v676
        %v1012 = vunpack.c.h.b16 %v676
        %v1013 = vunpack.c.l.b16 %v677
        %v1014 = vunpack.c.h.b16 %v677
        %v1015 = vunpack.c.l.b16 %v678
        %v1016 = vunpack.c.h.b16 %v678
        %v1017 = vunpack.c.l.b16 %v679
        %v1018 = vunpack.c.h.b16 %v679
        %v1019 = vunpack.c.l.b16 %v680
        %v1020 = vunpack.c.h.b16 %v680
        %v1021 = vunpack.c.l.b16 %v681
        %v1022 = vunpack.c.h.b16 %v681
        %v1023 = vunpack.c.l.b16 %v682
        %v1024 = vunpack.c.h.b16 %v682
        %v1025 = vunpack.c.l.b16 %v683
        %v1026 = vunpack.c.h.b16 %v683
        %v1027 = vunpack.c.l.b16 %v684
        %v1028 = vunpack.c.h.b16 %v684
        %v1029 = vunpack.c.l.b16 %v685
        %v1030 = vunpack.c.h.b16 %v685
        %v1031 = vunpack.c.l.b16 %v686
        %v1032 = vunpack.c.h.b16 %v686
        %v1033 = vunpack.c.l.b16 %v687
        %v1034 = vunpack.c.h.b16 %v687
        %v1035 = vunpack.c.l.b16 %v688
        %v1036 = vunpack.c.h.b16 %v688
        %v1037 = vunpack.c.l.b16 %v689
        %v1038 = vunpack.c.h.b16 %v689
        %v1039 = vunpack.c.l.b16 %v690
        %v1040 = vunpack.c.h.b16 %v690
        %v1041 = vunpack.c.l.b16 %v691
        %v1042 = vunpack.c.h.b16 %v691
        %v1043 = vunpack.c.l.b16 %v692
        %v1044 = vunpack.c.h.b16 %v692
        %v1045 = vunpack.c.l.b16 %v693
        %v1046 = vunpack.c.h.b16 %v693
        %v1047 = vunpack.c.l.b16 %v694
        %v1048 = vunpack.c.h.b16 %v694
        %v1049 = vunpack.c.l.b16 %v695
        %v1050 = vunpack.c.h.b16 %v695
        %v1051 = vunpack.c.l.b16 %v696
        %v1052 = vunpack.c.h.b16 %v696
        %v1053 = vunpack.c.l.b16 %v697
        %v1054 = vunpack.c.h.b16 %v697
        %v1055 = vunpack.c.l.b16 %v698
        %v1056 = vunpack.c.h.b16 %v698
        %v1057 = vunpack.c.l.b16 %v699
        %v1058 = vunpack.c.h.b16 %v699
        %v1059 = vunpack.c.l.b16 %v700
        %v1060 = vunpack.c.h.b16 %v700
        %v1061 = vunpack.c.l.b16 %v701
        %v1062 = vunpack.c.h.b16 %v701
        %v1063 = vunpack.c.l.b16 %v702
        %v1064 = vunpack.c.h.b16 %v702
        %v1065 = vunpack.c.l.b16 %v703
        %v1066 = vunpack.c.h.b16 %v703
        %v1067 = vunpack.c.l.b16 %v704
        %v1068 = vunpack.c.h.b16 %v704
        %v1069 = vunpack.c.l.b16 %v705
        %v1070 = vunpack.c.h.b16 %v705
        %v1071 = vunpack.c.l.b16 %v706
        %v1072 = vunpack.c.h.b16 %v706
        %v1073 = vunpack.c.l.b16 %v707
        %v1074 = vunpack.c.h.b16 %v707
        %v1075 = vunpack.c.l.b16 %v708
        %v1076 = vunpack.c.h.b16 %v708
        %v1077 = vunpack.c.l.b16 %v709
        %v1078 = vunpack.c.h.b16 %v709
        %v1079 = vunpack.c.l.b16 %v710
        %v1080 = vunpack.c.h.b16 %v710
        %v1081 = vunpack.c.l.b16 %v711
        %v1082 = vunpack.c.h.b16 %v711
        %v1083 = vunpack.c.l.b16 %v712
        %v1084 = vunpack.c.h.b16 %v712
        %v1085 = vunpack.c.l.b16 %v713
        %v1086 = vunpack.c.h.b16 %v713
        %v1087 = vunpack.c.l.b16 %v714
        %v1088 = vunpack.c.h.b16 %v714
        %v1089 = vunpack.c.l.b16 %v715
        %v1090 = vunpack.c.h.b16 %v715
        %v1091 = vunpack.c.l.b16 %v716
        %v1092 = vunpack.c.h.b16 %v716
        %v1093 = vunpack.c.l.b16 %v717
        %v1094 = vunpack.c.h.b16 %v717
        %v1095 = vunpack.c.l.b16 %v718
        %v1096 = vunpack.c.h.b16 %v718
        %v1097 = vunpack.c.l.b16 %v719
        %v1098 = vunpack.c.h.b16 %v719
        %v1099 = vunpack.c.l.b16 %v720
        %v1100 = vunpack.c.h.b16 %v720
        %v1101 = vunpack.c.l.b16 %v721
        %v1102 = vunpack.c.h.b16 %v721
        %v1103 = vunpack.c.l.b16 %v722
        %v1104 = vunpack.c.h.b16 %v722
        %v1105 = vunpack.c.l.b16 %v723
        %v1106 = vunpack.c.h.b16 %v723
        %v1107 = vunpack.c.l.b16 %v724
        %v1108 = vunpack.c.h.b16 %v724
        %v1109 = vpack.c.b16 %v861, %v853
        %v1110 = vpack.c.b16 %v862, %v854
        %v1111 = vpack.c.b16 %v863, %v855
        %v1112 = vpack.c.b16 %v864, %v856
        %v1113 = vpack.c.b16 %v865, %v857
        %v1114 = vpack.c.b16 %v866, %v858
        %v1115 = vpack.c.b16 %v867, %v859
        %v1116 = vpack.c.b16 %v868, %v860
        %v1117 = vpack.c.b16 %v877, %v869
        %v1118 = vpack.c.b16 %v878, %v870
        %v1119 = vpack.c.b16 %v879, %v871
        %v1120 = vpack.c.b16 %v880, %v872
        %v1121 = vpack.c.b16 %v881, %v873
        %v1122 = vpack.c.b16 %v882, %v874
        %v1123 = vpack.c.b16 %v883, %v875
        %v1124 = vpack.c.b16 %v884, %v876
        %v1125 = vpack.c.b16 %v893, %v885
        %v1126 = vpack.c.b16 %v894, %v886
        %v1127 = vpack.c.b16 %v895, %v887
        %v1128 = vpack.c.b16 %v896, %v888
        %v1129 = vpack.c.b16 %v897, %v889
        %v1130 = vpack.c.b16 %v898, %v890
        %v1131 = vpack.c.b16 %v899, %v891
        %v1132 = vpack.c.b16 %v900, %v892
        %v1133 = vpack.c.b16 %v909, %v901
        %v1134 = vpack.c.b16 %v910, %v902
        %v1135 = vpack.c.b16 %v911, %v903
        %v1136 = vpack.c.b16 %v912, %v904
        %v1137 = vpack.c.b16 %v913, %v905
        %v1138 = vpack.c.b16 %v914, %v906
        %v1139 = vpack.c.b16 %v915, %v907
        %v1140 = vpack.c.b16 %v916, %v908
        %v1141 = vpack.c.b16 %v925, %v917
        %v1142 = vpack.c.b16 %v926, %v918
        %v1143 = vpack.c.b16 %v927, %v919
        %v1144 = vpack.c.b16 %v928, %v920
        %v1145 = vpack.c.b16 %v929, %v921
        %v1146 = vpack.c.b16 %v930, %v922
        %v1147 = vpack.c.b16 %v931, %v923
        %v1148 = vpack.c.b16 %v932, %v924
        %v1149 = vpack.c.b16 %v941, %v933
        %v1150 = vpack.c.b16 %v942, %v934
        %v1151 = vpack.c.b16 %v943, %v935
        %v1152 = vpack.c.b16 %v944, %v936
        %v1153 = vpack.c.b16 %v945, %v937
        %v1154 = vpack.c.b16 %v946, %v938
        %v1155 = vpack.c.b16 %v947, %v939
        %v1156 = vpack.c.b16 %v948, %v940
        %v1157 = vpack.c.b16 %v957, %v949
        %v1158 = vpack.c.b16 %v958, %v950
        %v1159 = vpack.c.b16 %v959, %v951
        %v1160 = vpack.c.b16 %v960, %v952
        %v1161 = vpack.c.b16 %v961, %v953
        %v1162 = vpack.c.b16 %v962, %v954
        %v1163 = vpack.c.b16 %v963, %v955
        %v1164 = vpack.c.b16 %v964, %v956
        %v1165 = vpack.c.b16 %v973, %v965
        %v1166 = vpack.c.b16 %v974, %v966
        %v1167 = vpack.c.b16 %v975, %v967
        %v1168 = vpack.c.b16 %v976, %v968
        %v1169 = vpack.c.b16 %v977, %v969
        %v1170 = vpack.c.b16 %v978, %v970
        %v1171 = vpack.c.b16 %v979, %v971
        %v1172 = vpack.c.b16 %v980, %v972
        %v1173 = vpack.c.b16 %v989, %v981
        %v1174 = vpack.c.b16 %v990, %v982
        %v1175 = vpack.c.b16 %v991, %v983
        %v1176 = vpack.c.b16 %v992, %v984
        %v1177 = vpack.c.b16 %v993, %v985
        %v1178 = vpack.c.b16 %v994, %v986
        %v1179 = vpack.c.b16 %v995, %v987
        %v1180 = vpack.c.b16 %v996, %v988
        %v1181 = vpack.c.b16 %v1005, %v997
        %v1182 = vpack.c.b16 %v1006, %v998
        %v1183 = vpack.c.b16 %v1007, %v999
        %v1184 = vpack.c.b16 %v1008, %v1000
        %v1185 = vpack.c.b16 %v1009, %v1001
        %v1186 = vpack.c.b16 %v1010, %v1002
        %v1187 = vpack.c.b16 %v1011, %v1003
        %v1188 = vpack.c.b16 %v1012, %v1004
        %v1189 = vpack.c.b16 %v1021, %v1013
        %v1190 = vpack.c.b16 %v1022, %v1014
        %v1191 = vpack.c.b16 %v1023, %v1015
        %v1192 = vpack.c.b16 %v1024, %v1016
        %v1193 = vpack.c.b16 %v1025, %v1017
        %v1194 = vpack.c.b16 %v1026, %v1018
        %v1195 = vpack.c.b16 %v1027, %v1019
        %v1196 = vpack.c.b16 %v1028, %v1020
        %v1197 = vpack.c.b16 %v1037, %v1029
        %v1198 = vpack.c.b16 %v1038, %v1030
        %v1199 = vpack.c.b16 %v1039, %v1031
        %v1200 = vpack.c.b16 %v1040, %v1032
        %v1201 = vpack.c.b16 %v1041, %v1033
        %v1202 = vpack.c.b16 %v1042, %v1034
        %v1203 = vpack.c.b16 %v1043, %v1035
        %v1204 = vpack.c.b16 %v1044, %v1036
        %v1205 = vpack.c.b16 %v1053, %v1045
        %v1206 = vpack.c.b16 %v1054, %v1046
        %v1207 = vpack.c.b16 %v1055, %v1047
        %v1208 = vpack.c.b16 %v1056, %v1048
        %v1209 = vpack.c.b16 %v1057, %v1049
        %v1210 = vpack.c.b16 %v1058, %v1050
        %v1211 = vpack.c.b16 %v1059, %v1051
        %v1212 = vpack.c.b16 %v1060, %v1052
        %v1213 = vpack.c.b16 %v1069, %v1061
        %v1214 = vpack.c.b16 %v1070, %v1062
        %v1215 = vpack.c.b16 %v1071, %v1063
        %v1216 = vpack.c.b16 %v1072, %v1064
        %v1217 = vpack.c.b16 %v1073, %v1065
        %v1218 = vpack.c.b16 %v1074, %v1066
        %v1219 = vpack.c.b16 %v1075, %v1067
        %v1220 = vpack.c.b16 %v1076, %v1068
        %v1221 = vpack.c.b16 %v1085, %v1077
        %v1222 = vpack.c.b16 %v1086, %v1078
        %v1223 = vpack.c.b16 %v1087, %v1079
        %v1224 = vpack.c.b16 %v1088, %v1080
        %v1225 = vpack.c.b16 %v1089, %v1081
        %v1226 = vpack.c.b16 %v1090, %v1082
        %v1227 = vpack.c.b16 %v1091, %v1083
        %v1228 = vpack.c.b16 %v1092, %v1084
        %v1229 = vpack.c.b16 %v1101, %v1093
        %v1230 = vpack.c.b16 %v1102, %v1094
        %v1231 = vpack.c.b16 %v1103, %v1095
        %v1232 = vpack.c.b16 %v1104, %v1096
        %v1233 = vpack.c.b16 %v1105, %v1097
        %v1234 = vpack.c.b16 %v1106, %v1098
        %v1235 = vpack.c.b16 %v1107, %v1099
        %v1236 = vpack.c.b16 %v1108, %v1100
        %1365 = vmatprep.subr.bf16.mxu0 %v1110
        %1366 = vmatpush1.bf16.msra.mxu0 %v1109
        %1367 = vmatprep.subr.bf16.mxu0 %v1118
        %1368 = vmatpush1.bf16.msra.mxu0 %v1117
        %1369 = vmatprep.subr.bf16.mxu0 %v1126
        %1370 = vmatpush1.bf16.msra.mxu0 %v1125
        %1371 = vmatprep.subr.bf16.mxu0 %v1134
        %1372 = vmatpush1.bf16.msra.mxu0 %v1133
        %1373 = vmatprep.subr.bf16.mxu0 %v1142
        %1374 = vmatpush1.bf16.msra.mxu0 %v1141
        %1375 = vmatprep.subr.bf16.mxu0 %v1150
        %1376 = vmatpush1.bf16.msra.mxu0 %v1149
        %1377 = vmatprep.subr.bf16.mxu0 %v1158
        %1378 = vmatpush1.bf16.msra.mxu0 %v1157
        %1379 = vmatprep.subr.bf16.mxu0 %v1166
        %1380 = vmatpush1.bf16.msra.mxu0 %v1165
        %1381 = vmatprep.subr.bf16.mxu0 %v1174
        %1382 = vmatpush1.bf16.msra.mxu0 %v1173
        %1383 = vmatprep.subr.bf16.mxu0 %v1182
        %1384 = vmatpush1.bf16.msra.mxu0 %v1181
        %1385 = vmatprep.subr.bf16.mxu0 %v1190
        %1386 = vmatpush1.bf16.msra.mxu0 %v1189
        %1387 = vmatprep.subr.bf16.mxu0 %v1198
        %1388 = vmatpush1.bf16.msra.mxu0 %v1197
        %1389 = vmatprep.subr.bf16.mxu0 %v1206
        %1390 = vmatpush1.bf16.msra.mxu0 %v1205
        %1391 = vmatprep.subr.bf16.mxu0 %v1214
        %1392 = vmatpush1.bf16.msra.mxu0 %v1213
        %1393 = vmatprep.subr.bf16.mxu0 %v1222
        %1394 = vmatpush1.bf16.msra.mxu0 %v1221
        %1395 = vmatprep.subr.bf16.mxu0 %v1230
        %1396 = vmatpush1.bf16.msra.mxu0 %v1229
        %1397 = vmatprep.mubr.bf16.mxu0 %v594
        %1398 = vmatmul.mubr.bf16.gmra.mrb[0].mxu0 %v593
        %v1399 = vpop.f32.mrb[0].mxu0
        %v1400 = vadd.f32 0.0, %v1399
        %v1401 = vpop.f32.mrb[0].mxu0
        %v1402 = vadd.f32 0.0, %v1401
        %v1403 = vpop.f32.mrb[0].mxu0
        %v1404 = vadd.f32 0.0, %v1403
        %v1405 = vpop.f32.mrb[0].mxu0
        %v1406 = vadd.f32 0.0, %v1405
        %1407 = vmatprep.mubr.bf16.mxu0 %v596
        %1408 = vmatmul.mubr.bf16.gmra.mrb[0].mxu0 %v595
        %v1409 = vpop.f32.mrb[0].mxu0
        %v1410 = vadd.f32 0.0, %v1409
        %v1411 = vpop.f32.mrb[0].mxu0
        %v1412 = vadd.f32 0.0, %v1411
        %v1413 = vpop.f32.mrb[0].mxu0
        %v1414 = vadd.f32 0.0, %v1413
        %v1415 = vpop.f32.mrb[0].mxu0
        %v1416 = vadd.f32 0.0, %v1415
        %1417 = vdwg.mxu0
        %1418 = vmatprep.subr.bf16.mxu0 %v1112
        %1419 = vmatpush1.bf16.msra.mxu0 %v1111
        %1420 = vmatprep.subr.bf16.mxu0 %v1120
        %1421 = vmatpush1.bf16.msra.mxu0 %v1119
        %1422 = vmatprep.subr.bf16.mxu0 %v1128
        %1423 = vmatpush1.bf16.msra.mxu0 %v1127
        %1424 = vmatprep.subr.bf16.mxu0 %v1136
        %1425 = vmatpush1.bf16.msra.mxu0 %v1135
        %1426 = vmatprep.subr.bf16.mxu0 %v1144
        %1427 = vmatpush1.bf16.msra.mxu0 %v1143
        %1428 = vmatprep.subr.bf16.mxu0 %v1152
        %1429 = vmatpush1.bf16.msra.mxu0 %v1151
        %1430 = vmatprep.subr.bf16.mxu0 %v1160
        %1431 = vmatpush1.bf16.msra.mxu0 %v1159
        %1432 = vmatprep.subr.bf16.mxu0 %v1168
        %1433 = vmatpush1.bf16.msra.mxu0 %v1167
        %1434 = vmatprep.subr.bf16.mxu0 %v1176
        %1435 = vmatpush1.bf16.msra.mxu0 %v1175
        %1436 = vmatprep.subr.bf16.mxu0 %v1184
        %1437 = vmatpush1.bf16.msra.mxu0 %v1183
        %1438 = vmatprep.subr.bf16.mxu0 %v1192
        %1439 = vmatpush1.bf16.msra.mxu0 %v1191
        %1440 = vmatprep.subr.bf16.mxu0 %v1200
        %1441 = vmatpush1.bf16.msra.mxu0 %v1199
        %1442 = vmatprep.subr.bf16.mxu0 %v1208
        %1443 = vmatpush1.bf16.msra.mxu0 %v1207
        %1444 = vmatprep.subr.bf16.mxu0 %v1216
        %1445 = vmatpush1.bf16.msra.mxu0 %v1215
        %1446 = vmatprep.subr.bf16.mxu0 %v1224
        %1447 = vmatpush1.bf16.msra.mxu0 %v1223
        %1448 = vmatprep.subr.bf16.mxu0 %v1232
        %1449 = vmatpush1.bf16.msra.mxu0 %v1231
        %1450 = vmatprep.mubr.bf16.mxu0 %v594
        %1451 = vmatmul.mubr.bf16.gmra.mrb[0].mxu0 %v593
        %v1452 = vpop.f32.mrb[0].mxu0
        %v1453 = vadd.f32 0.0, %v1452
        %v1454 = vpop.f32.mrb[0].mxu0
        %v1455 = vadd.f32 0.0, %v1454
        %v1456 = vpop.f32.mrb[0].mxu0
        %v1457 = vadd.f32 0.0, %v1456
        %v1458 = vpop.f32.mrb[0].mxu0
        %v1459 = vadd.f32 0.0, %v1458
        %1460 = vmatprep.mubr.bf16.mxu0 %v596
        %1461 = vmatmul.mubr.bf16.gmra.mrb[0].mxu0 %v595
        %v1462 = vpop.f32.mrb[0].mxu0
        %v1463 = vadd.f32 0.0, %v1462
        %v1464 = vpop.f32.mrb[0].mxu0
        %v1465 = vadd.f32 0.0, %v1464
        %v1466 = vpop.f32.mrb[0].mxu0
        %v1467 = vadd.f32 0.0, %v1466
        %v1468 = vpop.f32.mrb[0].mxu0
        %v1469 = vadd.f32 0.0, %v1468
        %1470 = vdwg.mxu0
        %1471 = vmatprep.subr.bf16.mxu0 %v1114
        %1472 = vmatpush1.bf16.msra.mxu0 %v1113
        %1473 = vmatprep.subr.bf16.mxu0 %v1122
        %1474 = vmatpush1.bf16.msra.mxu0 %v1121
        %1475 = vmatprep.subr.bf16.mxu0 %v1130
        %1476 = vmatpush1.bf16.msra.mxu0 %v1129
        %1477 = vmatprep.subr.bf16.mxu0 %v1138
        %1478 = vmatpush1.bf16.msra.mxu0 %v1137
        %1479 = vmatprep.subr.bf16.mxu0 %v1146
        %1480 = vmatpush1.bf16.msra.mxu0 %v1145
        %1481 = vmatprep.subr.bf16.mxu0 %v1154
        %1482 = vmatpush1.bf16.msra.mxu0 %v1153
        %1483 = vmatprep.subr.bf16.mxu0 %v1162
        %1484 = vmatpush1.bf16.msra.mxu0 %v1161
        %1485 = vmatprep.subr.bf16.mxu0 %v1170
        %1486 = vmatpush1.bf16.msra.mxu0 %v1169
        %1487 = vmatprep.subr.bf16.mxu0 %v1178
        %1488 = vmatpush1.bf16.msra.mxu0 %v1177
        %1489 = vmatprep.subr.bf16.mxu0 %v1186
        %1490 = vmatpush1.bf16.msra.mxu0 %v1185
        %1491 = vmatprep.subr.bf16.mxu0 %v1194
        %1492 = vmatpush1.bf16.msra.mxu0 %v1193
        %1493 = vmatprep.subr.bf16.mxu0 %v1202
        %1494 = vmatpush1.bf16.msra.mxu0 %v1201
        %1495 = vmatprep.subr.bf16.mxu0 %v1210
        %1496 = vmatpush1.bf16.msra.mxu0 %v1209
        %1497 = vmatprep.subr.bf16.mxu0 %v1218
        %1498 = vmatpush1.bf16.msra.mxu0 %v1217
        %1499 = vmatprep.subr.bf16.mxu0 %v1226
        %1500 = vmatpush1.bf16.msra.mxu0 %v1225
        %1501 = vmatprep.subr.bf16.mxu0 %v1234
        %1502 = vmatpush1.bf16.msra.mxu0 %v1233
        %1503 = vmatprep.mubr.bf16.mxu0 %v594
        %1504 = vmatmul.mubr.bf16.gmra.mrb[0].mxu0 %v593
        %v1505 = vpop.f32.mrb[0].mxu0
        %v1506 = vadd.f32 0.0, %v1505
        %v1507 = vpop.f32.mrb[0].mxu0
        %v1508 = vadd.f32 0.0, %v1507
        %v1509 = vpop.f32.mrb[0].mxu0
        %v1510 = vadd.f32 0.0, %v1509
        %v1511 = vpop.f32.mrb[0].mxu0
        %v1512 = vadd.f32 0.0, %v1511
        %1513 = vmatprep.mubr.bf16.mxu0 %v596
        %1514 = vmatmul.mubr.bf16.gmra.mrb[0].mxu0 %v595
        %v1515 = vpop.f32.mrb[0].mxu0
        %v1516 = vadd.f32 0.0, %v1515
        %v1517 = vpop.f32.mrb[0].mxu0
        %v1518 = vadd.f32 0.0, %v1517
        %v1519 = vpop.f32.mrb[0].mxu0
        %v1520 = vadd.f32 0.0, %v1519
        %v1521 = vpop.f32.mrb[0].mxu0
        %v1522 = vadd.f32 0.0, %v1521
        %1523 = vdwg.mxu0
        %1524 = vmatprep.subr.bf16.mxu0 %v1116
        %1525 = vmatpush1.bf16.msra.mxu0 %v1115
        %1526 = vmatprep.subr.bf16.mxu0 %v1124
        %1527 = vmatpush1.bf16.msra.mxu0 %v1123
        %1528 = vmatprep.subr.bf16.mxu0 %v1132
        %1529 = vmatpush1.bf16.msra.mxu0 %v1131
        %1530 = vmatprep.subr.bf16.mxu0 %v1140
        %1531 = vmatpush1.bf16.msra.mxu0 %v1139
        %1532 = vmatprep.subr.bf16.mxu0 %v1148
        %1533 = vmatpush1.bf16.msra.mxu0 %v1147
        %1534 = vmatprep.subr.bf16.mxu0 %v1156
        %1535 = vmatpush1.bf16.msra.mxu0 %v1155
        %1536 = vmatprep.subr.bf16.mxu0 %v1164
        %1537 = vmatpush1.bf16.msra.mxu0 %v1163
        %1538 = vmatprep.subr.bf16.mxu0 %v1172
        %1539 = vmatpush1.bf16.msra.mxu0 %v1171
        %1540 = vmatprep.subr.bf16.mxu0 %v1180
        %1541 = vmatpush1.bf16.msra.mxu0 %v1179
        %1542 = vmatprep.subr.bf16.mxu0 %v1188
        %1543 = vmatpush1.bf16.msra.mxu0 %v1187
        %1544 = vmatprep.subr.bf16.mxu0 %v1196
        %1545 = vmatpush1.bf16.msra.mxu0 %v1195
        %1546 = vmatprep.subr.bf16.mxu0 %v1204
        %1547 = vmatpush1.bf16.msra.mxu0 %v1203
        %1548 = vmatprep.subr.bf16.mxu0 %v1212
        %1549 = vmatpush1.bf16.msra.mxu0 %v1211
        %1550 = vmatprep.subr.bf16.mxu0 %v1220
        %1551 = vmatpush1.bf16.msra.mxu0 %v1219
        %1552 = vmatprep.subr.bf16.mxu0 %v1228
        %1553 = vmatpush1.bf16.msra.mxu0 %v1227
        %1554 = vmatprep.subr.bf16.mxu0 %v1236
        %1555 = vmatpush1.bf16.msra.mxu0 %v1235
        %1556 = vmatprep.mubr.bf16.mxu0 %v594
        %1557 = vmatmul.mubr.bf16.gmra.mrb[0].mxu0 %v593
        %v1558 = vpop.f32.mrb[0].mxu0
        %v1559 = vadd.f32 0.0, %v1558
        %v1560 = vpop.f32.mrb[0].mxu0
        %v1561 = vadd.f32 0.0, %v1560
        %v1562 = vpop.f32.mrb[0].mxu0
        %v1563 = vadd.f32 0.0, %v1562
        %v1564 = vpop.f32.mrb[0].mxu0
        %v1565 = vadd.f32 0.0, %v1564
        %1566 = vmatprep.mubr.bf16.mxu0 %v596
        %1567 = vmatmul.mubr.bf16.gmra.mrb[0].mxu0 %v595
        %v1568 = vpop.f32.mrb[0].mxu0
        %v1569 = vadd.f32 0.0, %v1568
        %v1570 = vpop.f32.mrb[0].mxu0
        %v1571 = vadd.f32 0.0, %v1570
        %v1572 = vpop.f32.mrb[0].mxu0
        %v1573 = vadd.f32 0.0, %v1572
        %v1574 = vpop.f32.mrb[0].mxu0
        %v1575 = vadd.f32 0.0, %v1574
        %1576 = vdwg.mxu0
        %1577 = vst [vmem:[%s465] sm:$0xff] %v1400
        %1578 = vst [vmem:[%s465 + $0x8] sm:$0xff] %v1402
        %1579 = vst [vmem:[%s465 + $0x10] sm:$0xff] %v1453
        %1580 = vst [vmem:[%s465 + $0x18] sm:$0xff] %v1455
        %1581 = vst [vmem:[%s465 + $0x20] sm:$0xff] %v1506
        %1582 = vst [vmem:[%s465 + $0x28] sm:$0xff] %v1508
        %1583 = vst [vmem:[%s465 + $0x30] sm:$0xff] %v1559
        %1584 = vst [vmem:[%s465 + $0x38] sm:$0xff] %v1561
        %1585 = vst [vmem:[%s465 + $0x40] sm:$0xff] %v1404
        %1586 = vst [vmem:[%s465 + $0x48] sm:$0xff] %v1406
        %1587 = vst [vmem:[%s465 + $0x50] sm:$0xff] %v1457
        %1588 = vst [vmem:[%s465 + $0x58] sm:$0xff] %v1459
        %1589 = vst [vmem:[%s465 + $0x60] sm:$0xff] %v1510
        %1590 = vst [vmem:[%s465 + $0x68] sm:$0xff] %v1512
        %1591 = vst [vmem:[%s465 + $0x70] sm:$0xff] %v1563
        %1592 = vst [vmem:[%s465 + $0x78] sm:$0xff] %v1565
        %1593 = vst [vmem:[%s465 + $0x80] sm:$0xff] %v1410
        %1594 = vst [vmem:[%s465 + $0x88] sm:$0xff] %v1412
        %1595 = vst [vmem:[%s465 + $0x90] sm:$0xff] %v1463
        %1596 = vst [vmem:[%s465 + $0x98] sm:$0xff] %v1465
        %1597 = vst [vmem:[%s465 + $0xa0] sm:$0xff] %v1516
        %1598 = vst [vmem:[%s465 + $0xa8] sm:$0xff] %v1518
        %1599 = vst [vmem:[%s465 + $0xb0] sm:$0xff] %v1569
        %1600 = vst [vmem:[%s465 + $0xb8] sm:$0xff] %v1571
        %1601 = vst [vmem:[%s465 + $0xc0] sm:$0xff] %v1414
        %1602 = vst [vmem:[%s465 + $0xc8] sm:$0xff] %v1416
        %1603 = vst [vmem:[%s465 + $0xd0] sm:$0xff] %v1467
        %1604 = vst [vmem:[%s465 + $0xd8] sm:$0xff] %v1469
        %1605 = vst [vmem:[%s465 + $0xe0] sm:$0xff] %v1520
        %1606 = vst [vmem:[%s465 + $0xe8] sm:$0xff] %v1522
        %1607 = vst [vmem:[%s465 + $0xf0] sm:$0xff] %v1573
        %1608 = vst [vmem:[%s465 + $0xf8] sm:$0xff] %v1575
        %s1609 = sand.u32 %s112, 1
        %s1610 = sand.u32 %s112, 1
        %s1611 = smul.addr %s1610, 256
        %s1612 = scalar_lea.vmem [#allocation3], %s1611
        // Predicated region
        $region60: #{generator_sec_forward.6} parent=54 // pred_check
          %p1613 = pneg %p122
        $region61: #{generator_sec_forward.6} parent=54 // pred_check_branch
          %1615 = sbr.rel (%p1613) target = $region63
        $region62: #{generator_sec_forward.6} parent=54 // pred_region
          %s1616 = smul.u32 8, %s15
          %s1617 = smul.addr %s1616, 8
          %s1618 = scalar_lea.vmem %s4, %s1617
          // Predicated region
          $region64: #{generator_sec_forward.6} parent=62 // pred_check
            _
          $region65: #{generator_sec_forward.6} parent=62 // pred_check_branch
            %1620 = sbr.rel (0) target = $region67
          $region66: #{generator_sec_forward.6} parent=62 // pred_region
            // Predicated region
            $region68: #{generator_sec_forward.6} parent=66 // pred_check
              _
            $region69: #{generator_sec_forward.6} parent=66 // pred_check_branch
              %1622 = sbr.rel (0) target = $region71
            $region70: #{generator_sec_forward.6} parent=66 // pred_region
              loop: start=0, step=1, limit=1
              $region72: #{generator_sec_forward.6} parent=70 // loop_pre_header
                _
              $region73: #{generator_sec_forward.6} parent=70 // loop_header
                %s1624 = sphi 0, %s1628
                %p1625 = scmp.ge.s32.totalorder %s1624, 1
                %s1629 = sphi %s1612, %s1612
                %s1630 = sphi %s1618, %s1618
              $region74: #{generator_sec_forward.6} parent=70 // loop_header_branch
                %1627 = sbr.rel (%p1625) target = $region78
              $region75: #{generator_sec_forward.6} parent=70 // loop_body
                %v1631 = vld [vmem:[%s1629] sm:$0xff]
                %1632 = vst [vmem:[%s1630] sm:$0xff] %v1631
                %v1633 = vld [vmem:[%s1629 + $0x8] sm:$0xff]
                %1634 = vst [vmem:[%s1630 + $0x8] sm:$0xff] %v1633
                %v1635 = vld [vmem:[%s1629 + $0x10] sm:$0xff]
                %1636 = vst [vmem:[%s1630 + $0x10] sm:$0xff] %v1635
                %v1637 = vld [vmem:[%s1629 + $0x18] sm:$0xff]
                %1638 = vst [vmem:[%s1630 + $0x18] sm:$0xff] %v1637
                %v1639 = vld [vmem:[%s1629 + $0x20] sm:$0xff]
                %1640 = vst [vmem:[%s1630 + $0x20] sm:$0xff] %v1639
                %v1641 = vld [vmem:[%s1629 + $0x28] sm:$0xff]
                %1642 = vst [vmem:[%s1630 + $0x28] sm:$0xff] %v1641
                %v1643 = vld [vmem:[%s1629 + $0x30] sm:$0xff]
                %1644 = vst [vmem:[%s1630 + $0x30] sm:$0xff] %v1643
                %v1645 = vld [vmem:[%s1629 + $0x38] sm:$0xff]
                %1646 = vst [vmem:[%s1630 + $0x38] sm:$0xff] %v1645
                %v1647 = vld [vmem:[%s1629 + $0x40] sm:$0xff]
                %1648 = vst [vmem:[%s1630 + $0x80] sm:$0xff] %v1647
                %v1649 = vld [vmem:[%s1629 + $0x48] sm:$0xff]
                %1650 = vst [vmem:[%s1630 + $0x88] sm:$0xff] %v1649
                %v1651 = vld [vmem:[%s1629 + $0x50] sm:$0xff]
                %1652 = vst [vmem:[%s1630 + $0x90] sm:$0xff] %v1651
                %v1653 = vld [vmem:[%s1629 + $0x58] sm:$0xff]
                %1654 = vst [vmem:[%s1630 + $0x98] sm:$0xff] %v1653
                %v1655 = vld [vmem:[%s1629 + $0x60] sm:$0xff]
                %1656 = vst [vmem:[%s1630 + $0xa0] sm:$0xff] %v1655
                %v1657 = vld [vmem:[%s1629 + $0x68] sm:$0xff]
                %1658 = vst [vmem:[%s1630 + $0xa8] sm:$0xff] %v1657
                %v1659 = vld [vmem:[%s1629 + $0x70] sm:$0xff]
                %1660 = vst [vmem:[%s1630 + $0xb0] sm:$0xff] %v1659
                %v1661 = vld [vmem:[%s1629 + $0x78] sm:$0xff]
                %1662 = vst [vmem:[%s1630 + $0xb8] sm:$0xff] %v1661
                %v1663 = vld [vmem:[%s1629 + $0x80] sm:$0xff]
                %1664 = vst [vmem:[%s1630 + $0x100] sm:$0xff] %v1663
                %v1665 = vld [vmem:[%s1629 + $0x88] sm:$0xff]
                %1666 = vst [vmem:[%s1630 + $0x108] sm:$0xff] %v1665
                %v1667 = vld [vmem:[%s1629 + $0x90] sm:$0xff]
                %1668 = vst [vmem:[%s1630 + $0x110] sm:$0xff] %v1667
                %v1669 = vld [vmem:[%s1629 + $0x98] sm:$0xff]
                %1670 = vst [vmem:[%s1630 + $0x118] sm:$0xff] %v1669
                %v1671 = vld [vmem:[%s1629 + $0xa0] sm:$0xff]
                %1672 = vst [vmem:[%s1630 + $0x120] sm:$0xff] %v1671
                %v1673 = vld [vmem:[%s1629 + $0xa8] sm:$0xff]
                %1674 = vst [vmem:[%s1630 + $0x128] sm:$0xff] %v1673
                %v1675 = vld [vmem:[%s1629 + $0xb0] sm:$0xff]
                %1676 = vst [vmem:[%s1630 + $0x130] sm:$0xff] %v1675
                %v1677 = vld [vmem:[%s1629 + $0xb8] sm:$0xff]
                %1678 = vst [vmem:[%s1630 + $0x138] sm:$0xff] %v1677
                %v1679 = vld [vmem:[%s1629 + $0xc0] sm:$0xff]
                %1680 = vst [vmem:[%s1630 + $0x180] sm:$0xff] %v1679
                %v1681 = vld [vmem:[%s1629 + $0xc8] sm:$0xff]
                %1682 = vst [vmem:[%s1630 + $0x188] sm:$0xff] %v1681
                %v1683 = vld [vmem:[%s1629 + $0xd0] sm:$0xff]
                %1684 = vst [vmem:[%s1630 + $0x190] sm:$0xff] %v1683
                %v1685 = vld [vmem:[%s1629 + $0xd8] sm:$0xff]
                %1686 = vst [vmem:[%s1630 + $0x198] sm:$0xff] %v1685
                %v1687 = vld [vmem:[%s1629 + $0xe0] sm:$0xff]
                %1688 = vst [vmem:[%s1630 + $0x1a0] sm:$0xff] %v1687
                %v1689 = vld [vmem:[%s1629 + $0xe8] sm:$0xff]
                %1690 = vst [vmem:[%s1630 + $0x1a8] sm:$0xff] %v1689
                %v1691 = vld [vmem:[%s1629 + $0xf0] sm:$0xff]
                %1692 = vst [vmem:[%s1630 + $0x1b0] sm:$0xff] %v1691
                %v1693 = vld [vmem:[%s1629 + $0xf8] sm:$0xff]
                %1694 = vst [vmem:[%s1630 + $0x1b8] sm:$0xff] %v1693
              $region76: #{generator_sec_forward.6} parent=70 // loop_footer
                %s1628 = sadd.s32 1, %s1624
              $region77: #{generator_sec_forward.6} parent=70 // loop_footer_branch
                %1623 = sbr.rel target = $region73
              $region78: #{generator_sec_forward.6} parent=70 // loop_exit
                _
            $region71: #{generator_sec_forward.6} parent=66 // pred_fallthru
              _
            // Predicated region
            $region79: #{generator_sec_forward.6} parent=66 // pred_check
              _
            $region80: #{generator_sec_forward.6} parent=66 // pred_check_branch
              %1696 = sbr.rel target = $region82
            $region81: #{generator_sec_forward.6} parent=66 // pred_region
              _
            $region82: #{generator_sec_forward.6} parent=66 // pred_fallthru
              _
          $region67: #{generator_sec_forward.6} parent=62 // pred_fallthru
            _
          %1697 = vnop
        $region63: #{generator_sec_forward.6} parent=54 // pred_fallthru
          _
      $region55: #{generator_sec_forward.6} parent=5 // pred_fallthru
        _
      %p1698 = scmp.le.s32.totalorder 2, %s10
      // Predicated region
      $region83: #{generator_sec_forward.6} parent=5 // pred_check
        %p1699 = pneg %p1698
      $region84: #{generator_sec_forward.6} parent=5 // pred_check_branch
        %1701 = sbr.rel (%p1699) target = $region86
      $region85: #{generator_sec_forward.6} parent=5 // pred_region
        %s1702 = ssub.s32 %s10, 2
        // Predicated region
        $region87: #{generator_sec_forward.6} parent=85 // pred_check
          %p1703 = pneg %p128
        $region88: #{generator_sec_forward.6} parent=85 // pred_check_branch
          %1705 = sbr.rel (%p1703) target = $region90
        $region89: #{generator_sec_forward.6} parent=85 // pred_region
          %s1706 = sand.u32 %s113, 1
          %s1707 = sand.u32 %s113, 1
          %s1708 = smul.addr %s1707, 256
          %s1709 = scalar_lea.vmem [#allocation3], %s1708
        $region90: #{generator_sec_forward.6} parent=85 // pred_fallthru
          _
      $region86: #{generator_sec_forward.6} parent=5 // pred_fallthru
        _
    $region6: #{generator_sec_forward.6} parent=1 // loop_footer
      %s14 = sadd.s32 1, %s10
    $region7: #{generator_sec_forward.6} parent=1 // loop_footer_branch
      %9 = sbr.rel target = $region3
    $region8: #{generator_sec_forward.6} parent=1 // loop_exit
      _

// kernel: generator_sec_forward.7
$region0: #{generator_sec_forward.7}
  #allocation0 [shape = 'u32[]', space=smem, size = 0x4, offset = 0x4, fixed_abs, tag = 'smem constant byte address 0x4 - core index']
  #allocation1 [shape = 'u32[144,128]{1,0:T(1,128)}', space=vmem, size = 0x12000, scoped, tag = 'internal scratch']
  %s0 = inlined_call_operand.vmem [shape: f32[128,128], index: 0, kind: input, shape index: {}]
  %s1 = inlined_call_operand.vmem [shape: f32[1,128], index: 1, kind: input, shape index: {}]
  %s2 = inlined_call_operand.vmem [shape: f32[1,128], index: 2, kind: input, shape index: {}]
  %s3 = inlined_call_operand.vmem [shape: bf16[128,1024], index: 3, kind: input, shape index: {}]
  %s4 = inlined_call_operand.vmem [shape: f32[128,1024], index: 4, kind: output, shape index: {}]
  %s5 = sld [smem:[#allocation0]]
  $region91: #{generator_sec_forward.7} parent=0
    _
  %s7 = ssub.s32 1, %s5
  %s8 = scalar_select 0, %s7, %s5
  $region1: #{generator_sec_forward.7} parent=0
    #allocation2 [shape = 'u8[262144]{0}', space=vmem, size = 0x40000, scoped, tag = 'input window, operand 3']
    #allocation3 [shape = 'u8[524288]{0}', space=vmem, size = 0x80000, scoped, tag = 'output window, operand 0']
    loop: start=0, step=1, limit=4
    $region2: #{generator_sec_forward.7} parent=1 // loop_pre_header
      _
    $region3: #{generator_sec_forward.7} parent=1 // loop_header
      %s10 = sphi 0, %s14
      %p11 = scmp.ge.s32.totalorder %s10, 4
      %s18 = sphi 0, %s18
      %s20 = sphi 0, %s18
      %s21 = sphi 0, %s20
      %s35 = sphi 0, %s21
      %s39 = sphi 0, %s39
      %s41 = sphi 0, %s39
      %s42 = sphi 0, %s41
      %s56 = sphi 0, %s42
      %s60 = sphi 0, %s60
      %s62 = sphi 0, %s60
      %s63 = sphi 0, %s62
      %s77 = sphi 0, %s63
      %s83 = sphi 0, %s85
      %s86 = sphi 0, %s83
      %s87 = sphi 0, %s86
      %s103 = sphi 0, %s87
      %s109 = sphi 0, %s111
      %s112 = sphi 0, %s109
      %s113 = sphi 0, %s112
      %s129 = sphi 0, %s113
    $region4: #{generator_sec_forward.7} parent=1 // loop_header_branch
      %13 = sbr.rel (%p11) target = $region8
    $region5: #{generator_sec_forward.7} parent=1 // loop_body
      %s15 = ssub.s32 %s10, 1
      %s16 = ssub.s32 %s10, 2
      %s17 = sadd.s32 %s10, 1
      %s19 = sadd.s32 %s18, 1
      %p22 = scmp.eq.s32.totalorder %s10, 1
      %p23 = scmp.ne.s32.totalorder %s18, %s20
      %p24 = scmp.eq.s32.totalorder %s10, 0
      %p25 = por %p23, %p24
      %p26 = scmp.ne.s32.totalorder %s18, %s20
      %p27 = scmp.eq.s32.totalorder %s15, 1
      %p28 = por %p26, %p27
      %p29 = scmp.ne.s32.totalorder %s20, %s21
      %p30 = scmp.eq.s32.totalorder %s15, 0
      %p31 = por %p29, %p30
      %p32 = scmp.ne.s32.totalorder %s20, %s21
      %p33 = scmp.eq.s32.totalorder %s16, 1
      %p34 = por %p32, %p33
      %p36 = scmp.ne.s32.totalorder %s21, %s35
      %p37 = scmp.eq.s32.totalorder %s16, 0
      %p38 = por %p36, %p37
      %s40 = sadd.s32 %s39, 1
      %p43 = scmp.eq.s32.totalorder %s10, 1
      %p44 = scmp.ne.s32.totalorder %s39, %s41
      %p45 = scmp.eq.s32.totalorder %s10, 0
      %p46 = por %p44, %p45
      %p47 = scmp.ne.s32.totalorder %s39, %s41
      %p48 = scmp.eq.s32.totalorder %s15, 1
      %p49 = por %p47, %p48
      %p50 = scmp.ne.s32.totalorder %s41, %s42
      %p51 = scmp.eq.s32.totalorder %s15, 0
      %p52 = por %p50, %p51
      %p53 = scmp.ne.s32.totalorder %s41, %s42
      %p54 = scmp.eq.s32.totalorder %s16, 1
      %p55 = por %p53, %p54
      %p57 = scmp.ne.s32.totalorder %s42, %s56
      %p58 = scmp.eq.s32.totalorder %s16, 0
      %p59 = por %p57, %p58
      %s61 = sadd.s32 %s60, 1
      %p64 = scmp.eq.s32.totalorder %s10, 1
      %p65 = scmp.ne.s32.totalorder %s60, %s62
      %p66 = scmp.eq.s32.totalorder %s10, 0
      %p67 = por %p65, %p66
      %p68 = scmp.ne.s32.totalorder %s60, %s62
      %p69 = scmp.eq.s32.totalorder %s15, 1
      %p70 = por %p68, %p69
      %p71 = scmp.ne.s32.totalorder %s62, %s63
      %p72 = scmp.eq.s32.totalorder %s15, 0
      %p73 = por %p71, %p72
      %p74 = scmp.ne.s32.totalorder %s62, %s63
      %p75 = scmp.eq.s32.totalorder %s16, 1
      %p76 = por %p74, %p75
      %p78 = scmp.ne.s32.totalorder %s63, %s77
      %p79 = scmp.eq.s32.totalorder %s16, 0
      %p80 = por %p78, %p79
      %s81 = ssub.s32 %s10, %s17
      %p82 = scmp.eq.s32.totalorder %s81, 0
      %s84 = sadd.s32 %s83, 1
      %s85 = scalar_select %p82, %s83, %s84
      %p88 = pneg %p82
      %p89 = scmp.eq.s32.totalorder %s10, 1
      %p90 = por %p88, %p89
      %p91 = scmp.ne.s32.totalorder %s83, %s86
      %p92 = scmp.eq.s32.totalorder %s10, 0
      %p93 = por %p91, %p92
      %p94 = scmp.ne.s32.totalorder %s83, %s86
      %p95 = scmp.eq.s32.totalorder %s15, 1
      %p96 = por %p94, %p95
      %p97 = scmp.ne.s32.totalorder %s86, %s87
      %p98 = scmp.eq.s32.totalorder %s15, 0
      %p99 = por %p97, %p98
      %p100 = scmp.ne.s32.totalorder %s86, %s87
      %p101 = scmp.eq.s32.totalorder %s16, 1
      %p102 = por %p100, %p101
      %p104 = scmp.ne.s32.totalorder %s87, %s103
      %p105 = scmp.eq.s32.totalorder %s16, 0
      %p106 = por %p104, %p105
      %s107 = ssub.s32 %s10, %s17
      %p108 = scmp.eq.s32.totalorder %s107, 0
      %s110 = sadd.s32 %s109, 1
      %s111 = scalar_select %p108, %s109, %s110
      %p114 = pneg %p108
      %p115 = scmp.eq.s32.totalorder %s10, 1
      %p116 = por %p114, %p115
      %p117 = scmp.ne.s32.totalorder %s109, %s112
      %p118 = scmp.eq.s32.totalorder %s10, 0
      %p119 = por %p117, %p118
      %p120 = scmp.ne.s32.totalorder %s109, %s112
      %p121 = scmp.eq.s32.totalorder %s15, 1
      %p122 = por %p120, %p121
      %p123 = scmp.ne.s32.totalorder %s112, %s113
      %p124 = scmp.eq.s32.totalorder %s15, 0
      %p125 = por %p123, %p124
      %p126 = scmp.ne.s32.totalorder %s112, %s113
      %p127 = scmp.eq.s32.totalorder %s16, 1
      %p128 = por %p126, %p127
      %p130 = scmp.ne.s32.totalorder %s113, %s129
      %p131 = scmp.eq.s32.totalorder %s16, 0
      %p132 = por %p130, %p131
      %p133 = scmp.le.s32.totalorder 1, %s10
      %p134 = scmp.lt.s32.totalorder %s10, 3
      %p135 = pnand %p133, %p134
      %p136 = pneg %p135
      // Predicated region
      $region9: #{generator_sec_forward.7} parent=5 // pred_check
        _
      $region10: #{generator_sec_forward.7} parent=5 // pred_check_branch
        %138 = sbr.rel (%p135) target = $region12
      $region11: #{generator_sec_forward.7} parent=5 // pred_region
        %s139 = ssub.s32 %s10, 1
        // Predicated region
        $region13: #{generator_sec_forward.7} parent=11 // pred_check
          %p140 = pneg %p31
        $region14: #{generator_sec_forward.7} parent=11 // pred_check_branch
          %142 = sbr.rel (%p140) target = $region16
        $region15: #{generator_sec_forward.7} parent=11 // pred_region
          _
        $region16: #{generator_sec_forward.7} parent=11 // pred_fallthru
          _
        // Predicated region
        $region17: #{generator_sec_forward.7} parent=11 // pred_check
          %p143 = pneg %p52
        $region18: #{generator_sec_forward.7} parent=11 // pred_check_branch
          %145 = sbr.rel (%p143) target = $region20
        $region19: #{generator_sec_forward.7} parent=11 // pred_region
          _
        $region20: #{generator_sec_forward.7} parent=11 // pred_fallthru
          _
        // Predicated region
        $region21: #{generator_sec_forward.7} parent=11 // pred_check
          %p146 = pneg %p73
        $region22: #{generator_sec_forward.7} parent=11 // pred_check_branch
          %148 = sbr.rel (%p146) target = $region24
        $region23: #{generator_sec_forward.7} parent=11 // pred_region
          _
        $region24: #{generator_sec_forward.7} parent=11 // pred_fallthru
          _
      $region12: #{generator_sec_forward.7} parent=5 // pred_fallthru
        _
      %p149 = scmp.lt.s32.totalorder %s10, 2
      // Predicated region
      $region25: #{generator_sec_forward.7} parent=5 // pred_check
        %p150 = pneg %p149
      $region26: #{generator_sec_forward.7} parent=5 // pred_check_branch
        %152 = sbr.rel (%p150) target = $region28
      $region27: #{generator_sec_forward.7} parent=5 // pred_region
        // Predicated region
        $region29: #{generator_sec_forward.7} parent=27 // pred_check
          %p153 = pneg %p93
        $region30: #{generator_sec_forward.7} parent=27 // pred_check_branch
          %155 = sbr.rel (%p153) target = $region32
        $region31: #{generator_sec_forward.7} parent=27 // pred_region
          %s156 = sand.u32 %s83, 1
          %s157 = sand.u32 %s83, 1
          %s158 = smul.addr %s157, 256
          %s159 = scalar_lea.vmem [#allocation2], %s158
          %s160 = smul.u32 4, %s10
          %s161 = smul.addr %s160, 4
          %s162 = scalar_lea.vmem %s3, %s161
          // Predicated region
          $region33: #{generator_sec_forward.7} parent=31 // pred_check
            _
          $region34: #{generator_sec_forward.7} parent=31 // pred_check_branch
            %164 = sbr.rel (0) target = $region36
          $region35: #{generator_sec_forward.7} parent=31 // pred_region
            // Predicated region
            $region37: #{generator_sec_forward.7} parent=35 // pred_check
              _
            $region38: #{generator_sec_forward.7} parent=35 // pred_check_branch
              %166 = sbr.rel (0) target = $region40
            $region39: #{generator_sec_forward.7} parent=35 // pred_region
              loop: start=0, step=1, limit=1
              $region41: #{generator_sec_forward.7} parent=39 // loop_pre_header
                _
              $region42: #{generator_sec_forward.7} parent=39 // loop_header
                %s168 = sphi 0, %s172
                %p169 = scmp.ge.s32.totalorder %s168, 1
                %s173 = sphi %s162, %s162
                %s174 = sphi %s159, %s159
              $region43: #{generator_sec_forward.7} parent=39 // loop_header_branch
                %171 = sbr.rel (%p169) target = $region47
              $region44: #{generator_sec_forward.7} parent=39 // loop_body
                %v175 = vld [vmem:[%s173] sm:$0xff]
                %176 = vst [vmem:[%s174] sm:$0xff] %v175
                %v177 = vld [vmem:[%s173 + $0x8] sm:$0xff]
                %178 = vst [vmem:[%s174 + $0x8] sm:$0xff] %v177
                %v179 = vld [vmem:[%s173 + $0x20] sm:$0xff]
                %180 = vst [vmem:[%s174 + $0x10] sm:$0xff] %v179
                %v181 = vld [vmem:[%s173 + $0x28] sm:$0xff]
                %182 = vst [vmem:[%s174 + $0x18] sm:$0xff] %v181
                %v183 = vld [vmem:[%s173 + $0x40] sm:$0xff]
                %184 = vst [vmem:[%s174 + $0x20] sm:$0xff] %v183
                %v185 = vld [vmem:[%s173 + $0x48] sm:$0xff]
                %186 = vst [vmem:[%s174 + $0x28] sm:$0xff] %v185
                %v187 = vld [vmem:[%s173 + $0x60] sm:$0xff]
                %188 = vst [vmem:[%s174 + $0x30] sm:$0xff] %v187
                %v189 = vld [vmem:[%s173 + $0x68] sm:$0xff]
                %190 = vst [vmem:[%s174 + $0x38] sm:$0xff] %v189
                %v191 = vld [vmem:[%s173 + $0x80] sm:$0xff]
                %192 = vst [vmem:[%s174 + $0x40] sm:$0xff] %v191
                %v193 = vld [vmem:[%s173 + $0x88] sm:$0xff]
                %194 = vst [vmem:[%s174 + $0x48] sm:$0xff] %v193
                %v195 = vld [vmem:[%s173 + $0xa0] sm:$0xff]
                %196 = vst [vmem:[%s174 + $0x50] sm:$0xff] %v195
                %v197 = vld [vmem:[%s173 + $0xa8] sm:$0xff]
                %198 = vst [vmem:[%s174 + $0x58] sm:$0xff] %v197
                %v199 = vld [vmem:[%s173 + $0xc0] sm:$0xff]
                %200 = vst [vmem:[%s174 + $0x60] sm:$0xff] %v199
                %v201 = vld [vmem:[%s173 + $0xc8] sm:$0xff]
                %202 = vst [vmem:[%s174 + $0x68] sm:$0xff] %v201
                %v203 = vld [vmem:[%s173 + $0xe0] sm:$0xff]
                %204 = vst [vmem:[%s174 + $0x70] sm:$0xff] %v203
                %v205 = vld [vmem:[%s173 + $0xe8] sm:$0xff]
                %206 = vst [vmem:[%s174 + $0x78] sm:$0xff] %v205
                %v207 = vld [vmem:[%s173 + $0x100] sm:$0xff]
                %208 = vst [vmem:[%s174 + $0x80] sm:$0xff] %v207
                %v209 = vld [vmem:[%s173 + $0x108] sm:$0xff]
                %210 = vst [vmem:[%s174 + $0x88] sm:$0xff] %v209
                %v211 = vld [vmem:[%s173 + $0x120] sm:$0xff]
                %212 = vst [vmem:[%s174 + $0x90] sm:$0xff] %v211
                %v213 = vld [vmem:[%s173 + $0x128] sm:$0xff]
                %214 = vst [vmem:[%s174 + $0x98] sm:$0xff] %v213
                %v215 = vld [vmem:[%s173 + $0x140] sm:$0xff]
                %216 = vst [vmem:[%s174 + $0xa0] sm:$0xff] %v215
                %v217 = vld [vmem:[%s173 + $0x148] sm:$0xff]
                %218 = vst [vmem:[%s174 + $0xa8] sm:$0xff] %v217
                %v219 = vld [vmem:[%s173 + $0x160] sm:$0xff]
                %220 = vst [vmem:[%s174 + $0xb0] sm:$0xff] %v219
                %v221 = vld [vmem:[%s173 + $0x168] sm:$0xff]
                %222 = vst [vmem:[%s174 + $0xb8] sm:$0xff] %v221
                %v223 = vld [vmem:[%s173 + $0x180] sm:$0xff]
                %224 = vst [vmem:[%s174 + $0xc0] sm:$0xff] %v223
                %v225 = vld [vmem:[%s173 + $0x188] sm:$0xff]
                %226 = vst [vmem:[%s174 + $0xc8] sm:$0xff] %v225
                %v227 = vld [vmem:[%s173 + $0x1a0] sm:$0xff]
                %228 = vst [vmem:[%s174 + $0xd0] sm:$0xff] %v227
                %v229 = vld [vmem:[%s173 + $0x1a8] sm:$0xff]
                %230 = vst [vmem:[%s174 + $0xd8] sm:$0xff] %v229
                %v231 = vld [vmem:[%s173 + $0x1c0] sm:$0xff]
                %232 = vst [vmem:[%s174 + $0xe0] sm:$0xff] %v231
                %v233 = vld [vmem:[%s173 + $0x1c8] sm:$0xff]
                %234 = vst [vmem:[%s174 + $0xe8] sm:$0xff] %v233
                %v235 = vld [vmem:[%s173 + $0x1e0] sm:$0xff]
                %236 = vst [vmem:[%s174 + $0xf0] sm:$0xff] %v235
                %v237 = vld [vmem:[%s173 + $0x1e8] sm:$0xff]
                %238 = vst [vmem:[%s174 + $0xf8] sm:$0xff] %v237
              $region45: #{generator_sec_forward.7} parent=39 // loop_footer
                %s172 = sadd.s32 1, %s168
              $region46: #{generator_sec_forward.7} parent=39 // loop_footer_branch
                %167 = sbr.rel target = $region42
              $region47: #{generator_sec_forward.7} parent=39 // loop_exit
                _
            $region40: #{generator_sec_forward.7} parent=35 // pred_fallthru
              _
            // Predicated region
            $region48: #{generator_sec_forward.7} parent=35 // pred_check
              _
            $region49: #{generator_sec_forward.7} parent=35 // pred_check_branch
              %240 = sbr.rel target = $region51
            $region50: #{generator_sec_forward.7} parent=35 // pred_region
              _
            $region51: #{generator_sec_forward.7} parent=35 // pred_fallthru
              _
          $region36: #{generator_sec_forward.7} parent=31 // pred_fallthru
            _
          %241 = vnop
        $region32: #{generator_sec_forward.7} parent=27 // pred_fallthru
          _
      $region28: #{generator_sec_forward.7} parent=5 // pred_fallthru
        _
      %p242 = scmp.le.s32.totalorder 1, %s10
      %p243 = scmp.lt.s32.totalorder %s10, 3
      %p244 = pnand %p242, %p243
      %p245 = pneg %p244
      // Predicated region
      $region52: #{generator_sec_forward.7} parent=5 // pred_check
        _
      $region53: #{generator_sec_forward.7} parent=5 // pred_check_branch
        %247 = sbr.rel (%p244) target = $region55
      $region54: #{generator_sec_forward.7} parent=5 // pred_region
        %s248 = ssub.s32 %s10, 1
        %s249 = sand.u32 %s86, 1
        %s250 = sand.u32 %s86, 1
        %s251 = smul.addr %s250, 256
        %s252 = scalar_lea.vmem [#allocation2], %s251
        // Predicated region
        $region56: #{generator_sec_forward.7} parent=54 // pred_check
          %p253 = pneg %p99
        $region57: #{generator_sec_forward.7} parent=54 // pred_check_branch
          %255 = sbr.rel (%p253) target = $region59
        $region58: #{generator_sec_forward.7} parent=54 // pred_region
          _
        $region59: #{generator_sec_forward.7} parent=54 // pred_fallthru
          _
        %p256 = pneg %p31
        %p257 = pneg %p28
        %p258 = pneg %p52
        %p259 = pneg %p49
        %p260 = pneg %p73
        %p261 = pneg %p70
        %s262 = sand.u32 %s86, 1
        %s263 = sand.u32 %s86, 1
        %s264 = smul.addr %s263, 256
        %s265 = scalar_lea.vmem [#allocation2], %s264
        %p266 = pneg %p99
        %p267 = pneg %p96
        %p268 = pneg %p125
        %p269 = pneg %p122
        %s270 = sand.u32 %s112, 1
        %s271 = sand.u32 %s112, 1
        %s272 = smul.addr %s271, 512
        %s273 = scalar_lea.vmem [#allocation3], %s272
        %s274 = smul.u32 4, %s15
        %s275 = smul.u32 4, %s15
        %v277 = vld [vmem:[%s0] sm:$0xff]
        %v278 = vld [vmem:[%s0 + $0x8] sm:$0xff]
        %v279 = vld [vmem:[%s0 + $0x10] sm:$0xff]
        %v280 = vld [vmem:[%s0 + $0x18] sm:$0xff]
        %v281 = vld [vmem:[%s0 + $0x20] sm:$0xff]
        %v282 = vld [vmem:[%s0 + $0x28] sm:$0xff]
        %v283 = vld [vmem:[%s0 + $0x30] sm:$0xff]
        %v284 = vld [vmem:[%s0 + $0x38] sm:$0xff]
        %v285 = vld [vmem:[%s0 + $0x40] sm:$0xff]
        %v286 = vld [vmem:[%s0 + $0x48] sm:$0xff]
        %v287 = vld [vmem:[%s0 + $0x50] sm:$0xff]
        %v288 = vld [vmem:[%s0 + $0x58] sm:$0xff]
        %v289 = vld [vmem:[%s0 + $0x60] sm:$0xff]
        %v290 = vld [vmem:[%s0 + $0x68] sm:$0xff]
        %v291 = vld [vmem:[%s0 + $0x70] sm:$0xff]
        %v292 = vld [vmem:[%s0 + $0x78] sm:$0xff]
        %v293 = vadd.f32 %v277, %v278
        %v294 = vadd.f32 %v293, %v279
        %v295 = vadd.f32 %v294, %v280
        %v296 = vadd.f32 %v295, %v281
        %v297 = vadd.f32 %v296, %v282
        %v298 = vadd.f32 %v297, %v283
        %v299 = vadd.f32 %v298, %v284
        %v300 = vadd.f32 %v299, %v285
        %v301 = vadd.f32 %v300, %v286
        %v302 = vadd.f32 %v301, %v287
        %v303 = vadd.f32 %v302, %v288
        %v304 = vadd.f32 %v303, %v289
        %v305 = vadd.f32 %v304, %v290
        %v306 = vadd.f32 %v305, %v291
        %v307 = vadd.f32 %v306, %v292
        %v308 = vrot.slane %v307, 4
        %v309 = vadd.f32 %v307, %v308
        %v310 = vrot.slane %v309, 2
        %v311 = vadd.f32 %v309, %v310
        %v312 = vrot.slane %v311, 1
        %v313 = vadd.f32 %v311, %v312
        %v314 = vrcp.pop 128.0
        %v315 = vmul.f32 %v313, %v314
        %v316 = vsub.f32 %v277, %v315
        %v317 = vsub.f32 %v278, %v315
        %v318 = vsub.f32 %v279, %v315
        %v319 = vsub.f32 %v280, %v315
        %v320 = vsub.f32 %v281, %v315
        %v321 = vsub.f32 %v282, %v315
        %v322 = vsub.f32 %v283, %v315
        %v323 = vsub.f32 %v284, %v315
        %v324 = vsub.f32 %v285, %v315
        %v325 = vsub.f32 %v286, %v315
        %v326 = vsub.f32 %v287, %v315
        %v327 = vsub.f32 %v288, %v315
        %v328 = vsub.f32 %v289, %v315
        %v329 = vsub.f32 %v290, %v315
        %v330 = vsub.f32 %v291, %v315
        %v331 = vsub.f32 %v292, %v315
        %v332 = vmul.f32 %v316, %v316
        %v333 = vmul.f32 %v317, %v317
        %v334 = vmul.f32 %v318, %v318
        %v335 = vmul.f32 %v319, %v319
        %v336 = vmul.f32 %v320, %v320
        %v337 = vmul.f32 %v321, %v321
        %v338 = vmul.f32 %v322, %v322
        %v339 = vmul.f32 %v323, %v323
        %v340 = vmul.f32 %v324, %v324
        %v341 = vmul.f32 %v325, %v325
        %v342 = vmul.f32 %v326, %v326
        %v343 = vmul.f32 %v327, %v327
        %v344 = vmul.f32 %v328, %v328
        %v345 = vmul.f32 %v329, %v329
        %v346 = vmul.f32 %v330, %v330
        %v347 = vmul.f32 %v331, %v331
        %v348 = vadd.f32 %v332, %v333
        %v349 = vadd.f32 %v348, %v334
        %v350 = vadd.f32 %v349, %v335
        %v351 = vadd.f32 %v350, %v336
        %v352 = vadd.f32 %v351, %v337
        %v353 = vadd.f32 %v352, %v338
        %v354 = vadd.f32 %v353, %v339
        %v355 = vadd.f32 %v354, %v340
        %v356 = vadd.f32 %v355, %v341
        %v357 = vadd.f32 %v356, %v342
        %v358 = vadd.f32 %v357, %v343
        %v359 = vadd.f32 %v358, %v344
        %v360 = vadd.f32 %v359, %v345
        %v361 = vadd.f32 %v360, %v346
        %v362 = vadd.f32 %v361, %v347
        %v363 = vrot.slane %v362, 4
        %v364 = vadd.f32 %v362, %v363
        %v365 = vrot.slane %v364, 2
        %v366 = vadd.f32 %v364, %v365
        %v367 = vrot.slane %v366, 1
        %v368 = vadd.f32 %v366, %v367
        %v369 = vmul.f32 %v368, %v314
        %v370 = vadd.f32 %v369, 1e-05
        %v371 = vrsqrt.pop %v370
        %v372 = vmul.f32 %v316, %v371
        %v373 = vmul.f32 %v317, %v371
        %v374 = vmul.f32 %v318, %v371
        %v375 = vmul.f32 %v319, %v371
        %v376 = vmul.f32 %v320, %v371
        %v377 = vmul.f32 %v321, %v371
        %v378 = vmul.f32 %v322, %v371
        %v379 = vmul.f32 %v323, %v371
        %v380 = vmul.f32 %v324, %v371
        %v381 = vmul.f32 %v325, %v371
        %v382 = vmul.f32 %v326, %v371
        %v383 = vmul.f32 %v327, %v371
        %v384 = vmul.f32 %v328, %v371
        %v385 = vmul.f32 %v329, %v371
        %v386 = vmul.f32 %v330, %v371
        %v387 = vmul.f32 %v331, %v371
        %v388 = vld [vmem:[%s1] sm:$0x1]
        %v390 = vlaneseq
        %v391 = vshrl.u32 %v390, 7
        %v392 = vsub.s32 0, %v391
        %v393 = vrot.slane %v388, %v392
        %v395 = vmul.f32 %v372, %v393
        %v396 = vmul.f32 %v373, %v393
        %v397 = vmul.f32 %v374, %v393
        %v398 = vmul.f32 %v375, %v393
        %v399 = vmul.f32 %v376, %v393
        %v400 = vmul.f32 %v377, %v393
        %v401 = vmul.f32 %v378, %v393
        %v402 = vmul.f32 %v379, %v393
        %v403 = vmul.f32 %v380, %v393
        %v404 = vmul.f32 %v381, %v393
        %v405 = vmul.f32 %v382, %v393
        %v406 = vmul.f32 %v383, %v393
        %v407 = vmul.f32 %v384, %v393
        %v408 = vmul.f32 %v385, %v393
        %v409 = vmul.f32 %v386, %v393
        %v410 = vmul.f32 %v387, %v393
        %v411 = vld [vmem:[%s2] sm:$0x1]
        %v413 = vlaneseq
        %v414 = vshrl.u32 %v413, 7
        %v415 = vsub.s32 0, %v414
        %v416 = vrot.slane %v411, %v415
        %v418 = vadd.f32 %v395, %v416
        %v419 = vadd.f32 %v396, %v416
        %v420 = vadd.f32 %v397, %v416
        %v421 = vadd.f32 %v398, %v416
        %v422 = vadd.f32 %v399, %v416
        %v423 = vadd.f32 %v400, %v416
        %v424 = vadd.f32 %v401, %v416
        %v425 = vadd.f32 %v402, %v416
        %v426 = vadd.f32 %v403, %v416
        %v427 = vadd.f32 %v404, %v416
        %v428 = vadd.f32 %v405, %v416
        %v429 = vadd.f32 %v406, %v416
        %v430 = vadd.f32 %v407, %v416
        %v431 = vadd.f32 %v408, %v416
        %v432 = vadd.f32 %v409, %v416
        %v433 = vadd.f32 %v410, %v416
        %v434 = vmax.f32 %v418, 0.0
        %v435 = vmax.f32 %v419, 0.0
        %v436 = vmax.f32 %v420, 0.0
        %v437 = vmax.f32 %v421, 0.0
        %v438 = vmax.f32 %v422, 0.0
        %v439 = vmax.f32 %v423, 0.0
        %v440 = vmax.f32 %v424, 0.0
        %v441 = vmax.f32 %v425, 0.0
        %v442 = vmax.f32 %v426, 0.0
        %v443 = vmax.f32 %v427, 0.0
        %v444 = vmax.f32 %v428, 0.0
        %v445 = vmax.f32 %v429, 0.0
        %v446 = vmax.f32 %v430, 0.0
        %v447 = vmax.f32 %v431, 0.0
        %v448 = vmax.f32 %v432, 0.0
        %v449 = vmax.f32 %v433, 0.0
        %v450 = vpack.c.bf16 %v435, %v434
        %v451 = vpack.c.bf16 %v437, %v436
        %v452 = vpack.c.bf16 %v439, %v438
        %v453 = vpack.c.bf16 %v441, %v440
        %v454 = vpack.c.bf16 %v443, %v442
        %v455 = vpack.c.bf16 %v445, %v444
        %v456 = vpack.c.bf16 %v447, %v446
        %v457 = vpack.c.bf16 %v449, %v448
        %v458 = vld [vmem:[%s252] sm:$0xff]
        %v459 = vld [vmem:[%s252 + $0x8] sm:$0xff]
        %v460 = vld [vmem:[%s252 + $0x10] sm:$0xff]
        %v461 = vld [vmem:[%s252 + $0x18] sm:$0xff]
        %v462 = vld [vmem:[%s252 + $0x20] sm:$0xff]
        %v463 = vld [vmem:[%s252 + $0x28] sm:$0xff]
        %v464 = vld [vmem:[%s252 + $0x30] sm:$0xff]
        %v465 = vld [vmem:[%s252 + $0x38] sm:$0xff]
        %v466 = vld [vmem:[%s252 + $0x40] sm:$0xff]
        %v467 = vld [vmem:[%s252 + $0x48] sm:$0xff]
        %v468 = vld [vmem:[%s252 + $0x50] sm:$0xff]
        %v469 = vld [vmem:[%s252 + $0x58] sm:$0xff]
        %v470 = vld [vmem:[%s252 + $0x60] sm:$0xff]
        %v471 = vld [vmem:[%s252 + $0x68] sm:$0xff]
        %v472 = vld [vmem:[%s252 + $0x70] sm:$0xff]
        %v473 = vld [vmem:[%s252 + $0x78] sm:$0xff]
        %v474 = vld [vmem:[%s252 + $0x80] sm:$0xff]
        %v475 = vld [vmem:[%s252 + $0x88] sm:$0xff]
        %v476 = vld [vmem:[%s252 + $0x90] sm:$0xff]
        %v477 = vld [vmem:[%s252 + $0x98] sm:$0xff]
        %v478 = vld [vmem:[%s252 + $0xa0] sm:$0xff]
        %v479 = vld [vmem:[%s252 + $0xa8] sm:$0xff]
        %v480 = vld [vmem:[%s252 + $0xb0] sm:$0xff]
        %v481 = vld [vmem:[%s252 + $0xb8] sm:$0xff]
        %v482 = vld [vmem:[%s252 + $0xc0] sm:$0xff]
        %v483 = vld [vmem:[%s252 + $0xc8] sm:$0xff]
        %v484 = vld [vmem:[%s252 + $0xd0] sm:$0xff]
        %v485 = vld [vmem:[%s252 + $0xd8] sm:$0xff]
        %v486 = vld [vmem:[%s252 + $0xe0] sm:$0xff]
        %v487 = vld [vmem:[%s252 + $0xe8] sm:$0xff]
        %v488 = vld [vmem:[%s252 + $0xf0] sm:$0xff]
        %v489 = vld [vmem:[%s252 + $0xf8] sm:$0xff]
        %v522 = vunpack.c.l.b16 %v458
        %v523 = vunpack.c.h.b16 %v458
        %v524 = vunpack.c.l.b16 %v459
        %v525 = vunpack.c.h.b16 %v459
        %v526 = vunpack.c.l.b16 %v460
        %v527 = vunpack.c.h.b16 %v460
        %v528 = vunpack.c.l.b16 %v461
        %v529 = vunpack.c.h.b16 %v461
        %v530 = vunpack.c.l.b16 %v462
        %v531 = vunpack.c.h.b16 %v462
        %v532 = vunpack.c.l.b16 %v463
        %v533 = vunpack.c.h.b16 %v463
        %v534 = vunpack.c.l.b16 %v464
        %v535 = vunpack.c.h.b16 %v464
        %v536 = vunpack.c.l.b16 %v465
        %v537 = vunpack.c.h.b16 %v465
        %v538 = vunpack.c.l.b16 %v466
        %v539 = vunpack.c.h.b16 %v466
        %v540 = vunpack.c.l.b16 %v467
        %v541 = vunpack.c.h.b16 %v467
        %v542 = vunpack.c.l.b16 %v468
        %v543 = vunpack.c.h.b16 %v468
        %v544 = vunpack.c.l.b16 %v469
        %v545 = vunpack.c.h.b16 %v469
        %v546 = vunpack.c.l.b16 %v470
        %v547 = vunpack.c.h.b16 %v470
        %v548 = vunpack.c.l.b16 %v471
        %v549 = vunpack.c.h.b16 %v471
        %v550 = vunpack.c.l.b16 %v472
        %v551 = vunpack.c.h.b16 %v472
        %v552 = vunpack.c.l.b16 %v473
        %v553 = vunpack.c.h.b16 %v473
        %v554 = vunpack.c.l.b16 %v474
        %v555 = vunpack.c.h.b16 %v474
        %v556 = vunpack.c.l.b16 %v475
        %v557 = vunpack.c.h.b16 %v475
        %v558 = vunpack.c.l.b16 %v476
        %v559 = vunpack.c.h.b16 %v476
        %v560 = vunpack.c.l.b16 %v477
        %v561 = vunpack.c.h.b16 %v477
        %v562 = vunpack.c.l.b16 %v478
        %v563 = vunpack.c.h.b16 %v478
        %v564 = vunpack.c.l.b16 %v479
        %v565 = vunpack.c.h.b16 %v479
        %v566 = vunpack.c.l.b16 %v480
        %v567 = vunpack.c.h.b16 %v480
        %v568 = vunpack.c.l.b16 %v481
        %v569 = vunpack.c.h.b16 %v481
        %v570 = vunpack.c.l.b16 %v482
        %v571 = vunpack.c.h.b16 %v482
        %v572 = vunpack.c.l.b16 %v483
        %v573 = vunpack.c.h.b16 %v483
        %v574 = vunpack.c.l.b16 %v484
        %v575 = vunpack.c.h.b16 %v484
        %v576 = vunpack.c.l.b16 %v485
        %v577 = vunpack.c.h.b16 %v485
        %v578 = vunpack.c.l.b16 %v486
        %v579 = vunpack.c.h.b16 %v486
        %v580 = vunpack.c.l.b16 %v487
        %v581 = vunpack.c.h.b16 %v487
        %v582 = vunpack.c.l.b16 %v488
        %v583 = vunpack.c.h.b16 %v488
        %v584 = vunpack.c.l.b16 %v489
        %v585 = vunpack.c.h.b16 %v489
        %v586 = vpack.c.b16 %v526, %v522
        %v587 = vpack.c.b16 %v527, %v523
        %v588 = vpack.c.b16 %v528, %v524
        %v589 = vpack.c.b16 %v529, %v525
        %v590 = vpack.c.b16 %v534, %v530
        %v591 = vpack.c.b16 %v535, %v531
        %v592 = vpack.c.b16 %v536, %v532
        %v593 = vpack.c.b16 %v537, %v533
        %v594 = vpack.c.b16 %v542, %v538
        %v595 = vpack.c.b16 %v543, %v539
        %v596 = vpack.c.b16 %v544, %v540
        %v597 = vpack.c.b16 %v545, %v541
        %v598 = vpack.c.b16 %v550, %v546
        %v599 = vpack.c.b16 %v551, %v547
        %v600 = vpack.c.b16 %v552, %v548
        %v601 = vpack.c.b16 %v553, %v549
        %v602 = vpack.c.b16 %v558, %v554
        %v603 = vpack.c.b16 %v559, %v555
        %v604 = vpack.c.b16 %v560, %v556
        %v605 = vpack.c.b16 %v561, %v557
        %v606 = vpack.c.b16 %v566, %v562
        %v607 = vpack.c.b16 %v567, %v563
        %v608 = vpack.c.b16 %v568, %v564
        %v609 = vpack.c.b16 %v569, %v565
        %v610 = vpack.c.b16 %v574, %v570
        %v611 = vpack.c.b16 %v575, %v571
        %v612 = vpack.c.b16 %v576, %v572
        %v613 = vpack.c.b16 %v577, %v573
        %v614 = vpack.c.b16 %v582, %v578
        %v615 = vpack.c.b16 %v583, %v579
        %v616 = vpack.c.b16 %v584, %v580
        %v617 = vpack.c.b16 %v585, %v581
        %650 = vmatprep.subr.bf16.mxu0 %v587
        %651 = vmatpush1.bf16.msra.mxu0 %v586
        %652 = vmatprep.subr.bf16.mxu0 %v591
        %653 = vmatpush1.bf16.msra.mxu0 %v590
        %654 = vmatprep.subr.bf16.mxu0 %v595
        %655 = vmatpush1.bf16.msra.mxu0 %v594
        %656 = vmatprep.subr.bf16.mxu0 %v599
        %657 = vmatpush1.bf16.msra.mxu0 %v598
        %658 = vmatprep.subr.bf16.mxu0 %v603
        %659 = vmatpush1.bf16.msra.mxu0 %v602
        %660 = vmatprep.subr.bf16.mxu0 %v607
        %661 = vmatpush1.bf16.msra.mxu0 %v606
        %662 = vmatprep.subr.bf16.mxu0 %v611
        %663 = vmatpush1.bf16.msra.mxu0 %v610
        %664 = vmatprep.subr.bf16.mxu0 %v615
        %665 = vmatpush1.bf16.msra.mxu0 %v614
        %666 = vmatprep.subr.bf16.mxu0 0
        %667 = vmatpush1.bf16.msra.mxu0 0
        %668 = vmatprep.subr.bf16.mxu0 0
        %669 = vmatpush1.bf16.msra.mxu0 0
        %670 = vmatprep.subr.bf16.mxu0 0
        %671 = vmatpush1.bf16.msra.mxu0 0
        %672 = vmatprep.subr.bf16.mxu0 0
        %673 = vmatpush1.bf16.msra.mxu0 0
        %674 = vmatprep.subr.bf16.mxu0 0
        %675 = vmatpush1.bf16.msra.mxu0 0
        %676 = vmatprep.subr.bf16.mxu0 0
        %677 = vmatpush1.bf16.msra.mxu0 0
        %678 = vmatprep.subr.bf16.mxu0 0
        %679 = vmatpush1.bf16.msra.mxu0 0
        %680 = vmatprep.subr.bf16.mxu0 0
        %681 = vmatpush1.bf16.msra.mxu0 0
        %682 = vmatprep.mubr.bf16.mxu0 0
        %683 = vmatmul.mubr.bf16.gmra.mrb[0].mxu0 %v450
        %v684 = vpop.f32.mrb[0].mxu0
        %v685 = vadd.f32 0.0, %v684
        %v686 = vpop.f32.mrb[0].mxu0
        %v687 = vadd.f32 0.0, %v686
        %v688 = vpop.f32.mrb[0].mxu0
        %v689 = vadd.f32 0.0, %v688
        %v690 = vpop.f32.mrb[0].mxu0
        %v691 = vadd.f32 0.0, %v690
        %692 = vmatprep.mubr.bf16.mxu0 0
        %693 = vmatmul.mubr.bf16.gmra.mrb[0].mxu0 %v451
        %v694 = vpop.f32.mrb[0].mxu0
        %v695 = vadd.f32 0.0, %v694
        %v696 = vpop.f32.mrb[0].mxu0
        %v697 = vadd.f32 0.0, %v696
        %v698 = vpop.f32.mrb[0].mxu0
        %v699 = vadd.f32 0.0, %v698
        %v700 = vpop.f32.mrb[0].mxu0
        %v701 = vadd.f32 0.0, %v700
        %702 = vmatprep.mubr.bf16.mxu0 0
        %703 = vmatmul.mubr.bf16.gmra.mrb[0].mxu0 %v452
        %v704 = vpop.f32.mrb[0].mxu0
        %v705 = vadd.f32 0.0, %v704
        %v706 = vpop.f32.mrb[0].mxu0
        %v707 = vadd.f32 0.0, %v706
        %v708 = vpop.f32.mrb[0].mxu0
        %v709 = vadd.f32 0.0, %v708
        %v710 = vpop.f32.mrb[0].mxu0
        %v711 = vadd.f32 0.0, %v710
        %712 = vmatprep.mubr.bf16.mxu0 0
        %713 = vmatmul.mubr.bf16.gmra.mrb[0].mxu0 %v453
        %v714 = vpop.f32.mrb[0].mxu0
        %v715 = vadd.f32 0.0, %v714
        %v716 = vpop.f32.mrb[0].mxu0
        %v717 = vadd.f32 0.0, %v716
        %v718 = vpop.f32.mrb[0].mxu0
        %v719 = vadd.f32 0.0, %v718
        %v720 = vpop.f32.mrb[0].mxu0
        %v721 = vadd.f32 0.0, %v720
        %722 = vmatprep.mubr.bf16.mxu0 0
        %723 = vmatmul.mubr.bf16.gmra.mrb[0].mxu0 %v454
        %v724 = vpop.f32.mrb[0].mxu0
        %v725 = vadd.f32 0.0, %v724
        %v726 = vpop.f32.mrb[0].mxu0
        %v727 = vadd.f32 0.0, %v726
        %v728 = vpop.f32.mrb[0].mxu0
        %v729 = vadd.f32 0.0, %v728
        %v730 = vpop.f32.mrb[0].mxu0
        %v731 = vadd.f32 0.0, %v730
        %732 = vmatprep.mubr.bf16.mxu0 0
        %733 = vmatmul.mubr.bf16.gmra.mrb[0].mxu0 %v455
        %v734 = vpop.f32.mrb[0].mxu0
        %v735 = vadd.f32 0.0, %v734
        %v736 = vpop.f32.mrb[0].mxu0
        %v737 = vadd.f32 0.0, %v736
        %v738 = vpop.f32.mrb[0].mxu0
        %v739 = vadd.f32 0.0, %v738
        %v740 = vpop.f32.mrb[0].mxu0
        %v741 = vadd.f32 0.0, %v740
        %742 = vmatprep.mubr.bf16.mxu0 0
        %743 = vmatmul.mubr.bf16.gmra.mrb[0].mxu0 %v456
        %v744 = vpop.f32.mrb[0].mxu0
        %v745 = vadd.f32 0.0, %v744
        %v746 = vpop.f32.mrb[0].mxu0
        %v747 = vadd.f32 0.0, %v746
        %v748 = vpop.f32.mrb[0].mxu0
        %v749 = vadd.f32 0.0, %v748
        %v750 = vpop.f32.mrb[0].mxu0
        %v751 = vadd.f32 0.0, %v750
        %752 = vmatprep.mubr.bf16.mxu0 0
        %753 = vmatmul.mubr.bf16.gmra.mrb[0].mxu0 %v457
        %v754 = vpop.f32.mrb[0].mxu0
        %v755 = vadd.f32 0.0, %v754
        %v756 = vpop.f32.mrb[0].mxu0
        %v757 = vadd.f32 0.0, %v756
        %v758 = vpop.f32.mrb[0].mxu0
        %v759 = vadd.f32 0.0, %v758
        %v760 = vpop.f32.mrb[0].mxu0
        %v761 = vadd.f32 0.0, %v760
        %762 = vdwg.mxu0
        %763 = vmatprep.subr.bf16.mxu0 %v589
        %764 = vmatpush1.bf16.msra.mxu0 %v588
        %765 = vmatprep.subr.bf16.mxu0 %v593
        %766 = vmatpush1.bf16.msra.mxu0 %v592
        %767 = vmatprep.subr.bf16.mxu0 %v597
        %768 = vmatpush1.bf16.msra.mxu0 %v596
        %769 = vmatprep.subr.bf16.mxu0 %v601
        %770 = vmatpush1.bf16.msra.mxu0 %v600
        %771 = vmatprep.subr.bf16.mxu0 %v605
        %772 = vmatpush1.bf16.msra.mxu0 %v604
        %773 = vmatprep.subr.bf16.mxu0 %v609
        %774 = vmatpush1.bf16.msra.mxu0 %v608
        %775 = vmatprep.subr.bf16.mxu0 %v613
        %776 = vmatpush1.bf16.msra.mxu0 %v612
        %777 = vmatprep.subr.bf16.mxu0 %v617
        %778 = vmatpush1.bf16.msra.mxu0 %v616
        %779 = vmatprep.subr.bf16.mxu0 0
        %780 = vmatpush1.bf16.msra.mxu0 0
        %781 = vmatprep.subr.bf16.mxu0 0
        %782 = vmatpush1.bf16.msra.mxu0 0
        %783 = vmatprep.subr.bf16.mxu0 0
        %784 = vmatpush1.bf16.msra.mxu0 0
        %785 = vmatprep.subr.bf16.mxu0 0
        %786 = vmatpush1.bf16.msra.mxu0 0
        %787 = vmatprep.subr.bf16.mxu0 0
        %788 = vmatpush1.bf16.msra.mxu0 0
        %789 = vmatprep.subr.bf16.mxu0 0
        %790 = vmatpush1.bf16.msra.mxu0 0
        %791 = vmatprep.subr.bf16.mxu0 0
        %792 = vmatpush1.bf16.msra.mxu0 0
        %793 = vmatprep.subr.bf16.mxu0 0
        %794 = vmatpush1.bf16.msra.mxu0 0
        %795 = vmatprep.mubr.bf16.mxu0 0
        %796 = vmatmul.mubr.bf16.gmra.mrb[0].mxu0 %v450
        %v797 = vpop.f32.mrb[0].mxu0
        %v798 = vadd.f32 0.0, %v797
        %v799 = vpop.f32.mrb[0].mxu0
        %v800 = vadd.f32 0.0, %v799
        %v801 = vpop.f32.mrb[0].mxu0
        %v802 = vadd.f32 0.0, %v801
        %v803 = vpop.f32.mrb[0].mxu0
        %v804 = vadd.f32 0.0, %v803
        %805 = vmatprep.mubr.bf16.mxu0 0
        %806 = vmatmul.mubr.bf16.gmra.mrb[0].mxu0 %v451
        %v807 = vpop.f32.mrb[0].mxu0
        %v808 = vadd.f32 0.0, %v807
        %v809 = vpop.f32.mrb[0].mxu0
        %v810 = vadd.f32 0.0, %v809
        %v811 = vpop.f32.mrb[0].mxu0
        %v812 = vadd.f32 0.0, %v811
        %v813 = vpop.f32.mrb[0].mxu0
        %v814 = vadd.f32 0.0, %v813
        %815 = vmatprep.mubr.bf16.mxu0 0
        %816 = vmatmul.mubr.bf16.gmra.mrb[0].mxu0 %v452
        %v817 = vpop.f32.mrb[0].mxu0
        %v818 = vadd.f32 0.0, %v817
        %v819 = vpop.f32.mrb[0].mxu0
        %v820 = vadd.f32 0.0, %v819
        %v821 = vpop.f32.mrb[0].mxu0
        %v822 = vadd.f32 0.0, %v821
        %v823 = vpop.f32.mrb[0].mxu0
        %v824 = vadd.f32 0.0, %v823
        %825 = vmatprep.mubr.bf16.mxu0 0
        %826 = vmatmul.mubr.bf16.gmra.mrb[0].mxu0 %v453
        %v827 = vpop.f32.mrb[0].mxu0
        %v828 = vadd.f32 0.0, %v827
        %v829 = vpop.f32.mrb[0].mxu0
        %v830 = vadd.f32 0.0, %v829
        %v831 = vpop.f32.mrb[0].mxu0
        %v832 = vadd.f32 0.0, %v831
        %v833 = vpop.f32.mrb[0].mxu0
        %v834 = vadd.f32 0.0, %v833
        %835 = vmatprep.mubr.bf16.mxu0 0
        %836 = vmatmul.mubr.bf16.gmra.mrb[0].mxu0 %v454
        %v837 = vpop.f32.mrb[0].mxu0
        %v838 = vadd.f32 0.0, %v837
        %v839 = vpop.f32.mrb[0].mxu0
        %v840 = vadd.f32 0.0, %v839
        %v841 = vpop.f32.mrb[0].mxu0
        %v842 = vadd.f32 0.0, %v841
        %v843 = vpop.f32.mrb[0].mxu0
        %v844 = vadd.f32 0.0, %v843
        %845 = vmatprep.mubr.bf16.mxu0 0
        %846 = vmatmul.mubr.bf16.gmra.mrb[0].mxu0 %v455
        %v847 = vpop.f32.mrb[0].mxu0
        %v848 = vadd.f32 0.0, %v847
        %v849 = vpop.f32.mrb[0].mxu0
        %v850 = vadd.f32 0.0, %v849
        %v851 = vpop.f32.mrb[0].mxu0
        %v852 = vadd.f32 0.0, %v851
        %v853 = vpop.f32.mrb[0].mxu0
        %v854 = vadd.f32 0.0, %v853
        %855 = vmatprep.mubr.bf16.mxu0 0
        %856 = vmatmul.mubr.bf16.gmra.mrb[0].mxu0 %v456
        %v857 = vpop.f32.mrb[0].mxu0
        %v858 = vadd.f32 0.0, %v857
        %v859 = vpop.f32.mrb[0].mxu0
        %v860 = vadd.f32 0.0, %v859
        %v861 = vpop.f32.mrb[0].mxu0
        %v862 = vadd.f32 0.0, %v861
        %v863 = vpop.f32.mrb[0].mxu0
        %v864 = vadd.f32 0.0, %v863
        %865 = vmatprep.mubr.bf16.mxu0 0
        %866 = vmatmul.mubr.bf16.gmra.mrb[0].mxu0 %v457
        %v867 = vpop.f32.mrb[0].mxu0
        %v868 = vadd.f32 0.0, %v867
        %v869 = vpop.f32.mrb[0].mxu0
        %v870 = vadd.f32 0.0, %v869
        %v871 = vpop.f32.mrb[0].mxu0
        %v872 = vadd.f32 0.0, %v871
        %v873 = vpop.f32.mrb[0].mxu0
        %v874 = vadd.f32 0.0, %v873
        %875 = vdwg.mxu0
        %876 = vst [vmem:[%s273] sm:$0xff] %v685
        %877 = vst [vmem:[%s273 + $0x8] sm:$0xff] %v687
        %878 = vst [vmem:[%s273 + $0x10] sm:$0xff] %v798
        %879 = vst [vmem:[%s273 + $0x18] sm:$0xff] %v800
        %880 = vst [vmem:[%s273 + $0x20] sm:$0xff] %v689
        %881 = vst [vmem:[%s273 + $0x28] sm:$0xff] %v691
        %882 = vst [vmem:[%s273 + $0x30] sm:$0xff] %v802
        %883 = vst [vmem:[%s273 + $0x38] sm:$0xff] %v804
        %884 = vst [vmem:[%s273 + $0x40] sm:$0xff] %v695
        %885 = vst [vmem:[%s273 + $0x48] sm:$0xff] %v697
        %886 = vst [vmem:[%s273 + $0x50] sm:$0xff] %v808
        %887 = vst [vmem:[%s273 + $0x58] sm:$0xff] %v810
        %888 = vst [vmem:[%s273 + $0x60] sm:$0xff] %v699
        %889 = vst [vmem:[%s273 + $0x68] sm:$0xff] %v701
        %890 = vst [vmem:[%s273 + $0x70] sm:$0xff] %v812
        %891 = vst [vmem:[%s273 + $0x78] sm:$0xff] %v814
        %892 = vst [vmem:[%s273 + $0x80] sm:$0xff] %v705
        %893 = vst [vmem:[%s273 + $0x88] sm:$0xff] %v707
        %894 = vst [vmem:[%s273 + $0x90] sm:$0xff] %v818
        %895 = vst [vmem:[%s273 + $0x98] sm:$0xff] %v820
        %896 = vst [vmem:[%s273 + $0xa0] sm:$0xff] %v709
        %897 = vst [vmem:[%s273 + $0xa8] sm:$0xff] %v711
        %898 = vst [vmem:[%s273 + $0xb0] sm:$0xff] %v822
        %899 = vst [vmem:[%s273 + $0xb8] sm:$0xff] %v824
        %900 = vst [vmem:[%s273 + $0xc0] sm:$0xff] %v715
        %901 = vst [vmem:[%s273 + $0xc8] sm:$0xff] %v717
        %902 = vst [vmem:[%s273 + $0xd0] sm:$0xff] %v828
        %903 = vst [vmem:[%s273 + $0xd8] sm:$0xff] %v830
        %904 = vst [vmem:[%s273 + $0xe0] sm:$0xff] %v719
        %905 = vst [vmem:[%s273 + $0xe8] sm:$0xff] %v721
        %906 = vst [vmem:[%s273 + $0xf0] sm:$0xff] %v832
        %907 = vst [vmem:[%s273 + $0xf8] sm:$0xff] %v834
        %908 = vst [vmem:[%s273 + $0x100] sm:$0xff] %v725
        %909 = vst [vmem:[%s273 + $0x108] sm:$0xff] %v727
        %910 = vst [vmem:[%s273 + $0x110] sm:$0xff] %v838
        %911 = vst [vmem:[%s273 + $0x118] sm:$0xff] %v840
        %912 = vst [vmem:[%s273 + $0x120] sm:$0xff] %v729
        %913 = vst [vmem:[%s273 + $0x128] sm:$0xff] %v731
        %914 = vst [vmem:[%s273 + $0x130] sm:$0xff] %v842
        %915 = vst [vmem:[%s273 + $0x138] sm:$0xff] %v844
        %916 = vst [vmem:[%s273 + $0x140] sm:$0xff] %v735
        %917 = vst [vmem:[%s273 + $0x148] sm:$0xff] %v737
        %918 = vst [vmem:[%s273 + $0x150] sm:$0xff] %v848
        %919 = vst [vmem:[%s273 + $0x158] sm:$0xff] %v850
        %920 = vst [vmem:[%s273 + $0x160] sm:$0xff] %v739
        %921 = vst [vmem:[%s273 + $0x168] sm:$0xff] %v741
        %922 = vst [vmem:[%s273 + $0x170] sm:$0xff] %v852
        %923 = vst [vmem:[%s273 + $0x178] sm:$0xff] %v854
        %924 = vst [vmem:[%s273 + $0x180] sm:$0xff] %v745
        %925 = vst [vmem:[%s273 + $0x188] sm:$0xff] %v747
        %926 = vst [vmem:[%s273 + $0x190] sm:$0xff] %v858
        %927 = vst [vmem:[%s273 + $0x198] sm:$0xff] %v860
        %928 = vst [vmem:[%s273 + $0x1a0] sm:$0xff] %v749
        %929 = vst [vmem:[%s273 + $0x1a8] sm:$0xff] %v751
        %930 = vst [vmem:[%s273 + $0x1b0] sm:$0xff] %v862
        %931 = vst [vmem:[%s273 + $0x1b8] sm:$0xff] %v864
        %932 = vst [vmem:[%s273 + $0x1c0] sm:$0xff] %v755
        %933 = vst [vmem:[%s273 + $0x1c8] sm:$0xff] %v757
        %934 = vst [vmem:[%s273 + $0x1d0] sm:$0xff] %v868
        %935 = vst [vmem:[%s273 + $0x1d8] sm:$0xff] %v870
        %936 = vst [vmem:[%s273 + $0x1e0] sm:$0xff] %v759
        %937 = vst [vmem:[%s273 + $0x1e8] sm:$0xff] %v761
        %938 = vst [vmem:[%s273 + $0x1f0] sm:$0xff] %v872
        %939 = vst [vmem:[%s273 + $0x1f8] sm:$0xff] %v874
        %s940 = sand.u32 %s112, 1
        %s941 = sand.u32 %s112, 1
        %s942 = smul.addr %s941, 512
        %s943 = scalar_lea.vmem [#allocation3], %s942
        // Predicated region
        $region60: #{generator_sec_forward.7} parent=54 // pred_check
          %p944 = pneg %p122
        $region61: #{generator_sec_forward.7} parent=54 // pred_check_branch
          %946 = sbr.rel (%p944) target = $region63
        $region62: #{generator_sec_forward.7} parent=54 // pred_region
          %s947 = smul.u32 4, %s15
          %s948 = smul.addr %s947, 8
          %s949 = scalar_lea.vmem %s4, %s948
          // Predicated region
          $region64: #{generator_sec_forward.7} parent=62 // pred_check
            _
          $region65: #{generator_sec_forward.7} parent=62 // pred_check_branch
            %951 = sbr.rel (0) target = $region67
          $region66: #{generator_sec_forward.7} parent=62 // pred_region
            // Predicated region
            $region68: #{generator_sec_forward.7} parent=66 // pred_check
              _
            $region69: #{generator_sec_forward.7} parent=66 // pred_check_branch
              %953 = sbr.rel (0) target = $region71
            $region70: #{generator_sec_forward.7} parent=66 // pred_region
              loop: start=0, step=1, limit=1
              $region72: #{generator_sec_forward.7} parent=70 // loop_pre_header
                _
              $region73: #{generator_sec_forward.7} parent=70 // loop_header
                %s955 = sphi 0, %s959
                %p956 = scmp.ge.s32.totalorder %s955, 1
                %s960 = sphi %s943, %s943
                %s961 = sphi %s949, %s949
              $region74: #{generator_sec_forward.7} parent=70 // loop_header_branch
                %958 = sbr.rel (%p956) target = $region78
              $region75: #{generator_sec_forward.7} parent=70 // loop_body
                %v962 = vld [vmem:[%s960] sm:$0xff]
                %963 = vst [vmem:[%s961] sm:$0xff] %v962
                %v964 = vld [vmem:[%s960 + $0x8] sm:$0xff]
                %965 = vst [vmem:[%s961 + $0x8] sm:$0xff] %v964
                %v966 = vld [vmem:[%s960 + $0x10] sm:$0xff]
                %967 = vst [vmem:[%s961 + $0x10] sm:$0xff] %v966
                %v968 = vld [vmem:[%s960 + $0x18] sm:$0xff]
                %969 = vst [vmem:[%s961 + $0x18] sm:$0xff] %v968
                %v970 = vld [vmem:[%s960 + $0x20] sm:$0xff]
                %971 = vst [vmem:[%s961 + $0x40] sm:$0xff] %v970
                %v972 = vld [vmem:[%s960 + $0x28] sm:$0xff]
                %973 = vst [vmem:[%s961 + $0x48] sm:$0xff] %v972
                %v974 = vld [vmem:[%s960 + $0x30] sm:$0xff]
                %975 = vst [vmem:[%s961 + $0x50] sm:$0xff] %v974
                %v976 = vld [vmem:[%s960 + $0x38] sm:$0xff]
                %977 = vst [vmem:[%s961 + $0x58] sm:$0xff] %v976
                %v978 = vld [vmem:[%s960 + $0x40] sm:$0xff]
                %979 = vst [vmem:[%s961 + $0x80] sm:$0xff] %v978
                %v980 = vld [vmem:[%s960 + $0x48] sm:$0xff]
                %981 = vst [vmem:[%s961 + $0x88] sm:$0xff] %v980
                %v982 = vld [vmem:[%s960 + $0x50] sm:$0xff]
                %983 = vst [vmem:[%s961 + $0x90] sm:$0xff] %v982
                %v984 = vld [vmem:[%s960 + $0x58] sm:$0xff]
                %985 = vst [vmem:[%s961 + $0x98] sm:$0xff] %v984
                %v986 = vld [vmem:[%s960 + $0x60] sm:$0xff]
                %987 = vst [vmem:[%s961 + $0xc0] sm:$0xff] %v986
                %v988 = vld [vmem:[%s960 + $0x68] sm:$0xff]
                %989 = vst [vmem:[%s961 + $0xc8] sm:$0xff] %v988
                %v990 = vld [vmem:[%s960 + $0x70] sm:$0xff]
                %991 = vst [vmem:[%s961 + $0xd0] sm:$0xff] %v990
                %v992 = vld [vmem:[%s960 + $0x78] sm:$0xff]
                %993 = vst [vmem:[%s961 + $0xd8] sm:$0xff] %v992
                %v994 = vld [vmem:[%s960 + $0x80] sm:$0xff]
                %995 = vst [vmem:[%s961 + $0x100] sm:$0xff] %v994
                %v996 = vld [vmem:[%s960 + $0x88] sm:$0xff]
                %997 = vst [vmem:[%s961 + $0x108] sm:$0xff] %v996
                %v998 = vld [vmem:[%s960 + $0x90] sm:$0xff]
                %999 = vst [vmem:[%s961 + $0x110] sm:$0xff] %v998
                %v1000 = vld [vmem:[%s960 + $0x98] sm:$0xff]
                %1001 = vst [vmem:[%s961 + $0x118] sm:$0xff] %v1000
                %v1002 = vld [vmem:[%s960 + $0xa0] sm:$0xff]
                %1003 = vst [vmem:[%s961 + $0x140] sm:$0xff] %v1002
                %v1004 = vld [vmem:[%s960 + $0xa8] sm:$0xff]
                %1005 = vst [vmem:[%s961 + $0x148] sm:$0xff] %v1004
                %v1006 = vld [vmem:[%s960 + $0xb0] sm:$0xff]
                %1007 = vst [vmem:[%s961 + $0x150] sm:$0xff] %v1006
                %v1008 = vld [vmem:[%s960 + $0xb8] sm:$0xff]
                %1009 = vst [vmem:[%s961 + $0x158] sm:$0xff] %v1008
                %v1010 = vld [vmem:[%s960 + $0xc0] sm:$0xff]
                %1011 = vst [vmem:[%s961 + $0x180] sm:$0xff] %v1010
                %v1012 = vld [vmem:[%s960 + $0xc8] sm:$0xff]
                %1013 = vst [vmem:[%s961 + $0x188] sm:$0xff] %v1012
                %v1014 = vld [vmem:[%s960 + $0xd0] sm:$0xff]
                %1015 = vst [vmem:[%s961 + $0x190] sm:$0xff] %v1014
                %v1016 = vld [vmem:[%s960 + $0xd8] sm:$0xff]
                %1017 = vst [vmem:[%s961 + $0x198] sm:$0xff] %v1016
                %v1018 = vld [vmem:[%s960 + $0xe0] sm:$0xff]
                %1019 = vst [vmem:[%s961 + $0x1c0] sm:$0xff] %v1018
                %v1020 = vld [vmem:[%s960 + $0xe8] sm:$0xff]
                %1021 = vst [vmem:[%s961 + $0x1c8] sm:$0xff] %v1020
                %v1022 = vld [vmem:[%s960 + $0xf0] sm:$0xff]
                %1023 = vst [vmem:[%s961 + $0x1d0] sm:$0xff] %v1022
                %v1024 = vld [vmem:[%s960 + $0xf8] sm:$0xff]
                %1025 = vst [vmem:[%s961 + $0x1d8] sm:$0xff] %v1024
                %v1026 = vld [vmem:[%s960 + $0x100] sm:$0xff]
                %1027 = vst [vmem:[%s961 + $0x200] sm:$0xff] %v1026
                %v1028 = vld [vmem:[%s960 + $0x108] sm:$0xff]
                %1029 = vst [vmem:[%s961 + $0x208] sm:$0xff] %v1028
                %v1030 = vld [vmem:[%s960 + $0x110] sm:$0xff]
                %1031 = vst [vmem:[%s961 + $0x210] sm:$0xff] %v1030
                %v1032 = vld [vmem:[%s960 + $0x118] sm:$0xff]
                %1033 = vst [vmem:[%s961 + $0x218] sm:$0xff] %v1032
                %v1034 = vld [vmem:[%s960 + $0x120] sm:$0xff]
                %1035 = vst [vmem:[%s961 + $0x240] sm:$0xff] %v1034
                %v1036 = vld [vmem:[%s960 + $0x128] sm:$0xff]
                %1037 = vst [vmem:[%s961 + $0x248] sm:$0xff] %v1036
                %v1038 = vld [vmem:[%s960 + $0x130] sm:$0xff]
                %1039 = vst [vmem:[%s961 + $0x250] sm:$0xff] %v1038
                %v1040 = vld [vmem:[%s960 + $0x138] sm:$0xff]
                %1041 = vst [vmem:[%s961 + $0x258] sm:$0xff] %v1040
                %v1042 = vld [vmem:[%s960 + $0x140] sm:$0xff]
                %1043 = vst [vmem:[%s961 + $0x280] sm:$0xff] %v1042
                %v1044 = vld [vmem:[%s960 + $0x148] sm:$0xff]
                %1045 = vst [vmem:[%s961 + $0x288] sm:$0xff] %v1044
                %v1046 = vld [vmem:[%s960 + $0x150] sm:$0xff]
                %1047 = vst [vmem:[%s961 + $0x290] sm:$0xff] %v1046
                %v1048 = vld [vmem:[%s960 + $0x158] sm:$0xff]
                %1049 = vst [vmem:[%s961 + $0x298] sm:$0xff] %v1048
                %v1050 = vld [vmem:[%s960 + $0x160] sm:$0xff]
                %1051 = vst [vmem:[%s961 + $0x2c0] sm:$0xff] %v1050
                %v1052 = vld [vmem:[%s960 + $0x168] sm:$0xff]
                %1053 = vst [vmem:[%s961 + $0x2c8] sm:$0xff] %v1052
                %v1054 = vld [vmem:[%s960 + $0x170] sm:$0xff]
                %1055 = vst [vmem:[%s961 + $0x2d0] sm:$0xff] %v1054
                %v1056 = vld [vmem:[%s960 + $0x178] sm:$0xff]
                %1057 = vst [vmem:[%s961 + $0x2d8] sm:$0xff] %v1056
                %v1058 = vld [vmem:[%s960 + $0x180] sm:$0xff]
                %1059 = vst [vmem:[%s961 + $0x300] sm:$0xff] %v1058
                %v1060 = vld [vmem:[%s960 + $0x188] sm:$0xff]
                %1061 = vst [vmem:[%s961 + $0x308] sm:$0xff] %v1060
                %v1062 = vld [vmem:[%s960 + $0x190] sm:$0xff]
                %1063 = vst [vmem:[%s961 + $0x310] sm:$0xff] %v1062
                %v1064 = vld [vmem:[%s960 + $0x198] sm:$0xff]
                %1065 = vst [vmem:[%s961 + $0x318] sm:$0xff] %v1064
                %v1066 = vld [vmem:[%s960 + $0x1a0] sm:$0xff]
                %1067 = vst [vmem:[%s961 + $0x340] sm:$0xff] %v1066
                %v1068 = vld [vmem:[%s960 + $0x1a8] sm:$0xff]
                %1069 = vst [vmem:[%s961 + $0x348] sm:$0xff] %v1068
                %v1070 = vld [vmem:[%s960 + $0x1b0] sm:$0xff]
                %1071 = vst [vmem:[%s961 + $0x350] sm:$0xff] %v1070
                %v1072 = vld [vmem:[%s960 + $0x1b8] sm:$0xff]
                %1073 = vst [vmem:[%s961 + $0x358] sm:$0xff] %v1072
                %v1074 = vld [vmem:[%s960 + $0x1c0] sm:$0xff]
                %1075 = vst [vmem:[%s961 + $0x380] sm:$0xff] %v1074
                %v1076 = vld [vmem:[%s960 + $0x1c8] sm:$0xff]
                %1077 = vst [vmem:[%s961 + $0x388] sm:$0xff] %v1076
                %v1078 = vld [vmem:[%s960 + $0x1d0] sm:$0xff]
                %1079 = vst [vmem:[%s961 + $0x390] sm:$0xff] %v1078
                %v1080 = vld [vmem:[%s960 + $0x1d8] sm:$0xff]
                %1081 = vst [vmem:[%s961 + $0x398] sm:$0xff] %v1080
                %v1082 = vld [vmem:[%s960 + $0x1e0] sm:$0xff]
                %1083 = vst [vmem:[%s961 + $0x3c0] sm:$0xff] %v1082
                %v1084 = vld [vmem:[%s960 + $0x1e8] sm:$0xff]
                %1085 = vst [vmem:[%s961 + $0x3c8] sm:$0xff] %v1084
                %v1086 = vld [vmem:[%s960 + $0x1f0] sm:$0xff]
                %1087 = vst [vmem:[%s961 + $0x3d0] sm:$0xff] %v1086
                %v1088 = vld [vmem:[%s960 + $0x1f8] sm:$0xff]
                %1089 = vst [vmem:[%s961 + $0x3d8] sm:$0xff] %v1088
              $region76: #{generator_sec_forward.7} parent=70 // loop_footer
                %s959 = sadd.s32 1, %s955
              $region77: #{generator_sec_forward.7} parent=70 // loop_footer_branch
                %954 = sbr.rel target = $region73
              $region78: #{generator_sec_forward.7} parent=70 // loop_exit
                _
            $region71: #{generator_sec_forward.7} parent=66 // pred_fallthru
              _
            // Predicated region
            $region79: #{generator_sec_forward.7} parent=66 // pred_check
              _
            $region80: #{generator_sec_forward.7} parent=66 // pred_check_branch
              %1091 = sbr.rel target = $region82
            $region81: #{generator_sec_forward.7} parent=66 // pred_region
              _
            $region82: #{generator_sec_forward.7} parent=66 // pred_fallthru
              _
          $region67: #{generator_sec_forward.7} parent=62 // pred_fallthru
            _
          %1092 = vnop
        $region63: #{generator_sec_forward.7} parent=54 // pred_fallthru
          _
      $region55: #{generator_sec_forward.7} parent=5 // pred_fallthru
        _
      %p1093 = scmp.le.s32.totalorder 2, %s10
      // Predicated region
      $region83: #{generator_sec_forward.7} parent=5 // pred_check
        %p1094 = pneg %p1093
      $region84: #{generator_sec_forward.7} parent=5 // pred_check_branch
        %1096 = sbr.rel (%p1094) target = $region86
      $region85: #{generator_sec_forward.7} parent=5 // pred_region
        %s1097 = ssub.s32 %s10, 2
        // Predicated region
        $region87: #{generator_sec_forward.7} parent=85 // pred_check
          %p1098 = pneg %p128
        $region88: #{generator_sec_forward.7} parent=85 // pred_check_branch
          %1100 = sbr.rel (%p1098) target = $region90
        $region89: #{generator_sec_forward.7} parent=85 // pred_region
          %s1101 = sand.u32 %s113, 1
          %s1102 = sand.u32 %s113, 1
          %s1103 = smul.addr %s1102, 512
          %s1104 = scalar_lea.vmem [#allocation3], %s1103
        $region90: #{generator_sec_forward.7} parent=85 // pred_fallthru
          _
      $region86: #{generator_sec_forward.7} parent=5 // pred_fallthru
        _
    $region6: #{generator_sec_forward.7} parent=1 // loop_footer
      %s14 = sadd.s32 1, %s10
    $region7: #{generator_sec_forward.7} parent=1 // loop_footer_branch
      %9 = sbr.rel target = $region3
    $region8: #{generator_sec_forward.7} parent=1 // loop_exit
      _

// kernel: generator_sec_forward.8
$region0: #{generator_sec_forward.8}
  #allocation0 [shape = 'u32[]', space=smem, size = 0x4, offset = 0x4, fixed_abs, tag = 'smem constant byte address 0x4 - core index']
  #allocation1 [shape = 'u32[144,128]{1,0:T(1,128)}', space=vmem, size = 0x12000, scoped, tag = 'internal scratch']
  %s0 = inlined_call_operand.vmem [shape: f32[512,64], index: 0, kind: input, shape index: {}]
  %s1 = inlined_call_operand.vmem [shape: f32[1,64], index: 1, kind: input, shape index: {}]
  %s2 = inlined_call_operand.vmem [shape: f32[1,64], index: 2, kind: input, shape index: {}]
  %s3 = inlined_call_operand.vmem [shape: bf16[64,48], index: 3, kind: input, shape index: {}]
  %s4 = inlined_call_operand.vmem [shape: f32[512,48], index: 4, kind: output, shape index: {}]
  %s5 = sld [smem:[#allocation0]]
  $region26: #{generator_sec_forward.8} parent=0
    _
  %s7 = ssub.s32 1, %s5
  %s8 = scalar_select 0, %s7, %s5
  // Predicated region
  $region2: #{generator_sec_forward.8} parent=0 // pred_check
    _
  $region3: #{generator_sec_forward.8} parent=0 // pred_check_branch
    %10 = sbr.rel (0) target = $region5
  $region4: #{generator_sec_forward.8} parent=0 // pred_region
    _
  $region5: #{generator_sec_forward.8} parent=0 // pred_fallthru
    _
  // Predicated region
  $region6: #{generator_sec_forward.8} parent=0 // pred_check
    _
  $region7: #{generator_sec_forward.8} parent=0 // pred_check_branch
    %12 = sbr.rel (0) target = $region9
  $region8: #{generator_sec_forward.8} parent=0 // pred_region
    _
  $region9: #{generator_sec_forward.8} parent=0 // pred_fallthru
    _
  // Predicated region
  $region10: #{generator_sec_forward.8} parent=0 // pred_check
    _
  $region11: #{generator_sec_forward.8} parent=0 // pred_check_branch
    %14 = sbr.rel (0) target = $region13
  $region12: #{generator_sec_forward.8} parent=0 // pred_region
    _
  $region13: #{generator_sec_forward.8} parent=0 // pred_fallthru
    _
  // Predicated region
  $region14: #{generator_sec_forward.8} parent=0 // pred_check
    _
  $region15: #{generator_sec_forward.8} parent=0 // pred_check_branch
    %16 = sbr.rel (0) target = $region17
  $region16: #{generator_sec_forward.8} parent=0 // pred_region
    _
  $region17: #{generator_sec_forward.8} parent=0 // pred_fallthru
    _
  %v18 = vld [vmem:[%s0] sm:$0xff]
  %v19 = vld [vmem:[%s0 + $0x8] sm:$0xff]
  %v20 = vld [vmem:[%s0 + $0x10] sm:$0xff]
  %v21 = vld [vmem:[%s0 + $0x18] sm:$0xff]
  %v22 = vld [vmem:[%s0 + $0x20] sm:$0xff]
  %v23 = vld [vmem:[%s0 + $0x28] sm:$0xff]
  %v24 = vld [vmem:[%s0 + $0x30] sm:$0xff]
  %v25 = vld [vmem:[%s0 + $0x38] sm:$0xff]
  %v26 = vld [vmem:[%s0 + $0x40] sm:$0xff]
  %v27 = vld [vmem:[%s0 + $0x48] sm:$0xff]
  %v28 = vld [vmem:[%s0 + $0x50] sm:$0xff]
  %v29 = vld [vmem:[%s0 + $0x58] sm:$0xff]
  %v30 = vld [vmem:[%s0 + $0x60] sm:$0xff]
  %v31 = vld [vmem:[%s0 + $0x68] sm:$0xff]
  %v32 = vld [vmem:[%s0 + $0x70] sm:$0xff]
  %v33 = vld [vmem:[%s0 + $0x78] sm:$0xff]
  %v34 = vld [vmem:[%s0 + $0x80] sm:$0xff]
  %v35 = vld [vmem:[%s0 + $0x88] sm:$0xff]
  %v36 = vld [vmem:[%s0 + $0x90] sm:$0xff]
  %v37 = vld [vmem:[%s0 + $0x98] sm:$0xff]
  %v38 = vld [vmem:[%s0 + $0xa0] sm:$0xff]
  %v39 = vld [vmem:[%s0 + $0xa8] sm:$0xff]
  %v40 = vld [vmem:[%s0 + $0xb0] sm:$0xff]
  %v41 = vld [vmem:[%s0 + $0xb8] sm:$0xff]
  %v42 = vld [vmem:[%s0 + $0xc0] sm:$0xff]
  %v43 = vld [vmem:[%s0 + $0xc8] sm:$0xff]
  %v44 = vld [vmem:[%s0 + $0xd0] sm:$0xff]
  %v45 = vld [vmem:[%s0 + $0xd8] sm:$0xff]
  %v46 = vld [vmem:[%s0 + $0xe0] sm:$0xff]
  %v47 = vld [vmem:[%s0 + $0xe8] sm:$0xff]
  %v48 = vld [vmem:[%s0 + $0xf0] sm:$0xff]
  %v49 = vld [vmem:[%s0 + $0xf8] sm:$0xff]
  %v50 = vld [vmem:[%s0 + $0x100] sm:$0xff]
  %v51 = vld [vmem:[%s0 + $0x108] sm:$0xff]
  %v52 = vld [vmem:[%s0 + $0x110] sm:$0xff]
  %v53 = vld [vmem:[%s0 + $0x118] sm:$0xff]
  %v54 = vld [vmem:[%s0 + $0x120] sm:$0xff]
  %v55 = vld [vmem:[%s0 + $0x128] sm:$0xff]
  %v56 = vld [vmem:[%s0 + $0x130] sm:$0xff]
  %v57 = vld [vmem:[%s0 + $0x138] sm:$0xff]
  %v58 = vld [vmem:[%s0 + $0x140] sm:$0xff]
  %v59 = vld [vmem:[%s0 + $0x148] sm:$0xff]
  %v60 = vld [vmem:[%s0 + $0x150] sm:$0xff]
  %v61 = vld [vmem:[%s0 + $0x158] sm:$0xff]
  %v62 = vld [vmem:[%s0 + $0x160] sm:$0xff]
  %v63 = vld [vmem:[%s0 + $0x168] sm:$0xff]
  %v64 = vld [vmem:[%s0 + $0x170] sm:$0xff]
  %v65 = vld [vmem:[%s0 + $0x178] sm:$0xff]
  %v66 = vld [vmem:[%s0 + $0x180] sm:$0xff]
  %v67 = vld [vmem:[%s0 + $0x188] sm:$0xff]
  %v68 = vld [vmem:[%s0 + $0x190] sm:$0xff]
  %v69 = vld [vmem:[%s0 + $0x198] sm:$0xff]
  %v70 = vld [vmem:[%s0 + $0x1a0] sm:$0xff]
  %v71 = vld [vmem:[%s0 + $0x1a8] sm:$0xff]
  %v72 = vld [vmem:[%s0 + $0x1b0] sm:$0xff]
  %v73 = vld [vmem:[%s0 + $0x1b8] sm:$0xff]
  %v74 = vld [vmem:[%s0 + $0x1c0] sm:$0xff]
  %v75 = vld [vmem:[%s0 + $0x1c8] sm:$0xff]
  %v76 = vld [vmem:[%s0 + $0x1d0] sm:$0xff]
  %v77 = vld [vmem:[%s0 + $0x1d8] sm:$0xff]
  %v78 = vld [vmem:[%s0 + $0x1e0] sm:$0xff]
  %v79 = vld [vmem:[%s0 + $0x1e8] sm:$0xff]
  %v80 = vld [vmem:[%s0 + $0x1f0] sm:$0xff]
  %v81 = vld [vmem:[%s0 + $0x1f8] sm:$0xff]
  %vm82 = vcmask 523264
  %v83 = vsel %vm82, %v18, 0.0
  %v84 = vsel %vm82, %v19, 0.0
  %v85 = vadd.f32 %v83, %v84
  %v86 = vsel %vm82, %v20, 0.0
  %v87 = vadd.f32 %v85, %v86
  %v88 = vsel %vm82, %v21, 0.0
  %v89 = vadd.f32 %v87, %v88
  %v90 = vsel %vm82, %v22, 0.0
  %v91 = vadd.f32 %v89, %v90
  %v92 = vsel %vm82, %v23, 0.0
  %v93 = vadd.f32 %v91, %v92
  %v94 = vsel %vm82, %v24, 0.0
  %v95 = vadd.f32 %v93, %v94
  %v96 = vsel %vm82, %v25, 0.0
  %v97 = vadd.f32 %v95, %v96
  %v98 = vsel %vm82, %v26, 0.0
  %v99 = vadd.f32 %v97, %v98
  %v100 = vsel %vm82, %v27, 0.0
  %v101 = vadd.f32 %v99, %v100
  %v102 = vsel %vm82, %v28, 0.0
  %v103 = vadd.f32 %v101, %v102
  %v104 = vsel %vm82, %v29, 0.0
  %v105 = vadd.f32 %v103, %v104
  %v106 = vsel %vm82, %v30, 0.0
  %v107 = vadd.f32 %v105, %v106
  %v108 = vsel %vm82, %v31, 0.0
  %v109 = vadd.f32 %v107, %v108
  %v110 = vsel %vm82, %v32, 0.0
  %v111 = vadd.f32 %v109, %v110
  %v112 = vsel %vm82, %v33, 0.0
  %v113 = vadd.f32 %v111, %v112
  %v114 = vsel %vm82, %v34, 0.0
  %v115 = vadd.f32 %v113, %v114
  %v116 = vsel %vm82, %v35, 0.0
  %v117 = vadd.f32 %v115, %v116
  %v118 = vsel %vm82, %v36, 0.0
  %v119 = vadd.f32 %v117, %v118
  %v120 = vsel %vm82, %v37, 0.0
  %v121 = vadd.f32 %v119, %v120
  %v122 = vsel %vm82, %v38, 0.0
  %v123 = vadd.f32 %v121, %v122
  %v124 = vsel %vm82, %v39, 0.0
  %v125 = vadd.f32 %v123, %v124
  %v126 = vsel %vm82, %v40, 0.0
  %v127 = vadd.f32 %v125, %v126
  %v128 = vsel %vm82, %v41, 0.0
  %v129 = vadd.f32 %v127, %v128
  %v130 = vsel %vm82, %v42, 0.0
  %v131 = vadd.f32 %v129, %v130
  %v132 = vsel %vm82, %v43, 0.0
  %v133 = vadd.f32 %v131, %v132
  %v134 = vsel %vm82, %v44, 0.0
  %v135 = vadd.f32 %v133, %v134
  %v136 = vsel %vm82, %v45, 0.0
  %v137 = vadd.f32 %v135, %v136
  %v138 = vsel %vm82, %v46, 0.0
  %v139 = vadd.f32 %v137, %v138
  %v140 = vsel %vm82, %v47, 0.0
  %v141 = vadd.f32 %v139, %v140
  %v142 = vsel %vm82, %v48, 0.0
  %v143 = vadd.f32 %v141, %v142
  %v144 = vsel %vm82, %v49, 0.0
  %v145 = vadd.f32 %v143, %v144
  %v146 = vsel %vm82, %v50, 0.0
  %v147 = vadd.f32 %v145, %v146
  %v148 = vsel %vm82, %v51, 0.0
  %v149 = vadd.f32 %v147, %v148
  %v150 = vsel %vm82, %v52, 0.0
  %v151 = vadd.f32 %v149, %v150
  %v152 = vsel %vm82, %v53, 0.0
  %v153 = vadd.f32 %v151, %v152
  %v154 = vsel %vm82, %v54, 0.0
  %v155 = vadd.f32 %v153, %v154
  %v156 = vsel %vm82, %v55, 0.0
  %v157 = vadd.f32 %v155, %v156
  %v158 = vsel %vm82, %v56, 0.0
  %v159 = vadd.f32 %v157, %v158
  %v160 = vsel %vm82, %v57, 0.0
  %v161 = vadd.f32 %v159, %v160
  %v162 = vsel %vm82, %v58, 0.0
  %v163 = vadd.f32 %v161, %v162
  %v164 = vsel %vm82, %v59, 0.0
  %v165 = vadd.f32 %v163, %v164
  %v166 = vsel %vm82, %v60, 0.0
  %v167 = vadd.f32 %v165, %v166
  %v168 = vsel %vm82, %v61, 0.0
  %v169 = vadd.f32 %v167, %v168
  %v170 = vsel %vm82, %v62, 0.0
  %v171 = vadd.f32 %v169, %v170
  %v172 = vsel %vm82, %v63, 0.0
  %v173 = vadd.f32 %v171, %v172
  %v174 = vsel %vm82, %v64, 0.0
  %v175 = vadd.f32 %v173, %v174
  %v176 = vsel %vm82, %v65, 0.0
  %v177 = vadd.f32 %v175, %v176
  %v178 = vsel %vm82, %v66, 0.0
  %v179 = vadd.f32 %v177, %v178
  %v180 = vsel %vm82, %v67, 0.0
  %v181 = vadd.f32 %v179, %v180
  %v182 = vsel %vm82, %v68, 0.0
  %v183 = vadd.f32 %v181, %v182
  %v184 = vsel %vm82, %v69, 0.0
  %v185 = vadd.f32 %v183, %v184
  %v186 = vsel %vm82, %v70, 0.0
  %v187 = vadd.f32 %v185, %v186
  %v188 = vsel %vm82, %v71, 0.0
  %v189 = vadd.f32 %v187, %v188
  %v190 = vsel %vm82, %v72, 0.0
  %v191 = vadd.f32 %v189, %v190
  %v192 = vsel %vm82, %v73, 0.0
  %v193 = vadd.f32 %v191, %v192
  %v194 = vsel %vm82, %v74, 0.0
  %v195 = vadd.f32 %v193, %v194
  %v196 = vsel %vm82, %v75, 0.0
  %v197 = vadd.f32 %v195, %v196
  %v198 = vsel %vm82, %v76, 0.0
  %v199 = vadd.f32 %v197, %v198
  %v200 = vsel %vm82, %v77, 0.0
  %v201 = vadd.f32 %v199, %v200
  %v202 = vsel %vm82, %v78, 0.0
  %v203 = vadd.f32 %v201, %v202
  %v204 = vsel %vm82, %v79, 0.0
  %v205 = vadd.f32 %v203, %v204
  %v206 = vsel %vm82, %v80, 0.0
  %v207 = vadd.f32 %v205, %v206
  %v208 = vsel %vm82, %v81, 0.0
  %v209 = vadd.f32 %v207, %v208
  %v210 = vrot.slane %v209, 4
  %v211 = vadd.f32 %v209, %v210
  %v212 = vrot.slane %v211, 2
  %v213 = vadd.f32 %v211, %v212
  %v214 = vrot.slane %v213, 1
  %v215 = vadd.f32 %v213, %v214
  %v216 = vrcp.pop 512.0
  %v217 = vmul.f32 %v215, %v216
  %v218 = vsub.f32 %v18, %v217
  %v219 = vsub.f32 %v19, %v217
  %v220 = vsub.f32 %v20, %v217
  %v221 = vsub.f32 %v21, %v217
  %v222 = vsub.f32 %v22, %v217
  %v223 = vsub.f32 %v23, %v217
  %v224 = vsub.f32 %v24, %v217
  %v225 = vsub.f32 %v25, %v217
  %v226 = vsub.f32 %v26, %v217
  %v227 = vsub.f32 %v27, %v217
  %v228 = vsub.f32 %v28, %v217
  %v229 = vsub.f32 %v29, %v217
  %v230 = vsub.f32 %v30, %v217
  %v231 = vsub.f32 %v31, %v217
  %v232 = vsub.f32 %v32, %v217
  %v233 = vsub.f32 %v33, %v217
  %v234 = vsub.f32 %v34, %v217
  %v235 = vsub.f32 %v35, %v217
  %v236 = vsub.f32 %v36, %v217
  %v237 = vsub.f32 %v37, %v217
  %v238 = vsub.f32 %v38, %v217
  %v239 = vsub.f32 %v39, %v217
  %v240 = vsub.f32 %v40, %v217
  %v241 = vsub.f32 %v41, %v217
  %v242 = vsub.f32 %v42, %v217
  %v243 = vsub.f32 %v43, %v217
  %v244 = vsub.f32 %v44, %v217
  %v245 = vsub.f32 %v45, %v217
  %v246 = vsub.f32 %v46, %v217
  %v247 = vsub.f32 %v47, %v217
  %v248 = vsub.f32 %v48, %v217
  %v249 = vsub.f32 %v49, %v217
  %v250 = vsub.f32 %v50, %v217
  %v251 = vsub.f32 %v51, %v217
  %v252 = vsub.f32 %v52, %v217
  %v253 = vsub.f32 %v53, %v217
  %v254 = vsub.f32 %v54, %v217
  %v255 = vsub.f32 %v55, %v217
  %v256 = vsub.f32 %v56, %v217
  %v257 = vsub.f32 %v57, %v217
  %v258 = vsub.f32 %v58, %v217
  %v259 = vsub.f32 %v59, %v217
  %v260 = vsub.f32 %v60, %v217
  %v261 = vsub.f32 %v61, %v217
  %v262 = vsub.f32 %v62, %v217
  %v263 = vsub.f32 %v63, %v217
  %v264 = vsub.f32 %v64, %v217
  %v265 = vsub.f32 %v65, %v217
  %v266 = vsub.f32 %v66, %v217
  %v267 = vsub.f32 %v67, %v217
  %v268 = vsub.f32 %v68, %v217
  %v269 = vsub.f32 %v69, %v217
  %v270 = vsub.f32 %v70, %v217
  %v271 = vsub.f32 %v71, %v217
  %v272 = vsub.f32 %v72, %v217
  %v273 = vsub.f32 %v73, %v217
  %v274 = vsub.f32 %v74, %v217
  %v275 = vsub.f32 %v75, %v217
  %v276 = vsub.f32 %v76, %v217
  %v277 = vsub.f32 %v77, %v217
  %v278 = vsub.f32 %v78, %v217
  %v279 = vsub.f32 %v79, %v217
  %v280 = vsub.f32 %v80, %v217
  %v281 = vsub.f32 %v81, %v217
  %v282 = vmul.f32 %v218, %v218
  %v283 = vmul.f32 %v219, %v219
  %v284 = vmul.f32 %v220, %v220
  %v285 = vmul.f32 %v221, %v221
  %v286 = vmul.f32 %v222, %v222
  %v287 = vmul.f32 %v223, %v223
  %v288 = vmul.f32 %v224, %v224
  %v289 = vmul.f32 %v225, %v225
  %v290 = vmul.f32 %v226, %v226
  %v291 = vmul.f32 %v227, %v227
  %v292 = vmul.f32 %v228, %v228
  %v293 = vmul.f32 %v229, %v229
  %v294 = vmul.f32 %v230, %v230
  %v295 = vmul.f32 %v231, %v231
  %v296 = vmul.f32 %v232, %v232
  %v297 = vmul.f32 %v233, %v233
  %v298 = vmul.f32 %v234, %v234
  %v299 = vmul.f32 %v235, %v235
  %v300 = vmul.f32 %v236, %v236
  %v301 = vmul.f32 %v237, %v237
  %v302 = vmul.f32 %v238, %v238
  %v303 = vmul.f32 %v239, %v239
  %v304 = vmul.f32 %v240, %v240
  %v305 = vmul.f32 %v241, %v241
  %v306 = vmul.f32 %v242, %v242
  %v307 = vmul.f32 %v243, %v243
  %v308 = vmul.f32 %v244, %v244
  %v309 = vmul.f32 %v245, %v245
  %v310 = vmul.f32 %v246, %v246
  %v311 = vmul.f32 %v247, %v247
  %v312 = vmul.f32 %v248, %v248
  %v313 = vmul.f32 %v249, %v249
  %v314 = vmul.f32 %v250, %v250
  %v315 = vmul.f32 %v251, %v251
  %v316 = vmul.f32 %v252, %v252
  %v317 = vmul.f32 %v253, %v253
  %v318 = vmul.f32 %v254, %v254
  %v319 = vmul.f32 %v255, %v255
  %v320 = vmul.f32 %v256, %v256
  %v321 = vmul.f32 %v257, %v257
  %v322 = vmul.f32 %v258, %v258
  %v323 = vmul.f32 %v259, %v259
  %v324 = vmul.f32 %v260, %v260
  %v325 = vmul.f32 %v261, %v261
  %v326 = vmul.f32 %v262, %v262
  %v327 = vmul.f32 %v263, %v263
  %v328 = vmul.f32 %v264, %v264
  %v329 = vmul.f32 %v265, %v265
  %v330 = vmul.f32 %v266, %v266
  %v331 = vmul.f32 %v267, %v267
  %v332 = vmul.f32 %v268, %v268
  %v333 = vmul.f32 %v269, %v269
  %v334 = vmul.f32 %v270, %v270
  %v335 = vmul.f32 %v271, %v271
  %v336 = vmul.f32 %v272, %v272
  %v337 = vmul.f32 %v273, %v273
  %v338 = vmul.f32 %v274, %v274
  %v339 = vmul.f32 %v275, %v275
  %v340 = vmul.f32 %v276, %v276
  %v341 = vmul.f32 %v277, %v277
  %v342 = vmul.f32 %v278, %v278
  %v343 = vmul.f32 %v279, %v279
  %v344 = vmul.f32 %v280, %v280
  %v345 = vmul.f32 %v281, %v281
  %v346 = vsel %vm82, %v282, 0.0
  %v347 = vsel %vm82, %v283, 0.0
  %v348 = vadd.f32 %v346, %v347
  %v349 = vsel %vm82, %v284, 0.0
  %v350 = vadd.f32 %v348, %v349
  %v351 = vsel %vm82, %v285, 0.0
  %v352 = vadd.f32 %v350, %v351
  %v353 = vsel %vm82, %v286, 0.0
  %v354 = vadd.f32 %v352, %v353
  %v355 = vsel %vm82, %v287, 0.0
  %v356 = vadd.f32 %v354, %v355
  %v357 = vsel %vm82, %v288, 0.0
  %v358 = vadd.f32 %v356, %v357
  %v359 = vsel %vm82, %v289, 0.0
  %v360 = vadd.f32 %v358, %v359
  %v361 = vsel %vm82, %v290, 0.0
  %v362 = vadd.f32 %v360, %v361
  %v363 = vsel %vm82, %v291, 0.0
  %v364 = vadd.f32 %v362, %v363
  %v365 = vsel %vm82, %v292, 0.0
  %v366 = vadd.f32 %v364, %v365
  %v367 = vsel %vm82, %v293, 0.0
  %v368 = vadd.f32 %v366, %v367
  %v369 = vsel %vm82, %v294, 0.0
  %v370 = vadd.f32 %v368, %v369
  %v371 = vsel %vm82, %v295, 0.0
  %v372 = vadd.f32 %v370, %v371
  %v373 = vsel %vm82, %v296, 0.0
  %v374 = vadd.f32 %v372, %v373
  %v375 = vsel %vm82, %v297, 0.0
  %v376 = vadd.f32 %v374, %v375
  %v377 = vsel %vm82, %v298, 0.0
  %v378 = vadd.f32 %v376, %v377
  %v379 = vsel %vm82, %v299, 0.0
  %v380 = vadd.f32 %v378, %v379
  %v381 = vsel %vm82, %v300, 0.0
  %v382 = vadd.f32 %v380, %v381
  %v383 = vsel %vm82, %v301, 0.0
  %v384 = vadd.f32 %v382, %v383
  %v385 = vsel %vm82, %v302, 0.0
  %v386 = vadd.f32 %v384, %v385
  %v387 = vsel %vm82, %v303, 0.0
  %v388 = vadd.f32 %v386, %v387
  %v389 = vsel %vm82, %v304, 0.0
  %v390 = vadd.f32 %v388, %v389
  %v391 = vsel %vm82, %v305, 0.0
  %v392 = vadd.f32 %v390, %v391
  %v393 = vsel %vm82, %v306, 0.0
  %v394 = vadd.f32 %v392, %v393
  %v395 = vsel %vm82, %v307, 0.0
  %v396 = vadd.f32 %v394, %v395
  %v397 = vsel %vm82, %v308, 0.0
  %v398 = vadd.f32 %v396, %v397
  %v399 = vsel %vm82, %v309, 0.0
  %v400 = vadd.f32 %v398, %v399
  %v401 = vsel %vm82, %v310, 0.0
  %v402 = vadd.f32 %v400, %v401
  %v403 = vsel %vm82, %v311, 0.0
  %v404 = vadd.f32 %v402, %v403
  %v405 = vsel %vm82, %v312, 0.0
  %v406 = vadd.f32 %v404, %v405
  %v407 = vsel %vm82, %v313, 0.0
  %v408 = vadd.f32 %v406, %v407
  %v409 = vsel %vm82, %v314, 0.0
  %v410 = vadd.f32 %v408, %v409
  %v411 = vsel %vm82, %v315, 0.0
  %v412 = vadd.f32 %v410, %v411
  %v413 = vsel %vm82, %v316, 0.0
  %v414 = vadd.f32 %v412, %v413
  %v415 = vsel %vm82, %v317, 0.0
  %v416 = vadd.f32 %v414, %v415
  %v417 = vsel %vm82, %v318, 0.0
  %v418 = vadd.f32 %v416, %v417
  %v419 = vsel %vm82, %v319, 0.0
  %v420 = vadd.f32 %v418, %v419
  %v421 = vsel %vm82, %v320, 0.0
  %v422 = vadd.f32 %v420, %v421
  %v423 = vsel %vm82, %v321, 0.0
  %v424 = vadd.f32 %v422, %v423
  %v425 = vsel %vm82, %v322, 0.0
  %v426 = vadd.f32 %v424, %v425
  %v427 = vsel %vm82, %v323, 0.0
  %v428 = vadd.f32 %v426, %v427
  %v429 = vsel %vm82, %v324, 0.0
  %v430 = vadd.f32 %v428, %v429
  %v431 = vsel %vm82, %v325, 0.0
  %v432 = vadd.f32 %v430, %v431
  %v433 = vsel %vm82, %v326, 0.0
  %v434 = vadd.f32 %v432, %v433
  %v435 = vsel %vm82, %v327, 0.0
  %v436 = vadd.f32 %v434, %v435
  %v437 = vsel %vm82, %v328, 0.0
  %v438 = vadd.f32 %v436, %v437
  %v439 = vsel %vm82, %v329, 0.0
  %v440 = vadd.f32 %v438, %v439
  %v441 = vsel %vm82, %v330, 0.0
  %v442 = vadd.f32 %v440, %v441
  %v443 = vsel %vm82, %v331, 0.0
  %v444 = vadd.f32 %v442, %v443
  %v445 = vsel %vm82, %v332, 0.0
  %v446 = vadd.f32 %v444, %v445
  %v447 = vsel %vm82, %v333, 0.0
  %v448 = vadd.f32 %v446, %v447
  %v449 = vsel %vm82, %v334, 0.0
  %v450 = vadd.f32 %v448, %v449
  %v451 = vsel %vm82, %v335, 0.0
  %v452 = vadd.f32 %v450, %v451
  %v453 = vsel %vm82, %v336, 0.0
  %v454 = vadd.f32 %v452, %v453
  %v455 = vsel %vm82, %v337, 0.0
  %v456 = vadd.f32 %v454, %v455
  %v457 = vsel %vm82, %v338, 0.0
  %v458 = vadd.f32 %v456, %v457
  %v459 = vsel %vm82, %v339, 0.0
  %v460 = vadd.f32 %v458, %v459
  %v461 = vsel %vm82, %v340, 0.0
  %v462 = vadd.f32 %v460, %v461
  %v463 = vsel %vm82, %v341, 0.0
  %v464 = vadd.f32 %v462, %v463
  %v465 = vsel %vm82, %v342, 0.0
  %v466 = vadd.f32 %v464, %v465
  %v467 = vsel %vm82, %v343, 0.0
  %v468 = vadd.f32 %v466, %v467
  %v469 = vsel %vm82, %v344, 0.0
  %v470 = vadd.f32 %v468, %v469
  %v471 = vsel %vm82, %v345, 0.0
  %v472 = vadd.f32 %v470, %v471
  %v473 = vrot.slane %v472, 4
  %v474 = vadd.f32 %v472, %v473
  %v475 = vrot.slane %v474, 2
  %v476 = vadd.f32 %v474, %v475
  %v477 = vrot.slane %v476, 1
  %v478 = vadd.f32 %v476, %v477
  %v479 = vmul.f32 %v478, %v216
  %v480 = vadd.f32 %v479, 1e-05
  %v481 = vrsqrt.pop %v480
  %v482 = vmul.f32 %v218, %v481
  %v483 = vmul.f32 %v219, %v481
  %v484 = vmul.f32 %v220, %v481
  %v485 = vmul.f32 %v221, %v481
  %v486 = vmul.f32 %v222, %v481
  %v487 = vmul.f32 %v223, %v481
  %v488 = vmul.f32 %v224, %v481
  %v489 = vmul.f32 %v225, %v481
  %v490 = vmul.f32 %v226, %v481
  %v491 = vmul.f32 %v227, %v481
  %v492 = vmul.f32 %v228, %v481
  %v493 = vmul.f32 %v229, %v481
  %v494 = vmul.f32 %v230, %v481
  %v495 = vmul.f32 %v231, %v481
  %v496 = vmul.f32 %v232, %v481
  %v497 = vmul.f32 %v233, %v481
  %v498 = vmul.f32 %v234, %v481
  %v499 = vmul.f32 %v235, %v481
  %v500 = vmul.f32 %v236, %v481
  %v501 = vmul.f32 %v237, %v481
  %v502 = vmul.f32 %v238, %v481
  %v503 = vmul.f32 %v239, %v481
  %v504 = vmul.f32 %v240, %v481
  %v505 = vmul.f32 %v241, %v481
  %v506 = vmul.f32 %v242, %v481
  %v507 = vmul.f32 %v243, %v481
  %v508 = vmul.f32 %v244, %v481
  %v509 = vmul.f32 %v245, %v481
  %v510 = vmul.f32 %v246, %v481
  %v511 = vmul.f32 %v247, %v481
  %v512 = vmul.f32 %v248, %v481
  %v513 = vmul.f32 %v249, %v481
  %v514 = vmul.f32 %v250, %v481
  %v515 = vmul.f32 %v251, %v481
  %v516 = vmul.f32 %v252, %v481
  %v517 = vmul.f32 %v253, %v481
  %v518 = vmul.f32 %v254, %v481
  %v519 = vmul.f32 %v255, %v481
  %v520 = vmul.f32 %v256, %v481
  %v521 = vmul.f32 %v257, %v481
  %v522 = vmul.f32 %v258, %v481
  %v523 = vmul.f32 %v259, %v481
  %v524 = vmul.f32 %v260, %v481
  %v525 = vmul.f32 %v261, %v481
  %v526 = vmul.f32 %v262, %v481
  %v527 = vmul.f32 %v263, %v481
  %v528 = vmul.f32 %v264, %v481
  %v529 = vmul.f32 %v265, %v481
  %v530 = vmul.f32 %v266, %v481
  %v531 = vmul.f32 %v267, %v481
  %v532 = vmul.f32 %v268, %v481
  %v533 = vmul.f32 %v269, %v481
  %v534 = vmul.f32 %v270, %v481
  %v535 = vmul.f32 %v271, %v481
  %v536 = vmul.f32 %v272, %v481
  %v537 = vmul.f32 %v273, %v481
  %v538 = vmul.f32 %v274, %v481
  %v539 = vmul.f32 %v275, %v481
  %v540 = vmul.f32 %v276, %v481
  %v541 = vmul.f32 %v277, %v481
  %v542 = vmul.f32 %v278, %v481
  %v543 = vmul.f32 %v279, %v481
  %v544 = vmul.f32 %v280, %v481
  %v545 = vmul.f32 %v281, %v481
  %v546 = vld [vmem:[%s1] sm:$0x1]
  %v548 = vlaneseq
  %v549 = vshrl.u32 %v548, 7
  %v550 = vsub.s32 0, %v549
  %v551 = vrot.slane %v546, %v550
  %v553 = vmul.f32 %v482, %v551
  %v554 = vmul.f32 %v483, %v551
  %v555 = vmul.f32 %v484, %v551
  %v556 = vmul.f32 %v485, %v551
  %v557 = vmul.f32 %v486, %v551
  %v558 = vmul.f32 %v487, %v551
  %v559 = vmul.f32 %v488, %v551
  %v560 = vmul.f32 %v489, %v551
  %v561 = vmul.f32 %v490, %v551
  %v562 = vmul.f32 %v491, %v551
  %v563 = vmul.f32 %v492, %v551
  %v564 = vmul.f32 %v493, %v551
  %v565 = vmul.f32 %v494, %v551
  %v566 = vmul.f32 %v495, %v551
  %v567 = vmul.f32 %v496, %v551
  %v568 = vmul.f32 %v497, %v551
  %v569 = vmul.f32 %v498, %v551
  %v570 = vmul.f32 %v499, %v551
  %v571 = vmul.f32 %v500, %v551
  %v572 = vmul.f32 %v501, %v551
  %v573 = vmul.f32 %v502, %v551
  %v574 = vmul.f32 %v503, %v551
  %v575 = vmul.f32 %v504, %v551
  %v576 = vmul.f32 %v505, %v551
  %v577 = vmul.f32 %v506, %v551
  %v578 = vmul.f32 %v507, %v551
  %v579 = vmul.f32 %v508, %v551
  %v580 = vmul.f32 %v509, %v551
  %v581 = vmul.f32 %v510, %v551
  %v582 = vmul.f32 %v511, %v551
  %v583 = vmul.f32 %v512, %v551
  %v584 = vmul.f32 %v513, %v551
  %v585 = vmul.f32 %v514, %v551
  %v586 = vmul.f32 %v515, %v551
  %v587 = vmul.f32 %v516, %v551
  %v588 = vmul.f32 %v517, %v551
  %v589 = vmul.f32 %v518, %v551
  %v590 = vmul.f32 %v519, %v551
  %v591 = vmul.f32 %v520, %v551
  %v592 = vmul.f32 %v521, %v551
  %v593 = vmul.f32 %v522, %v551
  %v594 = vmul.f32 %v523, %v551
  %v595 = vmul.f32 %v524, %v551
  %v596 = vmul.f32 %v525, %v551
  %v597 = vmul.f32 %v526, %v551
  %v598 = vmul.f32 %v527, %v551
  %v599 = vmul.f32 %v528, %v551
  %v600 = vmul.f32 %v529, %v551
  %v601 = vmul.f32 %v530, %v551
  %v602 = vmul.f32 %v531, %v551
  %v603 = vmul.f32 %v532, %v551
  %v604 = vmul.f32 %v533, %v551
  %v605 = vmul.f32 %v534, %v551
  %v606 = vmul.f32 %v535, %v551
  %v607 = vmul.f32 %v536, %v551
  %v608 = vmul.f32 %v537, %v551
  %v609 = vmul.f32 %v538, %v551
  %v610 = vmul.f32 %v539, %v551
  %v611 = vmul.f32 %v540, %v551
  %v612 = vmul.f32 %v541, %v551
  %v613 = vmul.f32 %v542, %v551
  %v614 = vmul.f32 %v543, %v551
  %v615 = vmul.f32 %v544, %v551
  %v616 = vmul.f32 %v545, %v551
  %v617 = vld [vmem:[%s2] sm:$0x1]
  %v619 = vlaneseq
  %v620 = vshrl.u32 %v619, 7
  %v621 = vsub.s32 0, %v620
  %v622 = vrot.slane %v617, %v621
  %v624 = vadd.f32 %v553, %v622
  %v625 = vadd.f32 %v554, %v622
  %v626 = vadd.f32 %v555, %v622
  %v627 = vadd.f32 %v556, %v622
  %v628 = vadd.f32 %v557, %v622
  %v629 = vadd.f32 %v558, %v622
  %v630 = vadd.f32 %v559, %v622
  %v631 = vadd.f32 %v560, %v622
  %v632 = vadd.f32 %v561, %v622
  %v633 = vadd.f32 %v562, %v622
  %v634 = vadd.f32 %v563, %v622
  %v635 = vadd.f32 %v564, %v622
  %v636 = vadd.f32 %v565, %v622
  %v637 = vadd.f32 %v566, %v622
  %v638 = vadd.f32 %v567, %v622
  %v639 = vadd.f32 %v568, %v622
  %v640 = vadd.f32 %v569, %v622
  %v641 = vadd.f32 %v570, %v622
  %v642 = vadd.f32 %v571, %v622
  %v643 = vadd.f32 %v572, %v622
  %v644 = vadd.f32 %v573, %v622
  %v645 = vadd.f32 %v574, %v622
  %v646 = vadd.f32 %v575, %v622
  %v647 = vadd.f32 %v576, %v622
  %v648 = vadd.f32 %v577, %v622
  %v649 = vadd.f32 %v578, %v622
  %v650 = vadd.f32 %v579, %v622
  %v651 = vadd.f32 %v580, %v622
  %v652 = vadd.f32 %v581, %v622
  %v653 = vadd.f32 %v582, %v622
  %v654 = vadd.f32 %v583, %v622
  %v655 = vadd.f32 %v584, %v622
  %v656 = vadd.f32 %v585, %v622
  %v657 = vadd.f32 %v586, %v622
  %v658 = vadd.f32 %v587, %v622
  %v659 = vadd.f32 %v588, %v622
  %v660 = vadd.f32 %v589, %v622
  %v661 = vadd.f32 %v590, %v622
  %v662 = vadd.f32 %v591, %v622
  %v663 = vadd.f32 %v592, %v622
  %v664 = vadd.f32 %v593, %v622
  %v665 = vadd.f32 %v594, %v622
  %v666 = vadd.f32 %v595, %v622
  %v667 = vadd.f32 %v596, %v622
  %v668 = vadd.f32 %v597, %v622
  %v669 = vadd.f32 %v598, %v622
  %v670 = vadd.f32 %v599, %v622
  %v671 = vadd.f32 %v600, %v622
  %v672 = vadd.f32 %v601, %v622
  %v673 = vadd.f32 %v602, %v622
  %v674 = vadd.f32 %v603, %v622
  %v675 = vadd.f32 %v604, %v622
  %v676 = vadd.f32 %v605, %v622
  %v677 = vadd.f32 %v606, %v622
  %v678 = vadd.f32 %v607, %v622
  %v679 = vadd.f32 %v608, %v622
  %v680 = vadd.f32 %v609, %v622
  %v681 = vadd.f32 %v610, %v622
  %v682 = vadd.f32 %v611, %v622
  %v683 = vadd.f32 %v612, %v622
  %v684 = vadd.f32 %v613, %v622
  %v685 = vadd.f32 %v614, %v622
  %v686 = vadd.f32 %v615, %v622
  %v687 = vadd.f32 %v616, %v622
  %v688 = vmax.f32 %v624, 0.0
  %v689 = vmax.f32 %v625, 0.0
  %v690 = vmax.f32 %v626, 0.0
  %v691 = vmax.f32 %v627, 0.0
  %v692 = vmax.f32 %v628, 0.0
  %v693 = vmax.f32 %v629, 0.0
  %v694 = vmax.f32 %v630, 0.0
  %v695 = vmax.f32 %v631, 0.0
  %v696 = vmax.f32 %v632, 0.0
  %v697 = vmax.f32 %v633, 0.0
  %v698 = vmax.f32 %v634, 0.0
  %v699 = vmax.f32 %v635, 0.0
  %v700 = vmax.f32 %v636, 0.0
  %v701 = vmax.f32 %v637, 0.0
  %v702 = vmax.f32 %v638, 0.0
  %v703 = vmax.f32 %v639, 0.0
  %v704 = vmax.f32 %v640, 0.0
  %v705 = vmax.f32 %v641, 0.0
  %v706 = vmax.f32 %v642, 0.0
  %v707 = vmax.f32 %v643, 0.0
  %v708 = vmax.f32 %v644, 0.0
  %v709 = vmax.f32 %v645, 0.0
  %v710 = vmax.f32 %v646, 0.0
  %v711 = vmax.f32 %v647, 0.0
  %v712 = vmax.f32 %v648, 0.0
  %v713 = vmax.f32 %v649, 0.0
  %v714 = vmax.f32 %v650, 0.0
  %v715 = vmax.f32 %v651, 0.0
  %v716 = vmax.f32 %v652, 0.0
  %v717 = vmax.f32 %v653, 0.0
  %v718 = vmax.f32 %v654, 0.0
  %v719 = vmax.f32 %v655, 0.0
  %v720 = vmax.f32 %v656, 0.0
  %v721 = vmax.f32 %v657, 0.0
  %v722 = vmax.f32 %v658, 0.0
  %v723 = vmax.f32 %v659, 0.0
  %v724 = vmax.f32 %v660, 0.0
  %v725 = vmax.f32 %v661, 0.0
  %v726 = vmax.f32 %v662, 0.0
  %v727 = vmax.f32 %v663, 0.0
  %v728 = vmax.f32 %v664, 0.0
  %v729 = vmax.f32 %v665, 0.0
  %v730 = vmax.f32 %v666, 0.0
  %v731 = vmax.f32 %v667, 0.0
  %v732 = vmax.f32 %v668, 0.0
  %v733 = vmax.f32 %v669, 0.0
  %v734 = vmax.f32 %v670, 0.0
  %v735 = vmax.f32 %v671, 0.0
  %v736 = vmax.f32 %v672, 0.0
  %v737 = vmax.f32 %v673, 0.0
  %v738 = vmax.f32 %v674, 0.0
  %v739 = vmax.f32 %v675, 0.0
  %v740 = vmax.f32 %v676, 0.0
  %v741 = vmax.f32 %v677, 0.0
  %v742 = vmax.f32 %v678, 0.0
  %v743 = vmax.f32 %v679, 0.0
  %v744 = vmax.f32 %v680, 0.0
  %v745 = vmax.f32 %v681, 0.0
  %v746 = vmax.f32 %v682, 0.0
  %v747 = vmax.f32 %v683, 0.0
  %v748 = vmax.f32 %v684, 0.0
  %v749 = vmax.f32 %v685, 0.0
  %v750 = vmax.f32 %v686, 0.0
  %v751 = vmax.f32 %v687, 0.0
  %v752 = vpack.c.bf16 %v689, %v688
  %v753 = vpack.c.bf16 %v691, %v690
  %v754 = vpack.c.bf16 %v693, %v692
  %v755 = vpack.c.bf16 %v695, %v694
  %v756 = vpack.c.bf16 %v697, %v696
  %v757 = vpack.c.bf16 %v699, %v698
  %v758 = vpack.c.bf16 %v701, %v700
  %v759 = vpack.c.bf16 %v703, %v702
  %v760 = vpack.c.bf16 %v705, %v704
  %v761 = vpack.c.bf16 %v707, %v706
  %v762 = vpack.c.bf16 %v709, %v708
  %v763 = vpack.c.bf16 %v711, %v710
  %v764 = vpack.c.bf16 %v713, %v712
  %v765 = vpack.c.bf16 %v715, %v714
  %v766 = vpack.c.bf16 %v717, %v716
  %v767 = vpack.c.bf16 %v719, %v718
  %v768 = vpack.c.bf16 %v721, %v720
  %v769 = vpack.c.bf16 %v723, %v722
  %v770 = vpack.c.bf16 %v725, %v724
  %v771 = vpack.c.bf16 %v727, %v726
  %v772 = vpack.c.bf16 %v729, %v728
  %v773 = vpack.c.bf16 %v731, %v730
  %v774 = vpack.c.bf16 %v733, %v732
  %v775 = vpack.c.bf16 %v735, %v734
  %v776 = vpack.c.bf16 %v737, %v736
  %v777 = vpack.c.bf16 %v739, %v738
  %v778 = vpack.c.bf16 %v741, %v740
  %v779 = vpack.c.bf16 %v743, %v742
  %v780 = vpack.c.bf16 %v745, %v744
  %v781 = vpack.c.bf16 %v747, %v746
  %v782 = vpack.c.bf16 %v749, %v748
  %v783 = vpack.c.bf16 %v751, %v750
  %v784 = vld [vmem:[%s3] sm:$0xf]
  %v785 = vld [vmem:[%s3 + $0x4] sm:$0xf]
  %v786 = vld [vmem:[%s3 + $0x8] sm:$0xf]
  %v787 = vld [vmem:[%s3 + $0xc] sm:$0xf]
  %v788 = vld [vmem:[%s3 + $0x10] sm:$0xf]
  %v789 = vld [vmem:[%s3 + $0x14] sm:$0xf]
  %v790 = vld [vmem:[%s3 + $0x18] sm:$0xf]
  %v791 = vld [vmem:[%s3 + $0x1c] sm:$0xf]
  %v800 = vunpack.c.l.b16 %v784
  %v801 = vunpack.c.l.b16 %v785
  %v802 = vunpack.c.l.b16 %v786
  %v803 = vunpack.c.l.b16 %v787
  %v804 = vunpack.c.l.b16 %v788
  %v805 = vunpack.c.l.b16 %v789
  %v806 = vunpack.c.l.b16 %v790
  %v807 = vunpack.c.l.b16 %v791
  %v808 = vpack.c.b16 %v801, %v800
  %v809 = vpack.c.b16 %v803, %v802
  %v810 = vpack.c.b16 %v805, %v804
  %v811 = vpack.c.b16 %v807, %v806
  %v817 = vsel %vm82, %v752, 0
  %v820 = vsel %vm82, %v753, 0
  %v823 = vsel %vm82, %v754, 0
  %v826 = vsel %vm82, %v755, 0
  %v829 = vsel %vm82, %v756, 0
  %v832 = vsel %vm82, %v757, 0
  %v835 = vsel %vm82, %v758, 0
  %v838 = vsel %vm82, %v759, 0
  %v841 = vsel %vm82, %v760, 0
  %v844 = vsel %vm82, %v761, 0
  %v847 = vsel %vm82, %v762, 0
  %v850 = vsel %vm82, %v763, 0
  %v853 = vsel %vm82, %v764, 0
  %v856 = vsel %vm82, %v765, 0
  %v859 = vsel %vm82, %v766, 0
  %v862 = vsel %vm82, %v767, 0
  %v865 = vsel %vm82, %v768, 0
  %v868 = vsel %vm82, %v769, 0
  %v871 = vsel %vm82, %v770, 0
  %v874 = vsel %vm82, %v771, 0
  %v877 = vsel %vm82, %v772, 0
  %v880 = vsel %vm82, %v773, 0
  %v883 = vsel %vm82, %v774, 0
  %v886 = vsel %vm82, %v775, 0
  %v889 = vsel %vm82, %v776, 0
  %v892 = vsel %vm82, %v777, 0
  %v895 = vsel %vm82, %v778, 0
  %v898 = vsel %vm82, %v779, 0
  %v901 = vsel %vm82, %v780, 0
  %v904 = vsel %vm82, %v781, 0
  %v907 = vsel %vm82, %v782, 0
  %v910 = vsel %vm82, %v783, 0
  %912 = vmatprep.subr.bf16.mxu0 0
  %913 = vmatpush1.bf16.msra.mxu0 %v808
  %914 = vmatprep.subr.bf16.mxu0 0
  %915 = vmatpush1.bf16.msra.mxu0 %v809
  %916 = vmatprep.subr.bf16.mxu0 0
  %917 = vmatpush1.bf16.msra.mxu0 %v810
  %918 = vmatprep.subr.bf16.mxu0 0
  %919 = vmatpush1.bf16.msra.mxu0 %v811
  %920 = vmatprep.subr.bf16.mxu0 0
  %921 = vmatpush1.bf16.msra.mxu0 0
  %922 = vmatprep.subr.bf16.mxu0 0
  %923 = vmatpush1.bf16.msra.mxu0 0
  %924 = vmatprep.subr.bf16.mxu0 0
  %925 = vmatpush1.bf16.msra.mxu0 0
  %926 = vmatprep.subr.bf16.mxu0 0
  %927 = vmatpush1.bf16.msra.mxu0 0
  %928 = vmatprep.subr.bf16.mxu0 0
  %929 = vmatpush1.bf16.msra.mxu0 0
  %930 = vmatprep.subr.bf16.mxu0 0
  %931 = vmatpush1.bf16.msra.mxu0 0
  %932 = vmatprep.subr.bf16.mxu0 0
  %933 = vmatpush1.bf16.msra.mxu0 0
  %934 = vmatprep.subr.bf16.mxu0 0
  %935 = vmatpush1.bf16.msra.mxu0 0
  %936 = vmatprep.subr.bf16.mxu0 0
  %937 = vmatpush1.bf16.msra.mxu0 0
  %938 = vmatprep.subr.bf16.mxu0 0
  %939 = vmatpush1.bf16.msra.mxu0 0
  %940 = vmatprep.subr.bf16.mxu0 0
  %941 = vmatpush1.bf16.msra.mxu0 0
  %942 = vmatprep.subr.bf16.mxu0 0
  %943 = vmatpush1.bf16.msra.mxu0 0
  %944 = vmatprep.mubr.bf16.mxu0 0
  %945 = vmatmul.mubr.bf16.gmra.mrb[0].mxu0 %v817
  %v946 = vpop.f32.mrb[0].mxu0
  %v947 = vadd.f32 0.0, %v946
  %v948 = vpop.f32.mrb[0].mxu0
  %v949 = vpop.f32.mrb[0].mxu0
  %v950 = vadd.f32 0.0, %v949
  %v951 = vpop.f32.mrb[0].mxu0
  %952 = vmatprep.mubr.bf16.mxu0 0
  %953 = vmatmul.mubr.bf16.gmra.mrb[0].mxu0 %v820
  %v954 = vpop.f32.mrb[0].mxu0
  %v955 = vadd.f32 0.0, %v954
  %v956 = vpop.f32.mrb[0].mxu0
  %v957 = vpop.f32.mrb[0].mxu0
  %v958 = vadd.f32 0.0, %v957
  %v959 = vpop.f32.mrb[0].mxu0
  %960 = vmatprep.mubr.bf16.mxu0 0
  %961 = vmatmul.mubr.bf16.gmra.mrb[0].mxu0 %v823
  %v962 = vpop.f32.mrb[0].mxu0
  %v963 = vadd.f32 0.0, %v962
  %v964 = vpop.f32.mrb[0].mxu0
  %v965 = vpop.f32.mrb[0].mxu0
  %v966 = vadd.f32 0.0, %v965
  %v967 = vpop.f32.mrb[0].mxu0
  %968 = vmatprep.mubr.bf16.mxu0 0
  %969 = vmatmul.mubr.bf16.gmra.mrb[0].mxu0 %v826
  %v970 = vpop.f32.mrb[0].mxu0
  %v971 = vadd.f32 0.0, %v970
  %v972 = vpop.f32.mrb[0].mxu0
  %v973 = vpop.f32.mrb[0].mxu0
  %v974 = vadd.f32 0.0, %v973
  %v975 = vpop.f32.mrb[0].mxu0
  %976 = vmatprep.mubr.bf16.mxu0 0
  %977 = vmatmul.mubr.bf16.gmra.mrb[0].mxu0 %v829
  %v978 = vpop.f32.mrb[0].mxu0
  %v979 = vadd.f32 0.0, %v978
  %v980 = vpop.f32.mrb[0].mxu0
  %v981 = vpop.f32.mrb[0].mxu0
  %v982 = vadd.f32 0.0, %v981
  %v983 = vpop.f32.mrb[0].mxu0
  %984 = vmatprep.mubr.bf16.mxu0 0
  %985 = vmatmul.mubr.bf16.gmra.mrb[0].mxu0 %v832
  %v986 = vpop.f32.mrb[0].mxu0
  %v987 = vadd.f32 0.0, %v986
  %v988 = vpop.f32.mrb[0].mxu0
  %v989 = vpop.f32.mrb[0].mxu0
  %v990 = vadd.f32 0.0, %v989
  %v991 = vpop.f32.mrb[0].mxu0
  %992 = vmatprep.mubr.bf16.mxu0 0
  %993 = vmatmul.mubr.bf16.gmra.mrb[0].mxu0 %v835
  %v994 = vpop.f32.mrb[0].mxu0
  %v995 = vadd.f32 0.0, %v994
  %v996 = vpop.f32.mrb[0].mxu0
  %v997 = vpop.f32.mrb[0].mxu0
  %v998 = vadd.f32 0.0, %v997
  %v999 = vpop.f32.mrb[0].mxu0
  %1000 = vmatprep.mubr.bf16.mxu0 0
  %1001 = vmatmul.mubr.bf16.gmra.mrb[0].mxu0 %v838
  %v1002 = vpop.f32.mrb[0].mxu0
  %v1003 = vadd.f32 0.0, %v1002
  %v1004 = vpop.f32.mrb[0].mxu0
  %v1005 = vpop.f32.mrb[0].mxu0
  %v1006 = vadd.f32 0.0, %v1005
  %v1007 = vpop.f32.mrb[0].mxu0
  %1008 = vmatprep.mubr.bf16.mxu0 0
  %1009 = vmatmul.mubr.bf16.gmra.mrb[0].mxu0 %v841
  %v1010 = vpop.f32.mrb[0].mxu0
  %v1011 = vadd.f32 0.0, %v1010
  %v1012 = vpop.f32.mrb[0].mxu0
  %v1013 = vpop.f32.mrb[0].mxu0
  %v1014 = vadd.f32 0.0, %v1013
  %v1015 = vpop.f32.mrb[0].mxu0
  %1016 = vmatprep.mubr.bf16.mxu0 0
  %1017 = vmatmul.mubr.bf16.gmra.mrb[0].mxu0 %v844
  %v1018 = vpop.f32.mrb[0].mxu0
  %v1019 = vadd.f32 0.0, %v1018
  %v1020 = vpop.f32.mrb[0].mxu0
  %v1021 = vpop.f32.mrb[0].mxu0
  %v1022 = vadd.f32 0.0, %v1021
  %v1023 = vpop.f32.mrb[0].mxu0
  %1024 = vmatprep.mubr.bf16.mxu0 0
  %1025 = vmatmul.mubr.bf16.gmra.mrb[0].mxu0 %v847
  %v1026 = vpop.f32.mrb[0].mxu0
  %v1027 = vadd.f32 0.0, %v1026
  %v1028 = vpop.f32.mrb[0].mxu0
  %v1029 = vpop.f32.mrb[0].mxu0
  %v1030 = vadd.f32 0.0, %v1029
  %v1031 = vpop.f32.mrb[0].mxu0
  %1032 = vmatprep.mubr.bf16.mxu0 0
  %1033 = vmatmul.mubr.bf16.gmra.mrb[0].mxu0 %v850
  %v1034 = vpop.f32.mrb[0].mxu0
  %v1035 = vadd.f32 0.0, %v1034
  %v1036 = vpop.f32.mrb[0].mxu0
  %v1037 = vpop.f32.mrb[0].mxu0
  %v1038 = vadd.f32 0.0, %v1037
  %v1039 = vpop.f32.mrb[0].mxu0
  %1040 = vmatprep.mubr.bf16.mxu0 0
  %1041 = vmatmul.mubr.bf16.gmra.mrb[0].mxu0 %v853
  %v1042 = vpop.f32.mrb[0].mxu0
  %v1043 = vadd.f32 0.0, %v1042
  %v1044 = vpop.f32.mrb[0].mxu0
  %v1045 = vpop.f32.mrb[0].mxu0
  %v1046 = vadd.f32 0.0, %v1045
  %v1047 = vpop.f32.mrb[0].mxu0
  %1048 = vmatprep.mubr.bf16.mxu0 0
  %1049 = vmatmul.mubr.bf16.gmra.mrb[0].mxu0 %v856
  %v1050 = vpop.f32.mrb[0].mxu0
  %v1051 = vadd.f32 0.0, %v1050
  %v1052 = vpop.f32.mrb[0].mxu0
  %v1053 = vpop.f32.mrb[0].mxu0
  %v1054 = vadd.f32 0.0, %v1053
  %v1055 = vpop.f32.mrb[0].mxu0
  %1056 = vmatprep.mubr.bf16.mxu0 0
  %1057 = vmatmul.mubr.bf16.gmra.mrb[0].mxu0 %v859
  %v1058 = vpop.f32.mrb[0].mxu0
  %v1059 = vadd.f32 0.0, %v1058
  %v1060 = vpop.f32.mrb[0].mxu0
  %v1061 = vpop.f32.mrb[0].mxu0
  %v1062 = vadd.f32 0.0, %v1061
  %v1063 = vpop.f32.mrb[0].mxu0
  %1064 = vmatprep.mubr.bf16.mxu0 0
  %1065 = vmatmul.mubr.bf16.gmra.mrb[0].mxu0 %v862
  %v1066 = vpop.f32.mrb[0].mxu0
  %v1067 = vadd.f32 0.0, %v1066
  %v1068 = vpop.f32.mrb[0].mxu0
  %v1069 = vpop.f32.mrb[0].mxu0
  %v1070 = vadd.f32 0.0, %v1069
  %v1071 = vpop.f32.mrb[0].mxu0
  %1072 = vmatprep.mubr.bf16.mxu0 0
  %1073 = vmatmul.mubr.bf16.gmra.mrb[0].mxu0 %v865
  %v1074 = vpop.f32.mrb[0].mxu0
  %v1075 = vadd.f32 0.0, %v1074
  %v1076 = vpop.f32.mrb[0].mxu0
  %v1077 = vpop.f32.mrb[0].mxu0
  %v1078 = vadd.f32 0.0, %v1077
  %v1079 = vpop.f32.mrb[0].mxu0
  %1080 = vmatprep.mubr.bf16.mxu0 0
  %1081 = vmatmul.mubr.bf16.gmra.mrb[0].mxu0 %v868
  %v1082 = vpop.f32.mrb[0].mxu0
  %v1083 = vadd.f32 0.0, %v1082
  %v1084 = vpop.f32.mrb[0].mxu0
  %v1085 = vpop.f32.mrb[0].mxu0
  %v1086 = vadd.f32 0.0, %v1085
  %v1087 = vpop.f32.mrb[0].mxu0
  %1088 = vmatprep.mubr.bf16.mxu0 0
  %1089 = vmatmul.mubr.bf16.gmra.mrb[0].mxu0 %v871
  %v1090 = vpop.f32.mrb[0].mxu0
  %v1091 = vadd.f32 0.0, %v1090
  %v1092 = vpop.f32.mrb[0].mxu0
  %v1093 = vpop.f32.mrb[0].mxu0
  %v1094 = vadd.f32 0.0, %v1093
  %v1095 = vpop.f32.mrb[0].mxu0
  %1096 = vmatprep.mubr.bf16.mxu0 0
  %1097 = vmatmul.mubr.bf16.gmra.mrb[0].mxu0 %v874
  %v1098 = vpop.f32.mrb[0].mxu0
  %v1099 = vadd.f32 0.0, %v1098
  %v1100 = vpop.f32.mrb[0].mxu0
  %v1101 = vpop.f32.mrb[0].mxu0
  %v1102 = vadd.f32 0.0, %v1101
  %v1103 = vpop.f32.mrb[0].mxu0
  %1104 = vmatprep.mubr.bf16.mxu0 0
  %1105 = vmatmul.mubr.bf16.gmra.mrb[0].mxu0 %v877
  %v1106 = vpop.f32.mrb[0].mxu0
  %v1107 = vadd.f32 0.0, %v1106
  %v1108 = vpop.f32.mrb[0].mxu0
  %v1109 = vpop.f32.mrb[0].mxu0
  %v1110 = vadd.f32 0.0, %v1109
  %v1111 = vpop.f32.mrb[0].mxu0
  %1112 = vmatprep.mubr.bf16.mxu0 0
  %1113 = vmatmul.mubr.bf16.gmra.mrb[0].mxu0 %v880
  %v1114 = vpop.f32.mrb[0].mxu0
  %v1115 = vadd.f32 0.0, %v1114
  %v1116 = vpop.f32.mrb[0].mxu0
  %v1117 = vpop.f32.mrb[0].mxu0
  %v1118 = vadd.f32 0.0, %v1117
  %v1119 = vpop.f32.mrb[0].mxu0
  %1120 = vmatprep.mubr.bf16.mxu0 0
  %1121 = vmatmul.mubr.bf16.gmra.mrb[0].mxu0 %v883
  %v1122 = vpop.f32.mrb[0].mxu0
  %v1123 = vadd.f32 0.0, %v1122
  %v1124 = vpop.f32.mrb[0].mxu0
  %v1125 = vpop.f32.mrb[0].mxu0
  %v1126 = vadd.f32 0.0, %v1125
  %v1127 = vpop.f32.mrb[0].mxu0
  %1128 = vmatprep.mubr.bf16.mxu0 0
  %1129 = vmatmul.mubr.bf16.gmra.mrb[0].mxu0 %v886
  %v1130 = vpop.f32.mrb[0].mxu0
  %v1131 = vadd.f32 0.0, %v1130
  %v1132 = vpop.f32.mrb[0].mxu0
  %v1133 = vpop.f32.mrb[0].mxu0
  %v1134 = vadd.f32 0.0, %v1133
  %v1135 = vpop.f32.mrb[0].mxu0
  %1136 = vmatprep.mubr.bf16.mxu0 0
  %1137 = vmatmul.mubr.bf16.gmra.mrb[0].mxu0 %v889
  %v1138 = vpop.f32.mrb[0].mxu0
  %v1139 = vadd.f32 0.0, %v1138
  %v1140 = vpop.f32.mrb[0].mxu0
  %v1141 = vpop.f32.mrb[0].mxu0
  %v1142 = vadd.f32 0.0, %v1141
  %v1143 = vpop.f32.mrb[0].mxu0
  %1144 = vmatprep.mubr.bf16.mxu0 0
  %1145 = vmatmul.mubr.bf16.gmra.mrb[0].mxu0 %v892
  %v1146 = vpop.f32.mrb[0].mxu0
  %v1147 = vadd.f32 0.0, %v1146
  %v1148 = vpop.f32.mrb[0].mxu0
  %v1149 = vpop.f32.mrb[0].mxu0
  %v1150 = vadd.f32 0.0, %v1149
  %v1151 = vpop.f32.mrb[0].mxu0
  %1152 = vmatprep.mubr.bf16.mxu0 0
  %1153 = vmatmul.mubr.bf16.gmra.mrb[0].mxu0 %v895
  %v1154 = vpop.f32.mrb[0].mxu0
  %v1155 = vadd.f32 0.0, %v1154
  %v1156 = vpop.f32.mrb[0].mxu0
  %v1157 = vpop.f32.mrb[0].mxu0
  %v1158 = vadd.f32 0.0, %v1157
  %v1159 = vpop.f32.mrb[0].mxu0
  %1160 = vmatprep.mubr.bf16.mxu0 0
  %1161 = vmatmul.mubr.bf16.gmra.mrb[0].mxu0 %v898
  %v1162 = vpop.f32.mrb[0].mxu0
  %v1163 = vadd.f32 0.0, %v1162
  %v1164 = vpop.f32.mrb[0].mxu0
  %v1165 = vpop.f32.mrb[0].mxu0
  %v1166 = vadd.f32 0.0, %v1165
  %v1167 = vpop.f32.mrb[0].mxu0
  %1168 = vmatprep.mubr.bf16.mxu0 0
  %1169 = vmatmul.mubr.bf16.gmra.mrb[0].mxu0 %v901
  %v1170 = vpop.f32.mrb[0].mxu0
  %v1171 = vadd.f32 0.0, %v1170
  %v1172 = vpop.f32.mrb[0].mxu0
  %v1173 = vpop.f32.mrb[0].mxu0
  %v1174 = vadd.f32 0.0, %v1173
  %v1175 = vpop.f32.mrb[0].mxu0
  %1176 = vmatprep.mubr.bf16.mxu0 0
  %1177 = vmatmul.mubr.bf16.gmra.mrb[0].mxu0 %v904
  %v1178 = vpop.f32.mrb[0].mxu0
  %v1179 = vadd.f32 0.0, %v1178
  %v1180 = vpop.f32.mrb[0].mxu0
  %v1181 = vpop.f32.mrb[0].mxu0
  %v1182 = vadd.f32 0.0, %v1181
  %v1183 = vpop.f32.mrb[0].mxu0
  %1184 = vmatprep.mubr.bf16.mxu0 0
  %1185 = vmatmul.mubr.bf16.gmra.mrb[0].mxu0 %v907
  %v1186 = vpop.f32.mrb[0].mxu0
  %v1187 = vadd.f32 0.0, %v1186
  %v1188 = vpop.f32.mrb[0].mxu0
  %v1189 = vpop.f32.mrb[0].mxu0
  %v1190 = vadd.f32 0.0, %v1189
  %v1191 = vpop.f32.mrb[0].mxu0
  %1192 = vmatprep.mubr.bf16.mxu0 0
  %1193 = vmatmul.mubr.bf16.gmra.mrb[0].mxu0 %v910
  %v1194 = vpop.f32.mrb[0].mxu0
  %v1195 = vadd.f32 0.0, %v1194
  %v1196 = vpop.f32.mrb[0].mxu0
  %v1197 = vpop.f32.mrb[0].mxu0
  %v1198 = vadd.f32 0.0, %v1197
  %v1199 = vpop.f32.mrb[0].mxu0
  %1200 = vdwg.mxu0
  %vm1201 = vcmask 392192
  %1202 = vst.msk [vmem:[%s4] sm:$0xff] %vm1201, %v947
  %1203 = vst.msk [vmem:[%s4 + $0x8] sm:$0xff] %vm1201, %v950
  %1204 = vst.msk [vmem:[%s4 + $0x10] sm:$0xff] %vm1201, %v955
  %1205 = vst.msk [vmem:[%s4 + $0x18] sm:$0xff] %vm1201, %v958
  %1206 = vst.msk [vmem:[%s4 + $0x20] sm:$0xff] %vm1201, %v963
  %1207 = vst.msk [vmem:[%s4 + $0x28] sm:$0xff] %vm1201, %v966
  %1208 = vst.msk [vmem:[%s4 + $0x30] sm:$0xff] %vm1201, %v971
  %1209 = vst.msk [vmem:[%s4 + $0x38] sm:$0xff] %vm1201, %v974
  %1210 = vst.msk [vmem:[%s4 + $0x40] sm:$0xff] %vm1201, %v979
  %1211 = vst.msk [vmem:[%s4 + $0x48] sm:$0xff] %vm1201, %v982
  %1212 = vst.msk [vmem:[%s4 + $0x50] sm:$0xff] %vm1201, %v987
  %1213 = vst.msk [vmem:[%s4 + $0x58] sm:$0xff] %vm1201, %v990
  %1214 = vst.msk [vmem:[%s4 + $0x60] sm:$0xff] %vm1201, %v995
  %1215 = vst.msk [vmem:[%s4 + $0x68] sm:$0xff] %vm1201, %v998
  %1216 = vst.msk [vmem:[%s4 + $0x70] sm:$0xff] %vm1201, %v1003
  %1217 = vst.msk [vmem:[%s4 + $0x78] sm:$0xff] %vm1201, %v1006
  %1218 = vst.msk [vmem:[%s4 + $0x80] sm:$0xff] %vm1201, %v1011
  %1219 = vst.msk [vmem:[%s4 + $0x88] sm:$0xff] %vm1201, %v1014
  %1220 = vst.msk [vmem:[%s4 + $0x90] sm:$0xff] %vm1201, %v1019
  %1221 = vst.msk [vmem:[%s4 + $0x98] sm:$0xff] %vm1201, %v1022
  %1222 = vst.msk [vmem:[%s4 + $0xa0] sm:$0xff] %vm1201, %v1027
  %1223 = vst.msk [vmem:[%s4 + $0xa8] sm:$0xff] %vm1201, %v1030
  %1224 = vst.msk [vmem:[%s4 + $0xb0] sm:$0xff] %vm1201, %v1035
  %1225 = vst.msk [vmem:[%s4 + $0xb8] sm:$0xff] %vm1201, %v1038
  %1226 = vst.msk [vmem:[%s4 + $0xc0] sm:$0xff] %vm1201, %v1043
  %1227 = vst.msk [vmem:[%s4 + $0xc8] sm:$0xff] %vm1201, %v1046
  %1228 = vst.msk [vmem:[%s4 + $0xd0] sm:$0xff] %vm1201, %v1051
  %1229 = vst.msk [vmem:[%s4 + $0xd8] sm:$0xff] %vm1201, %v1054
  %1230 = vst.msk [vmem:[%s4 + $0xe0] sm:$0xff] %vm1201, %v1059
  %1231 = vst.msk [vmem:[%s4 + $0xe8] sm:$0xff] %vm1201, %v1062
  %1232 = vst.msk [vmem:[%s4 + $0xf0] sm:$0xff] %vm1201, %v1067
  %1233 = vst.msk [vmem:[%s4 + $0xf8] sm:$0xff] %vm1201, %v1070
  %1234 = vst.msk [vmem:[%s4 + $0x100] sm:$0xff] %vm1201, %v1075
  %1235 = vst.msk [vmem:[%s4 + $0x108] sm:$0xff] %vm1201, %v1078
  %1236 = vst.msk [vmem:[%s4 + $0x110] sm:$0xff] %vm1201, %v1083
  %1237 = vst.msk [vmem:[%s4 + $0x118] sm:$0xff] %vm1201, %v1086
  %1238 = vst.msk [vmem:[%s4 + $0x120] sm:$0xff] %vm1201, %v1091
  %1239 = vst.msk [vmem:[%s4 + $0x128] sm:$0xff] %vm1201, %v1094
  %1240 = vst.msk [vmem:[%s4 + $0x130] sm:$0xff] %vm1201, %v1099
  %1241 = vst.msk [vmem:[%s4 + $0x138] sm:$0xff] %vm1201, %v1102
  %1242 = vst.msk [vmem:[%s4 + $0x140] sm:$0xff] %vm1201, %v1107
  %1243 = vst.msk [vmem:[%s4 + $0x148] sm:$0xff] %vm1201, %v1110
  %1244 = vst.msk [vmem:[%s4 + $0x150] sm:$0xff] %vm1201, %v1115
  %1245 = vst.msk [vmem:[%s4 + $0x158] sm:$0xff] %vm1201, %v1118
  %1246 = vst.msk [vmem:[%s4 + $0x160] sm:$0xff] %vm1201, %v1123
  %1247 = vst.msk [vmem:[%s4 + $0x168] sm:$0xff] %vm1201, %v1126
  %1248 = vst.msk [vmem:[%s4 + $0x170] sm:$0xff] %vm1201, %v1131
  %1249 = vst.msk [vmem:[%s4 + $0x178] sm:$0xff] %vm1201, %v1134
  %1250 = vst.msk [vmem:[%s4 + $0x180] sm:$0xff] %vm1201, %v1139
  %1251 = vst.msk [vmem:[%s4 + $0x188] sm:$0xff] %vm1201, %v1142
  %1252 = vst.msk [vmem:[%s4 + $0x190] sm:$0xff] %vm1201, %v1147
  %1253 = vst.msk [vmem:[%s4 + $0x198] sm:$0xff] %vm1201, %v1150
  %1254 = vst.msk [vmem:[%s4 + $0x1a0] sm:$0xff] %vm1201, %v1155
  %1255 = vst.msk [vmem:[%s4 + $0x1a8] sm:$0xff] %vm1201, %v1158
  %1256 = vst.msk [vmem:[%s4 + $0x1b0] sm:$0xff] %vm1201, %v1163
  %1257 = vst.msk [vmem:[%s4 + $0x1b8] sm:$0xff] %vm1201, %v1166
  %1258 = vst.msk [vmem:[%s4 + $0x1c0] sm:$0xff] %vm1201, %v1171
  %1259 = vst.msk [vmem:[%s4 + $0x1c8] sm:$0xff] %vm1201, %v1174
  %1260 = vst.msk [vmem:[%s4 + $0x1d0] sm:$0xff] %vm1201, %v1179
  %1261 = vst.msk [vmem:[%s4 + $0x1d8] sm:$0xff] %vm1201, %v1182
  %1262 = vst.msk [vmem:[%s4 + $0x1e0] sm:$0xff] %vm1201, %v1187
  %1263 = vst.msk [vmem:[%s4 + $0x1e8] sm:$0xff] %vm1201, %v1190
  %1264 = vst.msk [vmem:[%s4 + $0x1f0] sm:$0xff] %vm1201, %v1195
  %1265 = vst.msk [vmem:[%s4 + $0x1f8] sm:$0xff] %vm1201, %v1198
  // Predicated region
  $region18: #{generator_sec_forward.8} parent=0 // pred_check
    _
  $region19: #{generator_sec_forward.8} parent=0 // pred_check_branch
    %1267 = sbr.rel (0) target = $region21
  $region20: #{generator_sec_forward.8} parent=0 // pred_region
    _
  $region21: #{generator_sec_forward.8} parent=0 // pred_fallthru
    _
  // Predicated region
  $region22: #{generator_sec_forward.8} parent=0 // pred_check
    _
  $region23: #{generator_sec_forward.8} parent=0 // pred_check_branch
    %1269 = sbr.rel (0) target = $region25
  $region24: #{generator_sec_forward.8} parent=0 // pred_region
    _
  $region25: #{generator_sec_forward.8} parent=0 // pred_fallthru
    _

// kernel: generator_sec_forward.9
$region0: #{generator_sec_forward.9}
  #allocation0 [shape = 'u32[]', space=smem, size = 0x4, offset = 0x4, fixed_abs, tag = 'smem constant byte address 0x4 - core index']
  #allocation1 [shape = 'u32[144,128]{1,0:T(1,128)}', space=vmem, size = 0x12000, scoped, tag = 'internal scratch']
  %s0 = inlined_call_operand.vmem [shape: f32[16,384], index: 0, kind: input, shape index: {}]
  %s1 = inlined_call_operand.vmem [shape: f32[16,384], index: 1, kind: output, shape index: {}]
  %s2 = sld [smem:[#allocation0]]
  $region14: #{generator_sec_forward.9} parent=0
    _
  %s4 = ssub.s32 1, %s2
  %s5 = scalar_select 0, %s4, %s2
  // Predicated region
  $region2: #{generator_sec_forward.9} parent=0 // pred_check
    _
  $region3: #{generator_sec_forward.9} parent=0 // pred_check_branch
    %7 = sbr.rel (0) target = $region5
  $region4: #{generator_sec_forward.9} parent=0 // pred_region
    _
  $region5: #{generator_sec_forward.9} parent=0 // pred_fallthru
    _
  %v8 = vld [vmem:[%s0] sm:$0xff]
  %v9 = vld [vmem:[%s0 + $0x8] sm:$0xff]
  %v10 = vld [vmem:[%s0 + $0x10] sm:$0xff]
  %v11 = vld [vmem:[%s0 + $0x18] sm:$0xff]
  %v12 = vld [vmem:[%s0 + $0x20] sm:$0xff]
  %v13 = vld [vmem:[%s0 + $0x28] sm:$0xff]
  %v14 = vtanh.pop %v8
  %v15 = vtanh.pop %v9
  %v16 = vtanh.pop %v10
  %v17 = vtanh.pop %v11
  %v18 = vtanh.pop %v12
  %v19 = vtanh.pop %v13
  %20 = vst [vmem:[%s1] sm:$0xff] %v14
  %21 = vst [vmem:[%s1 + $0x8] sm:$0xff] %v15
  %22 = vst [vmem:[%s1 + $0x10] sm:$0xff] %v16
  %23 = vst [vmem:[%s1 + $0x18] sm:$0xff] %v17
  %24 = vst [vmem:[%s1 + $0x20] sm:$0xff] %v18
  %25 = vst [vmem:[%s1 + $0x28] sm:$0xff] %v19
  // Predicated region
  $region6: #{generator_sec_forward.9} parent=0 // pred_check
    _
  $region7: #{generator_sec_forward.9} parent=0 // pred_check_branch
    %27 = sbr.rel (0) target = $region9
  $region8: #{generator_sec_forward.9} parent=0 // pred_region
    _
  $region9: #{generator_sec_forward.9} parent=0 // pred_fallthru
    _
  // Predicated region
  $region10: #{generator_sec_forward.9} parent=0 // pred_check
    _
  $region11: #{generator_sec_forward.9} parent=0 // pred_check_branch
    %29 = sbr.rel (0) target = $region13
  $region12: #{generator_sec_forward.9} parent=0 // pred_region
    _
  $region13: #{generator_sec_forward.9} parent=0 // pred_fallthru
    _

</llo_original>
